<compile_context>
chip_gen: v5e
topology: v5e:2x2
jax: 0.10.0
libtpu: 0.0.40
codegen_flags: <defaults>
</compile_context>

<pallas_src>
import numpy as np
import jax
import jax.numpy as jnp
from jax import lax
from jax.experimental import pallas as pl
from jax.experimental.pallas import tpu as pltpu

# ----------------------------- config (small, shape-consistent) ----------------
SAMPLERATE = 22050
BATCH = 2
N_EVENTS = 4                       # original module uses global n_events = 16
LATENT_DIM = 16
CHANNELS = 8
RESONANCE_SIZE = 4096              # original: 32768
WINDOW = 512
STEP = 256
N_FRAMES = RESONANCE_SIZE // STEP  # 16  (original: 128)
COARSE_COEFFS = WINDOW // 2 + 1    # 257 (fixed by window size)
N_ATOMS = 16
N_PIECEWISE = 4
IMPULSE_LEN = 256
BASE_RESONANCE = 0.02
RES_FACTOR = (1.0 - BASE_RESONANCE) * 0.99
# Lane tile along the resonance axis.  2048 -> 2 grid steps: big, lane-dense blocks that
# still fit comfortably in VMEM, while keeping a >=2-iteration "parallel" axis so v7x's
# two TensorCores both get work.  (At the production R=32768 config keep this at 2048-4096
# on v7x's 64 MiB VMEM and set vmem_limit_bytes explicitly.)
RES_TILE = 2048


# ----------------------------------- Pallas kernels ----------------------------
def _resonance_kernel(sel_ref, denv_ref, atoms_ref, winterp_ref, out_ref):
    # sel:(P,N,A)  denv:(N,F)  atoms:(A,TR)  winterp:(F,TR)  out:(P,N,TR)
    P, N, TR = out_ref.shape
    A = atoms_ref.shape[0]
    # decay interpolated in-kernel: (N,F) @ (F,TR) static linear-interp matrix.
    decay = jnp.dot(denv_ref[...], winterp_ref[...],
                    preferred_element_type=jnp.float32)               # (N, TR)
    # all piecewise branches in ONE MXU push: (P*N, A) @ (A, TR)
    sel = sel_ref[...].reshape(P * N, A)
    res = jnp.dot(sel, atoms_ref[...], preferred_element_type=jnp.float32)
    out_ref[...] = res.reshape(P, N, TR) * decay[None, :, :]


def resonance_synth(sel, d_env, atoms, w_interp):
    P, N, A = sel.shape
    Fr = d_env.shape[1]
    R = atoms.shape[1]
    assert R % RES_TILE == 0, (R, RES_TILE)
    n_tiles = R // RES_TILE
    return pl.pallas_call(
        _resonance_kernel,
        out_shape=jax.ShapeDtypeStruct((P, N, R), jnp.float32),
        grid_spec=pltpu.PrefetchScalarGridSpec(
            num_scalar_prefetch=0,
            grid=(n_tiles,),
            in_specs=[
                pl.BlockSpec((P, N, A), lambda t: (0, 0, 0)),
                pl.BlockSpec((N, Fr), lambda t: (0, 0)),
                pl.BlockSpec((A, RES_TILE), lambda t: (0, t)),
                pl.BlockSpec((Fr, RES_TILE), lambda t: (0, t)),
            ],
            out_specs=pl.BlockSpec((P, N, RES_TILE), lambda t: (0, 0, t)),
        ),
        compiler_params=pltpu.CompilerParams(
            dimension_semantics=("parallel",)),
    )(sel, d_env, atoms, w_interp)


def _mixture_kernel(mx_ref, winterp_ref, convs_ref, out_ref):
    # mx:(P,N,F) frame-rate mixture logits; winterp:(F,TR); convs:(P,N,TR); out:(N,TR)
    P, N, Fr = mx_ref.shape
    TR = out_ref.shape[-1]
    # in-kernel linear interpolation of ALL branch logits in one MXU push.
    logits = jnp.dot(mx_ref[...].reshape(P * N, Fr), winterp_ref[...],
                     preferred_element_type=jnp.float32).reshape(P, N, TR)
    m = jnp.max(logits, axis=0)                                        # (N, TR)
    e = jnp.exp(logits - m[None, :, :])                                # (P, N, TR)
    denom = jnp.sum(e, axis=0)                                         # (N, TR)
    acc = jnp.sum(e * convs_ref[...], axis=0)                          # (N, TR)
    out_ref[...] = acc * pl.reciprocal(denom, approx=True)             # EUP slot


def piecewise_mixture(mx, w_interp, convs):
    P, N, R = convs.shape
    Fr = mx.shape[-1]
    assert R % RES_TILE == 0, (R, RES_TILE)
    n_tiles = R // RES_TILE
    return pl.pallas_call(
        _mixture_kernel,
        out_shape=jax.ShapeDtypeStruct((N, R), jnp.float32),
        grid_spec=pltpu.PrefetchScalarGridSpec(
            num_scalar_prefetch=0,
            grid=(n_tiles,),
            in_specs=[
                pl.BlockSpec((P, N, Fr), lambda t: (0, 0, 0)),
                pl.BlockSpec((Fr, RES_TILE), lambda t: (0, t)),
                pl.BlockSpec((P, N, RES_TILE), lambda t: (0, 0, t)),
            ],
            out_specs=pl.BlockSpec((N, RES_TILE), lambda t: (0, t)),
        ),
        compiler_params=pltpu.CompilerParams(dimension_semantics=("parallel",)),
    )(mx, w_interp, convs)


def _final_mix_kernel(wd_ref, wi_ref, dry_ref, imp_ref, out_ref):
    # wd,wi:(N,1) precomputed softmax weights; dry,imp,out:(N,TR) -> pure weighted add
    out_ref[...] = dry_ref[...] * wd_ref[...] + imp_ref[...] * wi_ref[...]


def final_dry_wet_mix(w_dry, w_imp, dry, imp):
    N, R = dry.shape
    assert R % RES_TILE == 0, (R, RES_TILE)
    n_tiles = R // RES_TILE
    return pl.pallas_call(
        _final_mix_kernel,
        out_shape=jax.ShapeDtypeStruct((N, R), jnp.float32),
        grid_spec=pltpu.PrefetchScalarGridSpec(
            num_scalar_prefetch=0,
            grid=(n_tiles,),
            in_specs=[
                pl.BlockSpec((N, 1), lambda t: (0, 0)),
                pl.BlockSpec((N, 1), lambda t: (0, 0)),
                pl.BlockSpec((N, RES_TILE), lambda t: (0, t)),
                pl.BlockSpec((N, RES_TILE), lambda t: (0, t)),
            ],
            out_specs=pl.BlockSpec((N, RES_TILE), lambda t: (0, t)),
        ),
        compiler_params=pltpu.CompilerParams(dimension_semantics=("parallel",)),
    )(w_dry, w_imp, dry, imp)


# ----------------------------------- JAX glue -----------------------------------
def make_interp_matrix(in_size, out_size):
    """Dense matrix M (in,out) s.t. x @ M == F.interpolate(x, out, mode='linear')."""
    scale = in_size / out_size
    src = (np.arange(out_size, dtype=np.float64) + 0.5) * scale - 0.5
    src = np.clip(src, 0.0, in_size - 1.0)
    i0 = np.floor(src).astype(np.int64)
    i1 = np.minimum(i0 + 1, in_size - 1)
    w = (src - i0).astype(np.float32)
    cols = np.arange(out_size)
    mat = np.zeros((in_size, out_size), np.float32)
    mat[i0, cols] += (1.0 - w)
    mat[i1, cols] += w
    return jnp.asarray(mat)


def fft_convolve(a, b):
    """Linear convolution via zero-padded rFFT, keeping the first n samples."""
    n = a.shape[-1]
    a = jnp.concatenate([a, jnp.zeros_like(a)], axis=-1)
    b = jnp.concatenate([b, jnp.zeros_like(b)], axis=-1)
    spec = jnp.fft.rfft(a, axis=-1) * jnp.fft.rfft(b, axis=-1)
    return jnp.fft.irfft(spec, n=2 * n, axis=-1)[..., :n]


def windowed_audio(x, window_size, step_size):
    # NOTE: assumes periodic Hann analysis window (matching-pursuit helper semantics).
    pad = jnp.pad(x, [(0, 0)] * (x.ndim - 1) + [(0, step_size)])
    n_frames = (pad.shape[-1] - window_size) // step_size + 1
    idx = jnp.arange(n_frames)[:, None] * step_size + jnp.arange(window_size)[None, :]
    frames = pad[..., idx]
    win = 0.5 * (1.0 - jnp.cos(2.0 * np.pi * jnp.arange(window_size) / window_size))
    return frames * win.astype(x.dtype)


def unit_norm(x, eps=1e-8):
    n = jnp.sqrt(jnp.sum(x * x, axis=-1, keepdims=True))
    return x / (n + eps)


def overlap_add(x):
    # x: (B, E, F, W), 50% hop, no synthesis window.
    B, E, Fr, W = x.shape
    hop = W // 2
    first = x[..., :hop].reshape(B, E, Fr * hop)
    second = x[..., hop:].reshape(B, E, Fr * hop)
    first = jnp.pad(first, ((0, 0), (0, 0), (0, hop)))
    second = jnp.pad(second, ((0, 0), (0, 0), (hop, 0)))
    return first + second


def conv1d(x, w, b):
    # x: (N, C, L), w: (O, I, K), SAME padding for K=3.
    y = lax.conv_general_dilated(x, w, window_strides=(1,), padding=[(1, 1)],
                                 dimension_numbers=('NCH', 'OIH', 'NCH'))
    return y + b[None, :, None]


def conv_upsample_apply(p, latent):
    """ConvUpsample(from_latent=True, mode='nearest'): Linear -> [x2 nearest, conv3, leaky]^L -> conv3."""
    x = latent @ p['init_w'] + p['init_b']
    x = x.reshape(latent.shape[0], p['channels'], p['start_size'])
    for (w, b) in p['layers']:
        x = jnp.repeat(x, 2, axis=-1)              # nearest x2 upsample
        x = conv1d(x, w, b)
        x = jnp.where(x > 0, x, 0.2 * x)           # leaky relu 0.2
    x = conv1d(x, *p['final'])
    return x                                        # (N, out_channels, end_size)


# ----------------------------------- params ------------------------------------
def _init_linear(key, d_in, d_out):
    kw, kb = jax.random.split(key)
    w = jax.random.normal(kw, (d_in, d_out), jnp.float32) / np.sqrt(d_in)
    b = jax.random.normal(kb, (d_out,), jnp.float32) * 0.01
    return w, b


def _init_conv(key, c_in, c_out, k=3):
    kw, kb = jax.random.split(key)
    w = jax.random.normal(kw, (c_out, c_in, k), jnp.float32) / np.sqrt(c_in * k)
    b = jax.random.normal(kb, (c_out,), jnp.float32) * 0.01
    return w, b


def init_conv_upsample(key, latent_dim, channels, start_size, end_size, out_channels):
    n_layers = int(np.log2(end_size) - np.log2(start_size))
    keys = jax.random.split(key, n_layers + 2)
    init_w, init_b = _init_linear(keys[0], latent_dim, channels * start_size)
    layers = [_init_conv(keys[1 + i], channels, channels, 3) for i in range(n_layers)]
    final = _init_conv(keys[-1], channels, out_channels, 3)
    # TODO(synk): weight_norm reparametrization omitted (identical forward at init).
    return dict(init_w=init_w, init_b=init_b, layers=layers, final=final,
                channels=channels, start_size=start_size)


def make_atoms(n_atoms, resonance_size):
    low_samples = SAMPLERATE // 40
    high_samples = SAMPLERATE // 4000
    spacings = np.linspace(low_samples, high_samples, n_atoms)
    oversample = 8
    atoms = np.zeros((n_atoms, resonance_size * oversample), np.float32)
    for i, spacing in enumerate(spacings):
        sp = int(spacing * oversample)
        atoms[i, ::sp + 1] = 1.0
    atoms = atoms.reshape(n_atoms, resonance_size, oversample).mean(axis=-1)
    return jnp.asarray(atoms, jnp.float32)


def init_params(key):
    keys = jax.random.split(key, 6)
    decay_w, decay_b = _init_linear(keys[0], LATENT_DIM, N_FRAMES)
    sel_keys = jax.random.split(keys[1], N_PIECEWISE)
    sel_w = jnp.stack([_init_linear(k, LATENT_DIM, N_ATOMS)[0] for k in sel_keys])
    sel_b = jnp.stack([_init_linear(k, LATENT_DIM, N_ATOMS)[1] for k in sel_keys])
    mix_w, mix_b = _init_linear(keys[2], LATENT_DIM, 2)
    to_filter = init_conv_upsample(keys[3], LATENT_DIM, CHANNELS, 8, N_FRAMES, COARSE_COEFFS)
    to_mixture = init_conv_upsample(keys[4], LATENT_DIM, CHANNELS, 8, N_FRAMES, N_PIECEWISE)
    return dict(decay_w=decay_w, decay_b=decay_b,
                sel_w=sel_w, sel_b=sel_b.reshape(N_PIECEWISE, 1, N_ATOMS),
                mix_w=mix_w, mix_b=mix_b.reshape(1, 2),
                to_filter=to_filter, to_mixture=to_mixture,
                atoms=make_atoms(N_ATOMS, RESONANCE_SIZE),
                w_interp=make_interp_matrix(N_FRAMES, RESONANCE_SIZE))


# ----------------------------------- forward -----------------------------------
def resonance_model2_forward(params, latent, impulse):
    # latent: (B, E, D) float32; impulse: (B, E, IMPULSE_LEN) float32
    B, E, D = latent.shape
    N = B * E
    R = RESONANCE_SIZE
    lat2 = latent.reshape(N, D)

    # pad impulse to resonance size
    imp = jnp.pad(impulse, ((0, 0), (0, 0), (0, R - impulse.shape[-1])))
    imp2 = imp.reshape(N, R)

    # decay envelope at frame rate; interpolation to R fused into the resonance kernel
    d = jax.nn.sigmoid(lat2 @ params['decay_w'] + params['decay_b'])   # (N, n_frames)
    d = BASE_RESONANCE + d * RES_FACTOR
    d_env = jnp.exp(jnp.cumsum(jnp.log(1e-12 + d), axis=-1))           # (N, n_frames)

    # spectral filter per frame
    filt = conv_upsample_apply(params['to_filter'], lat2)              # (N, 257, n_frames)
    filt = jax.nn.sigmoid(jnp.transpose(filt, (0, 2, 1)))              # (N, n_frames, 257)
    # F.interpolate(size=257) from 257 points is the identity.
    filt = filt.reshape(B, E, N_FRAMES, COARSE_COEFFS)

    # tile-invariant piecewise selections: softmax(latent @ W_p + b_p)  (tiny (P,N,A))
    sel_logits = jnp.einsum('nd,pda->pna', lat2, params['sel_w']) + params['sel_b']
    sel = jax.nn.softmax(sel_logits, axis=-1)                          # (P, N, A)

    # piecewise resonances: sel @ atoms * interp(decay)   [Pallas kernel 1]
    res = resonance_synth(sel, d_env, params['atoms'], params['w_interp'])   # (P, N, R)
    convs = fft_convolve(res, imp2[None])                                    # (P, N, R)

    # mixture over piecewise branches (in-kernel interp + softmax)  [Pallas kernel 2]
    mx = conv_upsample_apply(params['to_mixture'], lat2)               # (N, P, n_frames)
    mx = jnp.transpose(mx, (1, 0, 2))                                  # (P, N, n_frames) tiny
    final_convs = piecewise_mixture(mx, params['w_interp'], convs)     # (N, R)

    # windowed spectral shaping (FFT path: plain JAX — no Pallas FFT)
    fc = final_convs.reshape(B, E, R)
    win = unit_norm(windowed_audio(fc, WINDOW, STEP))                  # (B, E, F, 512)
    spec = jnp.fft.rfft(win, axis=-1) * filt                           # (B, E, F, 257)
    win = jnp.fft.irfft(spec, n=WINDOW, axis=-1)
    fc = overlap_add(win)[..., :R].reshape(N, R)

    # final dry/wet mix (weights precomputed; kernel is a pure add)  [Pallas kernel 3]
    mixw = jax.nn.softmax(lat2 @ params['mix_w'] + params['mix_b'], axis=-1)  # (N, 2)
    final = final_dry_wet_mix(mixw[:, 0:1], mixw[:, 1:2], fc, imp2)
    return final.reshape(B, E, R)


# ------------------------------------- main -------------------------------------
if __name__ == "__main__":
    key = jax.random.PRNGKey(0)
    pkey, lkey, ikey = jax.random.split(key, 3)
    params = init_params(pkey)
    latent = jax.random.normal(lkey, (BATCH, N_EVENTS, LATENT_DIM), jnp.float32)
    impulse = jax.random.normal(ikey, (BATCH, N_EVENTS, IMPULSE_LEN), jnp.float32)

    fwd = jax.jit(lambda l, i: resonance_model2_forward(params, l, i))
    out = jax.block_until_ready(fwd(latent, impulse))

    assert out.shape == (BATCH, N_EVENTS, RESONANCE_SIZE), out.shape
    assert bool(jnp.all(jnp.isfinite(out)))
    print("KERNEL_OK")
</pallas_src>

<mosaic_0001>
module attributes {stable_mosaic.version = 11 : i64} {
  func.func @_resonance_kernel(%arg0: i32, %arg1: memref<4x8x16xf32, #tpu.memory_space<vmem>>, %arg2: memref<8x16xf32, #tpu.memory_space<vmem>>, %arg3: memref<16x2048xf32, #tpu.memory_space<vmem>>, %arg4: memref<16x2048xf32, #tpu.memory_space<vmem>>, %arg5: memref<4x8x2048xf32, #tpu.memory_space<vmem>>) attributes {dimension_semantics = [#tpu.dimension_semantics<parallel>], iteration_bounds = array<i64: 2>, scalar_prefetch = 0 : i64, scratch_operands = 0 : i64, tpu.core_type = #tpu.core_type<tc>, window_params = [{pipeline_mode = #tpu.pipeline_mode<synchronous>, transform_indices = @transform_0, window_bounds = array<i64: 4, 8, 16>}, {pipeline_mode = #tpu.pipeline_mode<synchronous>, transform_indices = @transform_1, window_bounds = array<i64: 8, 16>}, {transform_indices = @transform_2, window_bounds = array<i64: 16, 2048>}, {transform_indices = @transform_3, window_bounds = array<i64: 16, 2048>}, {transform_indices = @transform_4, window_bounds = array<i64: 4, 8, 2048>}]} {
    %c0 = arith.constant 0 : index
    %c0_0 = arith.constant 0 : index
    %0 = vector.load %arg2[%c0, %c0_0] : memref<8x16xf32, #tpu.memory_space<vmem>>, vector<8x16xf32>
    %c0_1 = arith.constant 0 : index
    %c0_2 = arith.constant 0 : index
    %1 = vector.load %arg4[%c0_1, %c0_2] : memref<16x2048xf32, #tpu.memory_space<vmem>>, vector<16x2048xf32>
    %cst = arith.constant dense<0.000000e+00> : vector<8x2048xf32>
    %2 = tpu.matmul %0, %1, %cst {dimension_numbers = #tpu.dot_dimension_numbers<[1], [0], [0], [1], [0, 0, 1, 1], [], []>} : vector<8x16xf32>, vector<16x2048xf32>, vector<8x2048xf32> -> vector<8x2048xf32>
    %c0_3 = arith.constant 0 : index
    %c0_4 = arith.constant 0 : index
    %c0_5 = arith.constant 0 : index
    %3 = vector.load %arg1[%c0_3, %c0_4, %c0_5] : memref<4x8x16xf32, #tpu.memory_space<vmem>>, vector<4x8x16xf32>
    %4 = vector.shape_cast %3 : vector<4x8x16xf32> to vector<32x16xf32>
    %c0_6 = arith.constant 0 : index
    %c0_7 = arith.constant 0 : index
    %5 = vector.load %arg3[%c0_6, %c0_7] : memref<16x2048xf32, #tpu.memory_space<vmem>>, vector<16x2048xf32>
    %cst_8 = arith.constant dense<0.000000e+00> : vector<32x2048xf32>
    %6 = tpu.matmul %4, %5, %cst_8 {dimension_numbers = #tpu.dot_dimension_numbers<[1], [0], [0], [1], [0, 0, 1, 1], [], []>} : vector<32x16xf32>, vector<16x2048xf32>, vector<32x2048xf32> -> vector<32x2048xf32>
    %7 = vector.shape_cast %6 : vector<32x2048xf32> to vector<4x8x2048xf32>
    %8 = vector.shape_cast %2 : vector<8x2048xf32> to vector<1x8x2048xf32>
    %9 = vector.broadcast %8 : vector<1x8x2048xf32> to vector<4x8x2048xf32>
    %10 = arith.mulf %7, %9 : vector<4x8x2048xf32>
    %c0_9 = arith.constant 0 : index
    %c0_10 = arith.constant 0 : index
    %c0_11 = arith.constant 0 : index
    %11 = vector.load %arg5[%c0_9, %c0_10, %c0_11] : memref<4x8x2048xf32, #tpu.memory_space<vmem>>, vector<4x8x2048xf32>
    tpu.vector_store %arg5[%c0_9, %c0_10, %c0_11], %10 {strides = array<i32>} : memref<4x8x2048xf32, #tpu.memory_space<vmem>>, vector<4x8x2048xf32>,
    return
  }
  func.func @transform_0(%arg0: i32) -> (i32, i32, i32) {
    %c0_i32 = arith.constant 0 : i32
    %c0_i32_0 = arith.constant 0 : i32
    %c0_i32_1 = arith.constant 0 : i32
    %c0_i32_2 = arith.constant 0 : i32
    return %c0_i32, %c0_i32_0, %c0_i32_1 : i32, i32, i32
  }
  func.func @transform_1(%arg0: i32) -> (i32, i32) {
    %c0_i32 = arith.constant 0 : i32
    %c0_i32_0 = arith.constant 0 : i32
    %c0_i32_1 = arith.constant 0 : i32
    return %c0_i32, %c0_i32_0 : i32, i32
  }
  func.func @transform_2(%arg0: i32) -> (i32, i32) {
    %c0_i32 = arith.constant 0 : i32
    %c0_i32_0 = arith.constant 0 : i32
    return %c0_i32, %arg0 : i32, i32
  }
  func.func @transform_3(%arg0: i32) -> (i32, i32) {
    %c0_i32 = arith.constant 0 : i32
    %c0_i32_0 = arith.constant 0 : i32
    return %c0_i32, %arg0 : i32, i32
  }
  func.func @transform_4(%arg0: i32) -> (i32, i32, i32) {
    %c0_i32 = arith.constant 0 : i32
    %c0_i32_0 = arith.constant 0 : i32
    %c0_i32_1 = arith.constant 0 : i32
    return %c0_i32, %c0_i32_0, %arg0 : i32, i32, i32
  }
}

module attributes {stable_mosaic.version = 11 : i64} {
  func.func @_mixture_kernel(%arg0: i32, %arg1: memref<4x8x16xf32, #tpu.memory_space<vmem>>, %arg2: memref<16x2048xf32, #tpu.memory_space<vmem>>, %arg3: memref<4x8x2048xf32, #tpu.memory_space<vmem>>, %arg4: memref<8x2048xf32, #tpu.memory_space<vmem>>) attributes {dimension_semantics = [#tpu.dimension_semantics<parallel>], iteration_bounds = array<i64: 2>, scalar_prefetch = 0 : i64, scratch_operands = 0 : i64, tpu.core_type = #tpu.core_type<tc>, window_params = [{pipeline_mode = #tpu.pipeline_mode<synchronous>, transform_indices = @transform_0, window_bounds = array<i64: 4, 8, 16>}, {transform_indices = @transform_1, window_bounds = array<i64: 16, 2048>}, {transform_indices = @transform_2, window_bounds = array<i64: 4, 8, 2048>}, {transform_indices = @transform_3, window_bounds = array<i64: 8, 2048>}]} {
    %c0 = arith.constant 0 : index
    %c0_0 = arith.constant 0 : index
    %c0_1 = arith.constant 0 : index
    %0 = vector.load %arg1[%c0, %c0_0, %c0_1] : memref<4x8x16xf32, #tpu.memory_space<vmem>>, vector<4x8x16xf32>
    %1 = vector.shape_cast %0 : vector<4x8x16xf32> to vector<32x16xf32>
    %c0_2 = arith.constant 0 : index
    %c0_3 = arith.constant 0 : index
    %2 = vector.load %arg2[%c0_2, %c0_3] : memref<16x2048xf32, #tpu.memory_space<vmem>>, vector<16x2048xf32>
    %cst = arith.constant dense<0.000000e+00> : vector<32x2048xf32>
    %3 = tpu.matmul %1, %2, %cst {dimension_numbers = #tpu.dot_dimension_numbers<[1], [0], [0], [1], [0, 0, 1, 1], [], []>} : vector<32x16xf32>, vector<16x2048xf32>, vector<32x2048xf32> -> vector<32x2048xf32>
    %4 = vector.shape_cast %3 : vector<32x2048xf32> to vector<4x8x2048xf32>
    %cst_4 = arith.constant dense<0xFF800000> : vector<8x2048xf32>
    %5 = vector.multi_reduction <maximumf>, %4, %cst_4 [0] : vector<4x8x2048xf32> to vector<8x2048xf32>
    %6 = vector.shape_cast %5 : vector<8x2048xf32> to vector<1x8x2048xf32>
    %7 = vector.broadcast %6 : vector<1x8x2048xf32> to vector<4x8x2048xf32>
    %8 = arith.subf %4, %7 : vector<4x8x2048xf32>
    %9 = math.exp %8 : vector<4x8x2048xf32>
    %cst_5 = arith.constant dense<0.000000e+00> : vector<8x2048xf32>
    %10 = vector.multi_reduction <add>, %9, %cst_5 [0] : vector<4x8x2048xf32> to vector<8x2048xf32>
    %c0_6 = arith.constant 0 : index
    %c0_7 = arith.constant 0 : index
    %c0_8 = arith.constant 0 : index
    %11 = vector.load %arg3[%c0_6, %c0_7, %c0_8] : memref<4x8x2048xf32, #tpu.memory_space<vmem>>, vector<4x8x2048xf32>
    %12 = arith.mulf %9, %11 : vector<4x8x2048xf32>
    %cst_9 = arith.constant dense<0.000000e+00> : vector<8x2048xf32>
    %13 = vector.multi_reduction <add>, %12, %cst_9 [0] : vector<4x8x2048xf32> to vector<8x2048xf32>
    %14 = tpu.reciprocal %10 {approx = true} : vector<8x2048xf32> -> vector<8x2048xf32>
    %15 = arith.mulf %13, %14 : vector<8x2048xf32>
    %c0_10 = arith.constant 0 : index
    %c0_11 = arith.constant 0 : index
    %16 = vector.load %arg4[%c0_10, %c0_11] : memref<8x2048xf32, #tpu.memory_space<vmem>>, vector<8x2048xf32>
    tpu.vector_store %arg4[%c0_10, %c0_11], %15 {strides = array<i32>} : memref<8x2048xf32, #tpu.memory_space<vmem>>, vector<8x2048xf32>,
    return
  }
  func.func @transform_0(%arg0: i32) -> (i32, i32, i32) {
    %c0_i32 = arith.constant 0 : i32
    %c0_i32_0 = arith.constant 0 : i32
    %c0_i32_1 = arith.constant 0 : i32
    %c0_i32_2 = arith.constant 0 : i32
    return %c0_i32, %c0_i32_0, %c0_i32_1 : i32, i32, i32
  }
  func.func @transform_1(%arg0: i32) -> (i32, i32) {
    %c0_i32 = arith.constant 0 : i32
    %c0_i32_0 = arith.constant 0 : i32
    return %c0_i32, %arg0 : i32, i32
  }
  func.func @transform_2(%arg0: i32) -> (i32, i32, i32) {
    %c0_i32 = arith.constant 0 : i32
    %c0_i32_0 = arith.constant 0 : i32
    %c0_i32_1 = arith.constant 0 : i32
    return %c0_i32, %c0_i32_0, %arg0 : i32, i32, i32
  }
  func.func @transform_3(%arg0: i32) -> (i32, i32) {
    %c0_i32 = arith.constant 0 : i32
    %c0_i32_0 = arith.constant 0 : i32
    return %c0_i32, %arg0 : i32, i32
  }
}

module attributes {stable_mosaic.version = 11 : i64} {
  func.func @_final_mix_kernel(%arg0: i32, %arg1: memref<8x1xf32, #tpu.memory_space<vmem>>, %arg2: memref<8x1xf32, #tpu.memory_space<vmem>>, %arg3: memref<8x2048xf32, #tpu.memory_space<vmem>>, %arg4: memref<8x2048xf32, #tpu.memory_space<vmem>>, %arg5: memref<8x2048xf32, #tpu.memory_space<vmem>>) attributes {dimension_semantics = [#tpu.dimension_semantics<parallel>], iteration_bounds = array<i64: 2>, scalar_prefetch = 0 : i64, scratch_operands = 0 : i64, tpu.core_type = #tpu.core_type<tc>, window_params = [{pipeline_mode = #tpu.pipeline_mode<synchronous>, transform_indices = @transform_0, window_bounds = array<i64: 8, 1>}, {pipeline_mode = #tpu.pipeline_mode<synchronous>, transform_indices = @transform_1, window_bounds = array<i64: 8, 1>}, {transform_indices = @transform_2, window_bounds = array<i64: 8, 2048>}, {transform_indices = @transform_3, window_bounds = array<i64: 8, 2048>}, {transform_indices = @transform_4, window_bounds = array<i64: 8, 2048>}]} {
    %c0 = arith.constant 0 : index
    %c0_0 = arith.constant 0 : index
    %0 = vector.load %arg3[%c0, %c0_0] : memref<8x2048xf32, #tpu.memory_space<vmem>>, vector<8x2048xf32>
    %c0_1 = arith.constant 0 : index
    %c0_2 = arith.constant 0 : index
    %1 = vector.load %arg1[%c0_1, %c0_2] : memref<8x1xf32, #tpu.memory_space<vmem>>, vector<8x1xf32>
    %2 = vector.broadcast %1 : vector<8x1xf32> to vector<8x2048xf32>
    %3 = arith.mulf %0, %2 : vector<8x2048xf32>
    %c0_3 = arith.constant 0 : index
    %c0_4 = arith.constant 0 : index
    %4 = vector.load %arg4[%c0_3, %c0_4] : memref<8x2048xf32, #tpu.memory_space<vmem>>, vector<8x2048xf32>
    %c0_5 = arith.constant 0 : index
    %c0_6 = arith.constant 0 : index
    %5 = vector.load %arg2[%c0_5, %c0_6] : memref<8x1xf32, #tpu.memory_space<vmem>>, vector<8x1xf32>
    %6 = vector.broadcast %5 : vector<8x1xf32> to vector<8x2048xf32>
    %7 = arith.mulf %4, %6 : vector<8x2048xf32>
    %8 = arith.addf %3, %7 : vector<8x2048xf32>
    %c0_7 = arith.constant 0 : index
    %c0_8 = arith.constant 0 : index
    %9 = vector.load %arg5[%c0_7, %c0_8] : memref<8x2048xf32, #tpu.memory_space<vmem>>, vector<8x2048xf32>
    tpu.vector_store %arg5[%c0_7, %c0_8], %8 {strides = array<i32>} : memref<8x2048xf32, #tpu.memory_space<vmem>>, vector<8x2048xf32>,
    return
  }
  func.func @transform_0(%arg0: i32) -> (i32, i32) {
    %c0_i32 = arith.constant 0 : i32
    %c0_i32_0 = arith.constant 0 : i32
    %c0_i32_1 = arith.constant 0 : i32
    return %c0_i32, %c0_i32_0 : i32, i32
  }
  func.func @transform_1(%arg0: i32) -> (i32, i32) {
    %c0_i32 = arith.constant 0 : i32
    %c0_i32_0 = arith.constant 0 : i32
    %c0_i32_1 = arith.constant 0 : i32
    return %c0_i32, %c0_i32_0 : i32, i32
  }
  func.func @transform_2(%arg0: i32) -> (i32, i32) {
    %c0_i32 = arith.constant 0 : i32
    %c0_i32_0 = arith.constant 0 : i32
    return %c0_i32, %arg0 : i32, i32
  }
  func.func @transform_3(%arg0: i32) -> (i32, i32) {
    %c0_i32 = arith.constant 0 : i32
    %c0_i32_0 = arith.constant 0 : i32
    return %c0_i32, %arg0 : i32, i32
  }
  func.func @transform_4(%arg0: i32) -> (i32, i32) {
    %c0_i32 = arith.constant 0 : i32
    %c0_i32_0 = arith.constant 0 : i32
    return %c0_i32, %arg0 : i32, i32
  }
}

</mosaic_0001>

<llo_original>
// kernel: _lambda_.3
$region0: #{_lambda_.3}
  #allocation0 [shape = 'u32[]', space=smem, size = 0x4, offset = 0x4, fixed_abs, tag = 'smem constant byte address 0x4 - core index']
  #allocation1 [shape = 'u32[72,128]{1,0:T(1,128)}', space=vmem, size = 0x9000, scoped, tag = 'internal scratch']
  %s0 = inlined_call_operand.vmem [shape: f32[4,8,16], index: 0, kind: input, shape index: {}]
  %s1 = inlined_call_operand.vmem [shape: f32[8,16], index: 1, kind: input, shape index: {}]
  %s2 = inlined_call_operand.hbm [shape: f32[16,4096], index: 2, kind: input, shape index: {}]
  %s3 = inlined_call_operand.hbm [shape: f32[16,4096], index: 3, kind: input, shape index: {}]
  %s4 = inlined_call_operand.vmem [shape: f32[4,8,4096], index: 4, kind: output, shape index: {}]
  %s5 = sld [smem:[#allocation0]]
  $region76: #{_lambda_.3} parent=0
    _
  %s7 = ssub.s32 1, %s5
  %s8 = scalar_select 0, %s7, %s5
  $region1: #{_lambda_.3} parent=0
    #allocation2 [shape = 'u8[262144]{0}', space=vmem, size = 0x40000, scoped, tag = 'input window, operand 2']
    #allocation3 [shape = 's32[2]{0}', space=sflag, size = 0x8, scoped, tag = 'scoped memory for _lambda_.3']
    #allocation4 [shape = 'u8[262144]{0}', space=vmem, size = 0x40000, scoped, tag = 'input window, operand 3']
    #allocation5 [shape = 's32[2]{0}', space=sflag, size = 0x8, scoped, tag = 'scoped memory for _lambda_.3']
    #allocation6 [shape = 'u8[524288]{0}', space=vmem, size = 0x80000, scoped, tag = 'output window, operand 0']
    %9 = vsyncpa [#allocation3], 0
    %s10 = scalar_lea.sflag [#allocation3], 1
    %11 = vsyncpa %s10, 0
    %12 = vsyncpa [#allocation5], 0
    %s13 = scalar_lea.sflag [#allocation5], 1
    %14 = vsyncpa %s13, 0
    loop: start=0, step=1, limit=4
    $region2: #{_lambda_.3} parent=1 // loop_pre_header
      _
    $region3: #{_lambda_.3} parent=1 // loop_header
      %s16 = sphi 0, %s20
      %p17 = scmp.ge.s32.totalorder %s16, 4
      %s24 = sphi 0, %s24
      %s26 = sphi 0, %s24
      %s27 = sphi 0, %s26
      %s41 = sphi 0, %s27
      %s45 = sphi 0, %s45
      %s47 = sphi 0, %s45
      %s48 = sphi 0, %s47
      %s62 = sphi 0, %s48
      %s68 = sphi 0, %s70
      %s71 = sphi 0, %s68
      %s72 = sphi 0, %s71
      %s88 = sphi 0, %s72
      %s94 = sphi 0, %s96
      %s97 = sphi 0, %s94
      %s98 = sphi 0, %s97
      %s114 = sphi 0, %s98
      %s120 = sphi 0, %s122
      %s123 = sphi 0, %s120
      %s124 = sphi 0, %s123
      %s140 = sphi 0, %s124
    $region4: #{_lambda_.3} parent=1 // loop_header_branch
      %19 = sbr.rel (%p17) target = $region8
    $region5: #{_lambda_.3} parent=1 // loop_body
      %s21 = ssub.s32 %s16, 1
      %s22 = ssub.s32 %s16, 2
      %s23 = sadd.s32 %s16, 1
      %s25 = sadd.s32 %s24, 1
      %p28 = scmp.eq.s32.totalorder %s16, 1
      %p29 = scmp.ne.s32.totalorder %s24, %s26
      %p30 = scmp.eq.s32.totalorder %s16, 0
      %p31 = por %p29, %p30
      %p32 = scmp.ne.s32.totalorder %s24, %s26
      %p33 = scmp.eq.s32.totalorder %s21, 1
      %p34 = por %p32, %p33
      %p35 = scmp.ne.s32.totalorder %s26, %s27
      %p36 = scmp.eq.s32.totalorder %s21, 0
      %p37 = por %p35, %p36
      %p38 = scmp.ne.s32.totalorder %s26, %s27
      %p39 = scmp.eq.s32.totalorder %s22, 1
      %p40 = por %p38, %p39
      %p42 = scmp.ne.s32.totalorder %s27, %s41
      %p43 = scmp.eq.s32.totalorder %s22, 0
      %p44 = por %p42, %p43
      %s46 = sadd.s32 %s45, 1
      %p49 = scmp.eq.s32.totalorder %s16, 1
      %p50 = scmp.ne.s32.totalorder %s45, %s47
      %p51 = scmp.eq.s32.totalorder %s16, 0
      %p52 = por %p50, %p51
      %p53 = scmp.ne.s32.totalorder %s45, %s47
      %p54 = scmp.eq.s32.totalorder %s21, 1
      %p55 = por %p53, %p54
      %p56 = scmp.ne.s32.totalorder %s47, %s48
      %p57 = scmp.eq.s32.totalorder %s21, 0
      %p58 = por %p56, %p57
      %p59 = scmp.ne.s32.totalorder %s47, %s48
      %p60 = scmp.eq.s32.totalorder %s22, 1
      %p61 = por %p59, %p60
      %p63 = scmp.ne.s32.totalorder %s48, %s62
      %p64 = scmp.eq.s32.totalorder %s22, 0
      %p65 = por %p63, %p64
      %s66 = ssub.s32 %s16, %s23
      %p67 = scmp.eq.s32.totalorder %s66, 0
      %s69 = sadd.s32 %s68, 1
      %s70 = scalar_select %p67, %s68, %s69
      %p73 = pneg %p67
      %p74 = scmp.eq.s32.totalorder %s16, 1
      %p75 = por %p73, %p74
      %p76 = scmp.ne.s32.totalorder %s68, %s71
      %p77 = scmp.eq.s32.totalorder %s16, 0
      %p78 = por %p76, %p77
      %p79 = scmp.ne.s32.totalorder %s68, %s71
      %p80 = scmp.eq.s32.totalorder %s21, 1
      %p81 = por %p79, %p80
      %p82 = scmp.ne.s32.totalorder %s71, %s72
      %p83 = scmp.eq.s32.totalorder %s21, 0
      %p84 = por %p82, %p83
      %p85 = scmp.ne.s32.totalorder %s71, %s72
      %p86 = scmp.eq.s32.totalorder %s22, 1
      %p87 = por %p85, %p86
      %p89 = scmp.ne.s32.totalorder %s72, %s88
      %p90 = scmp.eq.s32.totalorder %s22, 0
      %p91 = por %p89, %p90
      %s92 = ssub.s32 %s16, %s23
      %p93 = scmp.eq.s32.totalorder %s92, 0
      %s95 = sadd.s32 %s94, 1
      %s96 = scalar_select %p93, %s94, %s95
      %p99 = pneg %p93
      %p100 = scmp.eq.s32.totalorder %s16, 1
      %p101 = por %p99, %p100
      %p102 = scmp.ne.s32.totalorder %s94, %s97
      %p103 = scmp.eq.s32.totalorder %s16, 0
      %p104 = por %p102, %p103
      %p105 = scmp.ne.s32.totalorder %s94, %s97
      %p106 = scmp.eq.s32.totalorder %s21, 1
      %p107 = por %p105, %p106
      %p108 = scmp.ne.s32.totalorder %s97, %s98
      %p109 = scmp.eq.s32.totalorder %s21, 0
      %p110 = por %p108, %p109
      %p111 = scmp.ne.s32.totalorder %s97, %s98
      %p112 = scmp.eq.s32.totalorder %s22, 1
      %p113 = por %p111, %p112
      %p115 = scmp.ne.s32.totalorder %s98, %s114
      %p116 = scmp.eq.s32.totalorder %s22, 0
      %p117 = por %p115, %p116
      %s118 = ssub.s32 %s16, %s23
      %p119 = scmp.eq.s32.totalorder %s118, 0
      %s121 = sadd.s32 %s120, 1
      %s122 = scalar_select %p119, %s120, %s121
      %p125 = pneg %p119
      %p126 = scmp.eq.s32.totalorder %s16, 1
      %p127 = por %p125, %p126
      %p128 = scmp.ne.s32.totalorder %s120, %s123
      %p129 = scmp.eq.s32.totalorder %s16, 0
      %p130 = por %p128, %p129
      %p131 = scmp.ne.s32.totalorder %s120, %s123
      %p132 = scmp.eq.s32.totalorder %s21, 1
      %p133 = por %p131, %p132
      %p134 = scmp.ne.s32.totalorder %s123, %s124
      %p135 = scmp.eq.s32.totalorder %s21, 0
      %p136 = por %p134, %p135
      %p137 = scmp.ne.s32.totalorder %s123, %s124
      %p138 = scmp.eq.s32.totalorder %s22, 1
      %p139 = por %p137, %p138
      %p141 = scmp.ne.s32.totalorder %s124, %s140
      %p142 = scmp.eq.s32.totalorder %s22, 0
      %p143 = por %p141, %p142
      %p144 = scmp.le.s32.totalorder 1, %s16
      %p145 = scmp.lt.s32.totalorder %s16, 3
      %p146 = pnand %p144, %p145
      %p147 = pneg %p146
      // Predicated region
      $region9: #{_lambda_.3} parent=5 // pred_check
        _
      $region10: #{_lambda_.3} parent=5 // pred_check_branch
        %149 = sbr.rel (%p146) target = $region12
      $region11: #{_lambda_.3} parent=5 // pred_region
        %s150 = ssub.s32 %s16, 1
        // Predicated region
        $region13: #{_lambda_.3} parent=11 // pred_check
          %p151 = pneg %p37
        $region14: #{_lambda_.3} parent=11 // pred_check_branch
          %153 = sbr.rel (%p151) target = $region16
        $region15: #{_lambda_.3} parent=11 // pred_region
          _
        $region16: #{_lambda_.3} parent=11 // pred_fallthru
          _
        // Predicated region
        $region17: #{_lambda_.3} parent=11 // pred_check
          %p154 = pneg %p58
        $region18: #{_lambda_.3} parent=11 // pred_check_branch
          %156 = sbr.rel (%p154) target = $region20
        $region19: #{_lambda_.3} parent=11 // pred_region
          _
        $region20: #{_lambda_.3} parent=11 // pred_fallthru
          _
      $region12: #{_lambda_.3} parent=5 // pred_fallthru
        _
      %p157 = scmp.lt.s32.totalorder %s16, 2
      // Predicated region
      $region21: #{_lambda_.3} parent=5 // pred_check
        %p158 = pneg %p157
      $region22: #{_lambda_.3} parent=5 // pred_check_branch
        %160 = sbr.rel (%p158) target = $region24
      $region23: #{_lambda_.3} parent=5 // pred_region
        // Predicated region
        $region25: #{_lambda_.3} parent=23 // pred_check
          %p161 = pneg %p78
        $region26: #{_lambda_.3} parent=23 // pred_check_branch
          %163 = sbr.rel (%p161) target = $region28
        $region27: #{_lambda_.3} parent=23 // pred_region
          %s164 = sand.u32 %s68, 1
          %s165 = scalar_lea.sflag [#allocation3], %s164
          %s166 = sand.u32 %s68, 1
          %s167 = smul.addr %s166, 256
          %s168 = scalar_lea.vmem [#allocation2], %s167
          %s169 = smul.u32 16, %s16
          %171 = vsyncadd %s165, 0
          %s172 = smul.addr %s169, 8
          %s173 = scalar_lea.hbm %s2, %s172
          %s174 = sshll.u32 %s173, 4
          %s175 = int_to_ptr.hbm [resolvable:$true] %s174
          %s176 = sshll.u32 %s168, 4
          %s177 = int_to_ptr.vmem [resolvable:$true] %s176
          %182 = dma.hbm_to_vmem [thread:$0]  %s175, 4096, %s177, %s165, 4096, 2048, 128
        $region28: #{_lambda_.3} parent=23 // pred_fallthru
          _
        // Predicated region
        $region29: #{_lambda_.3} parent=23 // pred_check
          %p183 = pneg %p104
        $region30: #{_lambda_.3} parent=23 // pred_check_branch
          %185 = sbr.rel (%p183) target = $region32
        $region31: #{_lambda_.3} parent=23 // pred_region
          %s186 = sand.u32 %s94, 1
          %s187 = scalar_lea.sflag [#allocation5], %s186
          %s188 = sand.u32 %s94, 1
          %s189 = smul.addr %s188, 256
          %s190 = scalar_lea.vmem [#allocation4], %s189
          %s191 = smul.u32 16, %s16
          %193 = vsyncadd %s187, 0
          %s194 = smul.addr %s191, 8
          %s195 = scalar_lea.hbm %s3, %s194
          %s196 = sshll.u32 %s195, 4
          %s197 = int_to_ptr.hbm [resolvable:$true] %s196
          %s198 = sshll.u32 %s190, 4
          %s199 = int_to_ptr.vmem [resolvable:$true] %s198
          %204 = dma.hbm_to_vmem [thread:$0]  %s197, 4096, %s199, %s187, 4096, 2048, 128
        $region32: #{_lambda_.3} parent=23 // pred_fallthru
          _
      $region24: #{_lambda_.3} parent=5 // pred_fallthru
        _
      %p205 = scmp.le.s32.totalorder 1, %s16
      %p206 = scmp.lt.s32.totalorder %s16, 3
      %p207 = pnand %p205, %p206
      %p208 = pneg %p207
      // Predicated region
      $region33: #{_lambda_.3} parent=5 // pred_check
        _
      $region34: #{_lambda_.3} parent=5 // pred_check_branch
        %210 = sbr.rel (%p207) target = $region36
      $region35: #{_lambda_.3} parent=5 // pred_region
        %s211 = ssub.s32 %s16, 1
        %s212 = sand.u32 %s71, 1
        %s213 = scalar_lea.sflag [#allocation3], %s212
        %s214 = sand.u32 %s71, 1
        %s215 = smul.addr %s214, 256
        %s216 = scalar_lea.vmem [#allocation2], %s215
        // Predicated region
        $region37: #{_lambda_.3} parent=35 // pred_check
          %p217 = pneg %p84
        $region38: #{_lambda_.3} parent=35 // pred_check_branch
          %219 = sbr.rel (%p217) target = $region40
        $region39: #{_lambda_.3} parent=35 // pred_region
          %221 = dma.done %s213, 4096
        $region40: #{_lambda_.3} parent=35 // pred_fallthru
          _
        %s222 = sand.u32 %s97, 1
        %s223 = scalar_lea.sflag [#allocation5], %s222
        %s224 = sand.u32 %s97, 1
        %s225 = smul.addr %s224, 256
        %s226 = scalar_lea.vmem [#allocation4], %s225
        // Predicated region
        $region41: #{_lambda_.3} parent=35 // pred_check
          %p227 = pneg %p110
        $region42: #{_lambda_.3} parent=35 // pred_check_branch
          %229 = sbr.rel (%p227) target = $region44
        $region43: #{_lambda_.3} parent=35 // pred_region
          %231 = dma.done %s223, 4096
        $region44: #{_lambda_.3} parent=35 // pred_fallthru
          _
        %p232 = pneg %p37
        %p233 = pneg %p34
        %p234 = pneg %p58
        %p235 = pneg %p55
        %s236 = sand.u32 %s71, 1
        %s237 = scalar_lea.sflag [#allocation3], %s236
        %s238 = sand.u32 %s71, 1
        %s239 = smul.addr %s238, 256
        %s240 = scalar_lea.vmem [#allocation2], %s239
        %p241 = pneg %p84
        %p242 = pneg %p81
        %s243 = sand.u32 %s97, 1
        %s244 = scalar_lea.sflag [#allocation5], %s243
        %s245 = sand.u32 %s97, 1
        %s246 = smul.addr %s245, 256
        %s247 = scalar_lea.vmem [#allocation4], %s246
        %p248 = pneg %p110
        %p249 = pneg %p107
        %p250 = pneg %p136
        %p251 = pneg %p133
        %s252 = sand.u32 %s123, 1
        %s253 = sand.u32 %s123, 1
        %s254 = smul.addr %s253, 512
        %s255 = scalar_lea.vmem [#allocation6], %s254
        %s256 = smul.u32 16, %s21
        %s257 = smul.u32 16, %s21
        %s258 = smul.u32 16, %s21
        %v259 = vld [vmem:[%s1] sm:$0xff]
        %v260 = vld [vmem:[%s226] sm:$0xff]
        %v261 = vld [vmem:[%s226 + $0x8] sm:$0xff]
        %v262 = vld [vmem:[%s226 + $0x10] sm:$0xff]
        %v263 = vld [vmem:[%s226 + $0x18] sm:$0xff]
        %v264 = vld [vmem:[%s226 + $0x20] sm:$0xff]
        %v265 = vld [vmem:[%s226 + $0x28] sm:$0xff]
        %v266 = vld [vmem:[%s226 + $0x30] sm:$0xff]
        %v267 = vld [vmem:[%s226 + $0x38] sm:$0xff]
        %v268 = vld [vmem:[%s226 + $0x40] sm:$0xff]
        %v269 = vld [vmem:[%s226 + $0x48] sm:$0xff]
        %v270 = vld [vmem:[%s226 + $0x50] sm:$0xff]
        %v271 = vld [vmem:[%s226 + $0x58] sm:$0xff]
        %v272 = vld [vmem:[%s226 + $0x60] sm:$0xff]
        %v273 = vld [vmem:[%s226 + $0x68] sm:$0xff]
        %v274 = vld [vmem:[%s226 + $0x70] sm:$0xff]
        %v275 = vld [vmem:[%s226 + $0x78] sm:$0xff]
        %v276 = vld [vmem:[%s226 + $0x80] sm:$0xff]
        %v277 = vld [vmem:[%s226 + $0x88] sm:$0xff]
        %v278 = vld [vmem:[%s226 + $0x90] sm:$0xff]
        %v279 = vld [vmem:[%s226 + $0x98] sm:$0xff]
        %v280 = vld [vmem:[%s226 + $0xa0] sm:$0xff]
        %v281 = vld [vmem:[%s226 + $0xa8] sm:$0xff]
        %v282 = vld [vmem:[%s226 + $0xb0] sm:$0xff]
        %v283 = vld [vmem:[%s226 + $0xb8] sm:$0xff]
        %v284 = vld [vmem:[%s226 + $0xc0] sm:$0xff]
        %v285 = vld [vmem:[%s226 + $0xc8] sm:$0xff]
        %v286 = vld [vmem:[%s226 + $0xd0] sm:$0xff]
        %v287 = vld [vmem:[%s226 + $0xd8] sm:$0xff]
        %v288 = vld [vmem:[%s226 + $0xe0] sm:$0xff]
        %v289 = vld [vmem:[%s226 + $0xe8] sm:$0xff]
        %v290 = vld [vmem:[%s226 + $0xf0] sm:$0xff]
        %v291 = vld [vmem:[%s226 + $0xf8] sm:$0xff]
        %vm292 = vcmask 130048
        %v294 = vsel %vm292, %v259, 0
        %296 = vmatpush.msra.mxu0 0.0
        %297 = vmatpush.msra.mxu0 0.0
        %298 = vmatpush.msra.mxu0 0.0
        %299 = vmatpush.msra.mxu0 0.0
        %300 = vmatpush.msra.mxu0 0.0
        %301 = vmatpush.msra.mxu0 0.0
        %302 = vmatpush.msra.mxu0 0.0
        %303 = vmatpush.msra.mxu0 0.0
        %304 = vmatpush.msra.mxu0 0.0
        %305 = vmatpush.msra.mxu0 0.0
        %306 = vmatpush.msra.mxu0 0.0
        %307 = vmatpush.msra.mxu0 0.0
        %308 = vmatpush.msra.mxu0 0.0
        %309 = vmatpush.msra.mxu0 0.0
        %310 = vmatpush.msra.mxu0 %v276
        %311 = vmatpush.msra.mxu0 %v260
        %312 = vmatmul.f32.gmra.mxu0 %v294
        %v313 = vpop.f32.mrf.mxu0
        %v314 = vadd.f32 0.0, %v313
        %315 = vdwg.mxu0
        %316 = vmatpush.msra.mxu0 0.0
        %317 = vmatpush.msra.mxu0 0.0
        %318 = vmatpush.msra.mxu0 0.0
        %319 = vmatpush.msra.mxu0 0.0
        %320 = vmatpush.msra.mxu0 0.0
        %321 = vmatpush.msra.mxu0 0.0
        %322 = vmatpush.msra.mxu0 0.0
        %323 = vmatpush.msra.mxu0 0.0
        %324 = vmatpush.msra.mxu0 0.0
        %325 = vmatpush.msra.mxu0 0.0
        %326 = vmatpush.msra.mxu0 0.0
        %327 = vmatpush.msra.mxu0 0.0
        %328 = vmatpush.msra.mxu0 0.0
        %329 = vmatpush.msra.mxu0 0.0
        %330 = vmatpush.msra.mxu0 %v277
        %331 = vmatpush.msra.mxu0 %v261
        %332 = vmatmul.f32.gmra.mxu0 %v294
        %v333 = vpop.f32.mrf.mxu0
        %v334 = vadd.f32 0.0, %v333
        %335 = vdwg.mxu0
        %336 = vmatpush.msra.mxu0 0.0
        %337 = vmatpush.msra.mxu0 0.0
        %338 = vmatpush.msra.mxu0 0.0
        %339 = vmatpush.msra.mxu0 0.0
        %340 = vmatpush.msra.mxu0 0.0
        %341 = vmatpush.msra.mxu0 0.0
        %342 = vmatpush.msra.mxu0 0.0
        %343 = vmatpush.msra.mxu0 0.0
        %344 = vmatpush.msra.mxu0 0.0
        %345 = vmatpush.msra.mxu0 0.0
        %346 = vmatpush.msra.mxu0 0.0
        %347 = vmatpush.msra.mxu0 0.0
        %348 = vmatpush.msra.mxu0 0.0
        %349 = vmatpush.msra.mxu0 0.0
        %350 = vmatpush.msra.mxu0 %v278
        %351 = vmatpush.msra.mxu0 %v262
        %352 = vmatmul.f32.gmra.mxu0 %v294
        %v353 = vpop.f32.mrf.mxu0
        %v354 = vadd.f32 0.0, %v353
        %355 = vdwg.mxu0
        %356 = vmatpush.msra.mxu0 0.0
        %357 = vmatpush.msra.mxu0 0.0
        %358 = vmatpush.msra.mxu0 0.0
        %359 = vmatpush.msra.mxu0 0.0
        %360 = vmatpush.msra.mxu0 0.0
        %361 = vmatpush.msra.mxu0 0.0
        %362 = vmatpush.msra.mxu0 0.0
        %363 = vmatpush.msra.mxu0 0.0
        %364 = vmatpush.msra.mxu0 0.0
        %365 = vmatpush.msra.mxu0 0.0
        %366 = vmatpush.msra.mxu0 0.0
        %367 = vmatpush.msra.mxu0 0.0
        %368 = vmatpush.msra.mxu0 0.0
        %369 = vmatpush.msra.mxu0 0.0
        %370 = vmatpush.msra.mxu0 %v279
        %371 = vmatpush.msra.mxu0 %v263
        %372 = vmatmul.f32.gmra.mxu0 %v294
        %v373 = vpop.f32.mrf.mxu0
        %v374 = vadd.f32 0.0, %v373
        %375 = vdwg.mxu0
        %376 = vmatpush.msra.mxu0 0.0
        %377 = vmatpush.msra.mxu0 0.0
        %378 = vmatpush.msra.mxu0 0.0
        %379 = vmatpush.msra.mxu0 0.0
        %380 = vmatpush.msra.mxu0 0.0
        %381 = vmatpush.msra.mxu0 0.0
        %382 = vmatpush.msra.mxu0 0.0
        %383 = vmatpush.msra.mxu0 0.0
        %384 = vmatpush.msra.mxu0 0.0
        %385 = vmatpush.msra.mxu0 0.0
        %386 = vmatpush.msra.mxu0 0.0
        %387 = vmatpush.msra.mxu0 0.0
        %388 = vmatpush.msra.mxu0 0.0
        %389 = vmatpush.msra.mxu0 0.0
        %390 = vmatpush.msra.mxu0 %v280
        %391 = vmatpush.msra.mxu0 %v264
        %392 = vmatmul.f32.gmra.mxu0 %v294
        %v393 = vpop.f32.mrf.mxu0
        %v394 = vadd.f32 0.0, %v393
        %395 = vdwg.mxu0
        %396 = vmatpush.msra.mxu0 0.0
        %397 = vmatpush.msra.mxu0 0.0
        %398 = vmatpush.msra.mxu0 0.0
        %399 = vmatpush.msra.mxu0 0.0
        %400 = vmatpush.msra.mxu0 0.0
        %401 = vmatpush.msra.mxu0 0.0
        %402 = vmatpush.msra.mxu0 0.0
        %403 = vmatpush.msra.mxu0 0.0
        %404 = vmatpush.msra.mxu0 0.0
        %405 = vmatpush.msra.mxu0 0.0
        %406 = vmatpush.msra.mxu0 0.0
        %407 = vmatpush.msra.mxu0 0.0
        %408 = vmatpush.msra.mxu0 0.0
        %409 = vmatpush.msra.mxu0 0.0
        %410 = vmatpush.msra.mxu0 %v281
        %411 = vmatpush.msra.mxu0 %v265
        %412 = vmatmul.f32.gmra.mxu0 %v294
        %v413 = vpop.f32.mrf.mxu0
        %v414 = vadd.f32 0.0, %v413
        %415 = vdwg.mxu0
        %416 = vmatpush.msra.mxu0 0.0
        %417 = vmatpush.msra.mxu0 0.0
        %418 = vmatpush.msra.mxu0 0.0
        %419 = vmatpush.msra.mxu0 0.0
        %420 = vmatpush.msra.mxu0 0.0
        %421 = vmatpush.msra.mxu0 0.0
        %422 = vmatpush.msra.mxu0 0.0
        %423 = vmatpush.msra.mxu0 0.0
        %424 = vmatpush.msra.mxu0 0.0
        %425 = vmatpush.msra.mxu0 0.0
        %426 = vmatpush.msra.mxu0 0.0
        %427 = vmatpush.msra.mxu0 0.0
        %428 = vmatpush.msra.mxu0 0.0
        %429 = vmatpush.msra.mxu0 0.0
        %430 = vmatpush.msra.mxu0 %v282
        %431 = vmatpush.msra.mxu0 %v266
        %432 = vmatmul.f32.gmra.mxu0 %v294
        %v433 = vpop.f32.mrf.mxu0
        %v434 = vadd.f32 0.0, %v433
        %435 = vdwg.mxu0
        %436 = vmatpush.msra.mxu0 0.0
        %437 = vmatpush.msra.mxu0 0.0
        %438 = vmatpush.msra.mxu0 0.0
        %439 = vmatpush.msra.mxu0 0.0
        %440 = vmatpush.msra.mxu0 0.0
        %441 = vmatpush.msra.mxu0 0.0
        %442 = vmatpush.msra.mxu0 0.0
        %443 = vmatpush.msra.mxu0 0.0
        %444 = vmatpush.msra.mxu0 0.0
        %445 = vmatpush.msra.mxu0 0.0
        %446 = vmatpush.msra.mxu0 0.0
        %447 = vmatpush.msra.mxu0 0.0
        %448 = vmatpush.msra.mxu0 0.0
        %449 = vmatpush.msra.mxu0 0.0
        %450 = vmatpush.msra.mxu0 %v283
        %451 = vmatpush.msra.mxu0 %v267
        %452 = vmatmul.f32.gmra.mxu0 %v294
        %v453 = vpop.f32.mrf.mxu0
        %v454 = vadd.f32 0.0, %v453
        %455 = vdwg.mxu0
        %456 = vmatpush.msra.mxu0 0.0
        %457 = vmatpush.msra.mxu0 0.0
        %458 = vmatpush.msra.mxu0 0.0
        %459 = vmatpush.msra.mxu0 0.0
        %460 = vmatpush.msra.mxu0 0.0
        %461 = vmatpush.msra.mxu0 0.0
        %462 = vmatpush.msra.mxu0 0.0
        %463 = vmatpush.msra.mxu0 0.0
        %464 = vmatpush.msra.mxu0 0.0
        %465 = vmatpush.msra.mxu0 0.0
        %466 = vmatpush.msra.mxu0 0.0
        %467 = vmatpush.msra.mxu0 0.0
        %468 = vmatpush.msra.mxu0 0.0
        %469 = vmatpush.msra.mxu0 0.0
        %470 = vmatpush.msra.mxu0 %v284
        %471 = vmatpush.msra.mxu0 %v268
        %472 = vmatmul.f32.gmra.mxu0 %v294
        %v473 = vpop.f32.mrf.mxu0
        %v474 = vadd.f32 0.0, %v473
        %475 = vdwg.mxu0
        %476 = vmatpush.msra.mxu0 0.0
        %477 = vmatpush.msra.mxu0 0.0
        %478 = vmatpush.msra.mxu0 0.0
        %479 = vmatpush.msra.mxu0 0.0
        %480 = vmatpush.msra.mxu0 0.0
        %481 = vmatpush.msra.mxu0 0.0
        %482 = vmatpush.msra.mxu0 0.0
        %483 = vmatpush.msra.mxu0 0.0
        %484 = vmatpush.msra.mxu0 0.0
        %485 = vmatpush.msra.mxu0 0.0
        %486 = vmatpush.msra.mxu0 0.0
        %487 = vmatpush.msra.mxu0 0.0
        %488 = vmatpush.msra.mxu0 0.0
        %489 = vmatpush.msra.mxu0 0.0
        %490 = vmatpush.msra.mxu0 %v285
        %491 = vmatpush.msra.mxu0 %v269
        %492 = vmatmul.f32.gmra.mxu0 %v294
        %v493 = vpop.f32.mrf.mxu0
        %v494 = vadd.f32 0.0, %v493
        %495 = vdwg.mxu0
        %496 = vmatpush.msra.mxu0 0.0
        %497 = vmatpush.msra.mxu0 0.0
        %498 = vmatpush.msra.mxu0 0.0
        %499 = vmatpush.msra.mxu0 0.0
        %500 = vmatpush.msra.mxu0 0.0
        %501 = vmatpush.msra.mxu0 0.0
        %502 = vmatpush.msra.mxu0 0.0
        %503 = vmatpush.msra.mxu0 0.0
        %504 = vmatpush.msra.mxu0 0.0
        %505 = vmatpush.msra.mxu0 0.0
        %506 = vmatpush.msra.mxu0 0.0
        %507 = vmatpush.msra.mxu0 0.0
        %508 = vmatpush.msra.mxu0 0.0
        %509 = vmatpush.msra.mxu0 0.0
        %510 = vmatpush.msra.mxu0 %v286
        %511 = vmatpush.msra.mxu0 %v270
        %512 = vmatmul.f32.gmra.mxu0 %v294
        %v513 = vpop.f32.mrf.mxu0
        %v514 = vadd.f32 0.0, %v513
        %515 = vdwg.mxu0
        %516 = vmatpush.msra.mxu0 0.0
        %517 = vmatpush.msra.mxu0 0.0
        %518 = vmatpush.msra.mxu0 0.0
        %519 = vmatpush.msra.mxu0 0.0
        %520 = vmatpush.msra.mxu0 0.0
        %521 = vmatpush.msra.mxu0 0.0
        %522 = vmatpush.msra.mxu0 0.0
        %523 = vmatpush.msra.mxu0 0.0
        %524 = vmatpush.msra.mxu0 0.0
        %525 = vmatpush.msra.mxu0 0.0
        %526 = vmatpush.msra.mxu0 0.0
        %527 = vmatpush.msra.mxu0 0.0
        %528 = vmatpush.msra.mxu0 0.0
        %529 = vmatpush.msra.mxu0 0.0
        %530 = vmatpush.msra.mxu0 %v287
        %531 = vmatpush.msra.mxu0 %v271
        %532 = vmatmul.f32.gmra.mxu0 %v294
        %v533 = vpop.f32.mrf.mxu0
        %v534 = vadd.f32 0.0, %v533
        %535 = vdwg.mxu0
        %536 = vmatpush.msra.mxu0 0.0
        %537 = vmatpush.msra.mxu0 0.0
        %538 = vmatpush.msra.mxu0 0.0
        %539 = vmatpush.msra.mxu0 0.0
        %540 = vmatpush.msra.mxu0 0.0
        %541 = vmatpush.msra.mxu0 0.0
        %542 = vmatpush.msra.mxu0 0.0
        %543 = vmatpush.msra.mxu0 0.0
        %544 = vmatpush.msra.mxu0 0.0
        %545 = vmatpush.msra.mxu0 0.0
        %546 = vmatpush.msra.mxu0 0.0
        %547 = vmatpush.msra.mxu0 0.0
        %548 = vmatpush.msra.mxu0 0.0
        %549 = vmatpush.msra.mxu0 0.0
        %550 = vmatpush.msra.mxu0 %v288
        %551 = vmatpush.msra.mxu0 %v272
        %552 = vmatmul.f32.gmra.mxu0 %v294
        %v553 = vpop.f32.mrf.mxu0
        %v554 = vadd.f32 0.0, %v553
        %555 = vdwg.mxu0
        %556 = vmatpush.msra.mxu0 0.0
        %557 = vmatpush.msra.mxu0 0.0
        %558 = vmatpush.msra.mxu0 0.0
        %559 = vmatpush.msra.mxu0 0.0
        %560 = vmatpush.msra.mxu0 0.0
        %561 = vmatpush.msra.mxu0 0.0
        %562 = vmatpush.msra.mxu0 0.0
        %563 = vmatpush.msra.mxu0 0.0
        %564 = vmatpush.msra.mxu0 0.0
        %565 = vmatpush.msra.mxu0 0.0
        %566 = vmatpush.msra.mxu0 0.0
        %567 = vmatpush.msra.mxu0 0.0
        %568 = vmatpush.msra.mxu0 0.0
        %569 = vmatpush.msra.mxu0 0.0
        %570 = vmatpush.msra.mxu0 %v289
        %571 = vmatpush.msra.mxu0 %v273
        %572 = vmatmul.f32.gmra.mxu0 %v294
        %v573 = vpop.f32.mrf.mxu0
        %v574 = vadd.f32 0.0, %v573
        %575 = vdwg.mxu0
        %576 = vmatpush.msra.mxu0 0.0
        %577 = vmatpush.msra.mxu0 0.0
        %578 = vmatpush.msra.mxu0 0.0
        %579 = vmatpush.msra.mxu0 0.0
        %580 = vmatpush.msra.mxu0 0.0
        %581 = vmatpush.msra.mxu0 0.0
        %582 = vmatpush.msra.mxu0 0.0
        %583 = vmatpush.msra.mxu0 0.0
        %584 = vmatpush.msra.mxu0 0.0
        %585 = vmatpush.msra.mxu0 0.0
        %586 = vmatpush.msra.mxu0 0.0
        %587 = vmatpush.msra.mxu0 0.0
        %588 = vmatpush.msra.mxu0 0.0
        %589 = vmatpush.msra.mxu0 0.0
        %590 = vmatpush.msra.mxu0 %v290
        %591 = vmatpush.msra.mxu0 %v274
        %592 = vmatmul.f32.gmra.mxu0 %v294
        %v593 = vpop.f32.mrf.mxu0
        %v594 = vadd.f32 0.0, %v593
        %595 = vdwg.mxu0
        %596 = vmatpush.msra.mxu0 0.0
        %597 = vmatpush.msra.mxu0 0.0
        %598 = vmatpush.msra.mxu0 0.0
        %599 = vmatpush.msra.mxu0 0.0
        %600 = vmatpush.msra.mxu0 0.0
        %601 = vmatpush.msra.mxu0 0.0
        %602 = vmatpush.msra.mxu0 0.0
        %603 = vmatpush.msra.mxu0 0.0
        %604 = vmatpush.msra.mxu0 0.0
        %605 = vmatpush.msra.mxu0 0.0
        %606 = vmatpush.msra.mxu0 0.0
        %607 = vmatpush.msra.mxu0 0.0
        %608 = vmatpush.msra.mxu0 0.0
        %609 = vmatpush.msra.mxu0 0.0
        %610 = vmatpush.msra.mxu0 %v291
        %611 = vmatpush.msra.mxu0 %v275
        %612 = vmatmul.f32.gmra.mxu0 %v294
        %v613 = vpop.f32.mrf.mxu0
        %v614 = vadd.f32 0.0, %v613
        %615 = vdwg.mxu0
        %v616 = vld [vmem:[%s0] sm:$0xff]
        %v617 = vld [vmem:[%s0 + $0x8] sm:$0xff]
        %v618 = vld [vmem:[%s0 + $0x10] sm:$0xff]
        %v619 = vld [vmem:[%s0 + $0x18] sm:$0xff]
        %v620 = vld [vmem:[%s216] sm:$0xff]
        %v621 = vld [vmem:[%s216 + $0x8] sm:$0xff]
        %v622 = vld [vmem:[%s216 + $0x10] sm:$0xff]
        %v623 = vld [vmem:[%s216 + $0x18] sm:$0xff]
        %v624 = vld [vmem:[%s216 + $0x20] sm:$0xff]
        %v625 = vld [vmem:[%s216 + $0x28] sm:$0xff]
        %v626 = vld [vmem:[%s216 + $0x30] sm:$0xff]
        %v627 = vld [vmem:[%s216 + $0x38] sm:$0xff]
        %v628 = vld [vmem:[%s216 + $0x40] sm:$0xff]
        %v629 = vld [vmem:[%s216 + $0x48] sm:$0xff]
        %v630 = vld [vmem:[%s216 + $0x50] sm:$0xff]
        %v631 = vld [vmem:[%s216 + $0x58] sm:$0xff]
        %v632 = vld [vmem:[%s216 + $0x60] sm:$0xff]
        %v633 = vld [vmem:[%s216 + $0x68] sm:$0xff]
        %v634 = vld [vmem:[%s216 + $0x70] sm:$0xff]
        %v635 = vld [vmem:[%s216 + $0x78] sm:$0xff]
        %v636 = vld [vmem:[%s216 + $0x80] sm:$0xff]
        %v637 = vld [vmem:[%s216 + $0x88] sm:$0xff]
        %v638 = vld [vmem:[%s216 + $0x90] sm:$0xff]
        %v639 = vld [vmem:[%s216 + $0x98] sm:$0xff]
        %v640 = vld [vmem:[%s216 + $0xa0] sm:$0xff]
        %v641 = vld [vmem:[%s216 + $0xa8] sm:$0xff]
        %v642 = vld [vmem:[%s216 + $0xb0] sm:$0xff]
        %v643 = vld [vmem:[%s216 + $0xb8] sm:$0xff]
        %v644 = vld [vmem:[%s216 + $0xc0] sm:$0xff]
        %v645 = vld [vmem:[%s216 + $0xc8] sm:$0xff]
        %v646 = vld [vmem:[%s216 + $0xd0] sm:$0xff]
        %v647 = vld [vmem:[%s216 + $0xd8] sm:$0xff]
        %v648 = vld [vmem:[%s216 + $0xe0] sm:$0xff]
        %v649 = vld [vmem:[%s216 + $0xe8] sm:$0xff]
        %v650 = vld [vmem:[%s216 + $0xf0] sm:$0xff]
        %v651 = vld [vmem:[%s216 + $0xf8] sm:$0xff]
        %v653 = vsel %vm292, %v616, 0
        %v656 = vsel %vm292, %v617, 0
        %v659 = vsel %vm292, %v618, 0
        %v662 = vsel %vm292, %v619, 0
        %664 = vmatpush.msra.mxu0 0.0
        %665 = vmatpush.msra.mxu0 0.0
        %666 = vmatpush.msra.mxu0 0.0
        %667 = vmatpush.msra.mxu0 0.0
        %668 = vmatpush.msra.mxu0 0.0
        %669 = vmatpush.msra.mxu0 0.0
        %670 = vmatpush.msra.mxu0 0.0
        %671 = vmatpush.msra.mxu0 0.0
        %672 = vmatpush.msra.mxu0 0.0
        %673 = vmatpush.msra.mxu0 0.0
        %674 = vmatpush.msra.mxu0 0.0
        %675 = vmatpush.msra.mxu0 0.0
        %676 = vmatpush.msra.mxu0 0.0
        %677 = vmatpush.msra.mxu0 0.0
        %678 = vmatpush.msra.mxu0 %v636
        %679 = vmatpush.msra.mxu0 %v620
        %680 = vmatmul.f32.gmra.mxu0 %v653
        %v681 = vpop.f32.mrf.mxu0
        %v682 = vadd.f32 0.0, %v681
        %683 = vmatmul.f32.gmra.mxu0 %v656
        %v684 = vpop.f32.mrf.mxu0
        %v685 = vadd.f32 0.0, %v684
        %686 = vmatmul.f32.gmra.mxu0 %v659
        %v687 = vpop.f32.mrf.mxu0
        %v688 = vadd.f32 0.0, %v687
        %689 = vmatmul.f32.gmra.mxu0 %v662
        %v690 = vpop.f32.mrf.mxu0
        %v691 = vadd.f32 0.0, %v690
        %692 = vdwg.mxu0
        %693 = vmatpush.msra.mxu0 0.0
        %694 = vmatpush.msra.mxu0 0.0
        %695 = vmatpush.msra.mxu0 0.0
        %696 = vmatpush.msra.mxu0 0.0
        %697 = vmatpush.msra.mxu0 0.0
        %698 = vmatpush.msra.mxu0 0.0
        %699 = vmatpush.msra.mxu0 0.0
        %700 = vmatpush.msra.mxu0 0.0
        %701 = vmatpush.msra.mxu0 0.0
        %702 = vmatpush.msra.mxu0 0.0
        %703 = vmatpush.msra.mxu0 0.0
        %704 = vmatpush.msra.mxu0 0.0
        %705 = vmatpush.msra.mxu0 0.0
        %706 = vmatpush.msra.mxu0 0.0
        %707 = vmatpush.msra.mxu0 %v637
        %708 = vmatpush.msra.mxu0 %v621
        %709 = vmatmul.f32.gmra.mxu0 %v653
        %v710 = vpop.f32.mrf.mxu0
        %v711 = vadd.f32 0.0, %v710
        %712 = vmatmul.f32.gmra.mxu0 %v656
        %v713 = vpop.f32.mrf.mxu0
        %v714 = vadd.f32 0.0, %v713
        %715 = vmatmul.f32.gmra.mxu0 %v659
        %v716 = vpop.f32.mrf.mxu0
        %v717 = vadd.f32 0.0, %v716
        %718 = vmatmul.f32.gmra.mxu0 %v662
        %v719 = vpop.f32.mrf.mxu0
        %v720 = vadd.f32 0.0, %v719
        %721 = vdwg.mxu0
        %722 = vmatpush.msra.mxu0 0.0
        %723 = vmatpush.msra.mxu0 0.0
        %724 = vmatpush.msra.mxu0 0.0
        %725 = vmatpush.msra.mxu0 0.0
        %726 = vmatpush.msra.mxu0 0.0
        %727 = vmatpush.msra.mxu0 0.0
        %728 = vmatpush.msra.mxu0 0.0
        %729 = vmatpush.msra.mxu0 0.0
        %730 = vmatpush.msra.mxu0 0.0
        %731 = vmatpush.msra.mxu0 0.0
        %732 = vmatpush.msra.mxu0 0.0
        %733 = vmatpush.msra.mxu0 0.0
        %734 = vmatpush.msra.mxu0 0.0
        %735 = vmatpush.msra.mxu0 0.0
        %736 = vmatpush.msra.mxu0 %v638
        %737 = vmatpush.msra.mxu0 %v622
        %738 = vmatmul.f32.gmra.mxu0 %v653
        %v739 = vpop.f32.mrf.mxu0
        %v740 = vadd.f32 0.0, %v739
        %741 = vmatmul.f32.gmra.mxu0 %v656
        %v742 = vpop.f32.mrf.mxu0
        %v743 = vadd.f32 0.0, %v742
        %744 = vmatmul.f32.gmra.mxu0 %v659
        %v745 = vpop.f32.mrf.mxu0
        %v746 = vadd.f32 0.0, %v745
        %747 = vmatmul.f32.gmra.mxu0 %v662
        %v748 = vpop.f32.mrf.mxu0
        %v749 = vadd.f32 0.0, %v748
        %750 = vdwg.mxu0
        %751 = vmatpush.msra.mxu0 0.0
        %752 = vmatpush.msra.mxu0 0.0
        %753 = vmatpush.msra.mxu0 0.0
        %754 = vmatpush.msra.mxu0 0.0
        %755 = vmatpush.msra.mxu0 0.0
        %756 = vmatpush.msra.mxu0 0.0
        %757 = vmatpush.msra.mxu0 0.0
        %758 = vmatpush.msra.mxu0 0.0
        %759 = vmatpush.msra.mxu0 0.0
        %760 = vmatpush.msra.mxu0 0.0
        %761 = vmatpush.msra.mxu0 0.0
        %762 = vmatpush.msra.mxu0 0.0
        %763 = vmatpush.msra.mxu0 0.0
        %764 = vmatpush.msra.mxu0 0.0
        %765 = vmatpush.msra.mxu0 %v639
        %766 = vmatpush.msra.mxu0 %v623
        %767 = vmatmul.f32.gmra.mxu0 %v653
        %v768 = vpop.f32.mrf.mxu0
        %v769 = vadd.f32 0.0, %v768
        %770 = vmatmul.f32.gmra.mxu0 %v656
        %v771 = vpop.f32.mrf.mxu0
        %v772 = vadd.f32 0.0, %v771
        %773 = vmatmul.f32.gmra.mxu0 %v659
        %v774 = vpop.f32.mrf.mxu0
        %v775 = vadd.f32 0.0, %v774
        %776 = vmatmul.f32.gmra.mxu0 %v662
        %v777 = vpop.f32.mrf.mxu0
        %v778 = vadd.f32 0.0, %v777
        %779 = vdwg.mxu0
        %780 = vmatpush.msra.mxu0 0.0
        %781 = vmatpush.msra.mxu0 0.0
        %782 = vmatpush.msra.mxu0 0.0
        %783 = vmatpush.msra.mxu0 0.0
        %784 = vmatpush.msra.mxu0 0.0
        %785 = vmatpush.msra.mxu0 0.0
        %786 = vmatpush.msra.mxu0 0.0
        %787 = vmatpush.msra.mxu0 0.0
        %788 = vmatpush.msra.mxu0 0.0
        %789 = vmatpush.msra.mxu0 0.0
        %790 = vmatpush.msra.mxu0 0.0
        %791 = vmatpush.msra.mxu0 0.0
        %792 = vmatpush.msra.mxu0 0.0
        %793 = vmatpush.msra.mxu0 0.0
        %794 = vmatpush.msra.mxu0 %v640
        %795 = vmatpush.msra.mxu0 %v624
        %796 = vmatmul.f32.gmra.mxu0 %v653
        %v797 = vpop.f32.mrf.mxu0
        %v798 = vadd.f32 0.0, %v797
        %799 = vmatmul.f32.gmra.mxu0 %v656
        %v800 = vpop.f32.mrf.mxu0
        %v801 = vadd.f32 0.0, %v800
        %802 = vmatmul.f32.gmra.mxu0 %v659
        %v803 = vpop.f32.mrf.mxu0
        %v804 = vadd.f32 0.0, %v803
        %805 = vmatmul.f32.gmra.mxu0 %v662
        %v806 = vpop.f32.mrf.mxu0
        %v807 = vadd.f32 0.0, %v806
        %808 = vdwg.mxu0
        %809 = vmatpush.msra.mxu0 0.0
        %810 = vmatpush.msra.mxu0 0.0
        %811 = vmatpush.msra.mxu0 0.0
        %812 = vmatpush.msra.mxu0 0.0
        %813 = vmatpush.msra.mxu0 0.0
        %814 = vmatpush.msra.mxu0 0.0
        %815 = vmatpush.msra.mxu0 0.0
        %816 = vmatpush.msra.mxu0 0.0
        %817 = vmatpush.msra.mxu0 0.0
        %818 = vmatpush.msra.mxu0 0.0
        %819 = vmatpush.msra.mxu0 0.0
        %820 = vmatpush.msra.mxu0 0.0
        %821 = vmatpush.msra.mxu0 0.0
        %822 = vmatpush.msra.mxu0 0.0
        %823 = vmatpush.msra.mxu0 %v641
        %824 = vmatpush.msra.mxu0 %v625
        %825 = vmatmul.f32.gmra.mxu0 %v653
        %v826 = vpop.f32.mrf.mxu0
        %v827 = vadd.f32 0.0, %v826
        %828 = vmatmul.f32.gmra.mxu0 %v656
        %v829 = vpop.f32.mrf.mxu0
        %v830 = vadd.f32 0.0, %v829
        %831 = vmatmul.f32.gmra.mxu0 %v659
        %v832 = vpop.f32.mrf.mxu0
        %v833 = vadd.f32 0.0, %v832
        %834 = vmatmul.f32.gmra.mxu0 %v662
        %v835 = vpop.f32.mrf.mxu0
        %v836 = vadd.f32 0.0, %v835
        %837 = vdwg.mxu0
        %838 = vmatpush.msra.mxu0 0.0
        %839 = vmatpush.msra.mxu0 0.0
        %840 = vmatpush.msra.mxu0 0.0
        %841 = vmatpush.msra.mxu0 0.0
        %842 = vmatpush.msra.mxu0 0.0
        %843 = vmatpush.msra.mxu0 0.0
        %844 = vmatpush.msra.mxu0 0.0
        %845 = vmatpush.msra.mxu0 0.0
        %846 = vmatpush.msra.mxu0 0.0
        %847 = vmatpush.msra.mxu0 0.0
        %848 = vmatpush.msra.mxu0 0.0
        %849 = vmatpush.msra.mxu0 0.0
        %850 = vmatpush.msra.mxu0 0.0
        %851 = vmatpush.msra.mxu0 0.0
        %852 = vmatpush.msra.mxu0 %v642
        %853 = vmatpush.msra.mxu0 %v626
        %854 = vmatmul.f32.gmra.mxu0 %v653
        %v855 = vpop.f32.mrf.mxu0
        %v856 = vadd.f32 0.0, %v855
        %857 = vmatmul.f32.gmra.mxu0 %v656
        %v858 = vpop.f32.mrf.mxu0
        %v859 = vadd.f32 0.0, %v858
        %860 = vmatmul.f32.gmra.mxu0 %v659
        %v861 = vpop.f32.mrf.mxu0
        %v862 = vadd.f32 0.0, %v861
        %863 = vmatmul.f32.gmra.mxu0 %v662
        %v864 = vpop.f32.mrf.mxu0
        %v865 = vadd.f32 0.0, %v864
        %866 = vdwg.mxu0
        %867 = vmatpush.msra.mxu0 0.0
        %868 = vmatpush.msra.mxu0 0.0
        %869 = vmatpush.msra.mxu0 0.0
        %870 = vmatpush.msra.mxu0 0.0
        %871 = vmatpush.msra.mxu0 0.0
        %872 = vmatpush.msra.mxu0 0.0
        %873 = vmatpush.msra.mxu0 0.0
        %874 = vmatpush.msra.mxu0 0.0
        %875 = vmatpush.msra.mxu0 0.0
        %876 = vmatpush.msra.mxu0 0.0
        %877 = vmatpush.msra.mxu0 0.0
        %878 = vmatpush.msra.mxu0 0.0
        %879 = vmatpush.msra.mxu0 0.0
        %880 = vmatpush.msra.mxu0 0.0
        %881 = vmatpush.msra.mxu0 %v643
        %882 = vmatpush.msra.mxu0 %v627
        %883 = vmatmul.f32.gmra.mxu0 %v653
        %v884 = vpop.f32.mrf.mxu0
        %v885 = vadd.f32 0.0, %v884
        %886 = vmatmul.f32.gmra.mxu0 %v656
        %v887 = vpop.f32.mrf.mxu0
        %v888 = vadd.f32 0.0, %v887
        %889 = vmatmul.f32.gmra.mxu0 %v659
        %v890 = vpop.f32.mrf.mxu0
        %v891 = vadd.f32 0.0, %v890
        %892 = vmatmul.f32.gmra.mxu0 %v662
        %v893 = vpop.f32.mrf.mxu0
        %v894 = vadd.f32 0.0, %v893
        %895 = vdwg.mxu0
        %896 = vmatpush.msra.mxu0 0.0
        %897 = vmatpush.msra.mxu0 0.0
        %898 = vmatpush.msra.mxu0 0.0
        %899 = vmatpush.msra.mxu0 0.0
        %900 = vmatpush.msra.mxu0 0.0
        %901 = vmatpush.msra.mxu0 0.0
        %902 = vmatpush.msra.mxu0 0.0
        %903 = vmatpush.msra.mxu0 0.0
        %904 = vmatpush.msra.mxu0 0.0
        %905 = vmatpush.msra.mxu0 0.0
        %906 = vmatpush.msra.mxu0 0.0
        %907 = vmatpush.msra.mxu0 0.0
        %908 = vmatpush.msra.mxu0 0.0
        %909 = vmatpush.msra.mxu0 0.0
        %910 = vmatpush.msra.mxu0 %v644
        %911 = vmatpush.msra.mxu0 %v628
        %912 = vmatmul.f32.gmra.mxu0 %v653
        %v913 = vpop.f32.mrf.mxu0
        %v914 = vadd.f32 0.0, %v913
        %915 = vmatmul.f32.gmra.mxu0 %v656
        %v916 = vpop.f32.mrf.mxu0
        %v917 = vadd.f32 0.0, %v916
        %918 = vmatmul.f32.gmra.mxu0 %v659
        %v919 = vpop.f32.mrf.mxu0
        %v920 = vadd.f32 0.0, %v919
        %921 = vmatmul.f32.gmra.mxu0 %v662
        %v922 = vpop.f32.mrf.mxu0
        %v923 = vadd.f32 0.0, %v922
        %924 = vdwg.mxu0
        %925 = vmatpush.msra.mxu0 0.0
        %926 = vmatpush.msra.mxu0 0.0
        %927 = vmatpush.msra.mxu0 0.0
        %928 = vmatpush.msra.mxu0 0.0
        %929 = vmatpush.msra.mxu0 0.0
        %930 = vmatpush.msra.mxu0 0.0
        %931 = vmatpush.msra.mxu0 0.0
        %932 = vmatpush.msra.mxu0 0.0
        %933 = vmatpush.msra.mxu0 0.0
        %934 = vmatpush.msra.mxu0 0.0
        %935 = vmatpush.msra.mxu0 0.0
        %936 = vmatpush.msra.mxu0 0.0
        %937 = vmatpush.msra.mxu0 0.0
        %938 = vmatpush.msra.mxu0 0.0
        %939 = vmatpush.msra.mxu0 %v645
        %940 = vmatpush.msra.mxu0 %v629
        %941 = vmatmul.f32.gmra.mxu0 %v653
        %v942 = vpop.f32.mrf.mxu0
        %v943 = vadd.f32 0.0, %v942
        %944 = vmatmul.f32.gmra.mxu0 %v656
        %v945 = vpop.f32.mrf.mxu0
        %v946 = vadd.f32 0.0, %v945
        %947 = vmatmul.f32.gmra.mxu0 %v659
        %v948 = vpop.f32.mrf.mxu0
        %v949 = vadd.f32 0.0, %v948
        %950 = vmatmul.f32.gmra.mxu0 %v662
        %v951 = vpop.f32.mrf.mxu0
        %v952 = vadd.f32 0.0, %v951
        %953 = vdwg.mxu0
        %954 = vmatpush.msra.mxu0 0.0
        %955 = vmatpush.msra.mxu0 0.0
        %956 = vmatpush.msra.mxu0 0.0
        %957 = vmatpush.msra.mxu0 0.0
        %958 = vmatpush.msra.mxu0 0.0
        %959 = vmatpush.msra.mxu0 0.0
        %960 = vmatpush.msra.mxu0 0.0
        %961 = vmatpush.msra.mxu0 0.0
        %962 = vmatpush.msra.mxu0 0.0
        %963 = vmatpush.msra.mxu0 0.0
        %964 = vmatpush.msra.mxu0 0.0
        %965 = vmatpush.msra.mxu0 0.0
        %966 = vmatpush.msra.mxu0 0.0
        %967 = vmatpush.msra.mxu0 0.0
        %968 = vmatpush.msra.mxu0 %v646
        %969 = vmatpush.msra.mxu0 %v630
        %970 = vmatmul.f32.gmra.mxu0 %v653
        %v971 = vpop.f32.mrf.mxu0
        %v972 = vadd.f32 0.0, %v971
        %973 = vmatmul.f32.gmra.mxu0 %v656
        %v974 = vpop.f32.mrf.mxu0
        %v975 = vadd.f32 0.0, %v974
        %976 = vmatmul.f32.gmra.mxu0 %v659
        %v977 = vpop.f32.mrf.mxu0
        %v978 = vadd.f32 0.0, %v977
        %979 = vmatmul.f32.gmra.mxu0 %v662
        %v980 = vpop.f32.mrf.mxu0
        %v981 = vadd.f32 0.0, %v980
        %982 = vdwg.mxu0
        %983 = vmatpush.msra.mxu0 0.0
        %984 = vmatpush.msra.mxu0 0.0
        %985 = vmatpush.msra.mxu0 0.0
        %986 = vmatpush.msra.mxu0 0.0
        %987 = vmatpush.msra.mxu0 0.0
        %988 = vmatpush.msra.mxu0 0.0
        %989 = vmatpush.msra.mxu0 0.0
        %990 = vmatpush.msra.mxu0 0.0
        %991 = vmatpush.msra.mxu0 0.0
        %992 = vmatpush.msra.mxu0 0.0
        %993 = vmatpush.msra.mxu0 0.0
        %994 = vmatpush.msra.mxu0 0.0
        %995 = vmatpush.msra.mxu0 0.0
        %996 = vmatpush.msra.mxu0 0.0
        %997 = vmatpush.msra.mxu0 %v647
        %998 = vmatpush.msra.mxu0 %v631
        %999 = vmatmul.f32.gmra.mxu0 %v653
        %v1000 = vpop.f32.mrf.mxu0
        %v1001 = vadd.f32 0.0, %v1000
        %1002 = vmatmul.f32.gmra.mxu0 %v656
        %v1003 = vpop.f32.mrf.mxu0
        %v1004 = vadd.f32 0.0, %v1003
        %1005 = vmatmul.f32.gmra.mxu0 %v659
        %v1006 = vpop.f32.mrf.mxu0
        %v1007 = vadd.f32 0.0, %v1006
        %1008 = vmatmul.f32.gmra.mxu0 %v662
        %v1009 = vpop.f32.mrf.mxu0
        %v1010 = vadd.f32 0.0, %v1009
        %1011 = vdwg.mxu0
        %1012 = vmatpush.msra.mxu0 0.0
        %1013 = vmatpush.msra.mxu0 0.0
        %1014 = vmatpush.msra.mxu0 0.0
        %1015 = vmatpush.msra.mxu0 0.0
        %1016 = vmatpush.msra.mxu0 0.0
        %1017 = vmatpush.msra.mxu0 0.0
        %1018 = vmatpush.msra.mxu0 0.0
        %1019 = vmatpush.msra.mxu0 0.0
        %1020 = vmatpush.msra.mxu0 0.0
        %1021 = vmatpush.msra.mxu0 0.0
        %1022 = vmatpush.msra.mxu0 0.0
        %1023 = vmatpush.msra.mxu0 0.0
        %1024 = vmatpush.msra.mxu0 0.0
        %1025 = vmatpush.msra.mxu0 0.0
        %1026 = vmatpush.msra.mxu0 %v648
        %1027 = vmatpush.msra.mxu0 %v632
        %1028 = vmatmul.f32.gmra.mxu0 %v653
        %v1029 = vpop.f32.mrf.mxu0
        %v1030 = vadd.f32 0.0, %v1029
        %1031 = vmatmul.f32.gmra.mxu0 %v656
        %v1032 = vpop.f32.mrf.mxu0
        %v1033 = vadd.f32 0.0, %v1032
        %1034 = vmatmul.f32.gmra.mxu0 %v659
        %v1035 = vpop.f32.mrf.mxu0
        %v1036 = vadd.f32 0.0, %v1035
        %1037 = vmatmul.f32.gmra.mxu0 %v662
        %v1038 = vpop.f32.mrf.mxu0
        %v1039 = vadd.f32 0.0, %v1038
        %1040 = vdwg.mxu0
        %1041 = vmatpush.msra.mxu0 0.0
        %1042 = vmatpush.msra.mxu0 0.0
        %1043 = vmatpush.msra.mxu0 0.0
        %1044 = vmatpush.msra.mxu0 0.0
        %1045 = vmatpush.msra.mxu0 0.0
        %1046 = vmatpush.msra.mxu0 0.0
        %1047 = vmatpush.msra.mxu0 0.0
        %1048 = vmatpush.msra.mxu0 0.0
        %1049 = vmatpush.msra.mxu0 0.0
        %1050 = vmatpush.msra.mxu0 0.0
        %1051 = vmatpush.msra.mxu0 0.0
        %1052 = vmatpush.msra.mxu0 0.0
        %1053 = vmatpush.msra.mxu0 0.0
        %1054 = vmatpush.msra.mxu0 0.0
        %1055 = vmatpush.msra.mxu0 %v649
        %1056 = vmatpush.msra.mxu0 %v633
        %1057 = vmatmul.f32.gmra.mxu0 %v653
        %v1058 = vpop.f32.mrf.mxu0
        %v1059 = vadd.f32 0.0, %v1058
        %1060 = vmatmul.f32.gmra.mxu0 %v656
        %v1061 = vpop.f32.mrf.mxu0
        %v1062 = vadd.f32 0.0, %v1061
        %1063 = vmatmul.f32.gmra.mxu0 %v659
        %v1064 = vpop.f32.mrf.mxu0
        %v1065 = vadd.f32 0.0, %v1064
        %1066 = vmatmul.f32.gmra.mxu0 %v662
        %v1067 = vpop.f32.mrf.mxu0
        %v1068 = vadd.f32 0.0, %v1067
        %1069 = vdwg.mxu0
        %1070 = vmatpush.msra.mxu0 0.0
        %1071 = vmatpush.msra.mxu0 0.0
        %1072 = vmatpush.msra.mxu0 0.0
        %1073 = vmatpush.msra.mxu0 0.0
        %1074 = vmatpush.msra.mxu0 0.0
        %1075 = vmatpush.msra.mxu0 0.0
        %1076 = vmatpush.msra.mxu0 0.0
        %1077 = vmatpush.msra.mxu0 0.0
        %1078 = vmatpush.msra.mxu0 0.0
        %1079 = vmatpush.msra.mxu0 0.0
        %1080 = vmatpush.msra.mxu0 0.0
        %1081 = vmatpush.msra.mxu0 0.0
        %1082 = vmatpush.msra.mxu0 0.0
        %1083 = vmatpush.msra.mxu0 0.0
        %1084 = vmatpush.msra.mxu0 %v650
        %1085 = vmatpush.msra.mxu0 %v634
        %1086 = vmatmul.f32.gmra.mxu0 %v653
        %v1087 = vpop.f32.mrf.mxu0
        %v1088 = vadd.f32 0.0, %v1087
        %1089 = vmatmul.f32.gmra.mxu0 %v656
        %v1090 = vpop.f32.mrf.mxu0
        %v1091 = vadd.f32 0.0, %v1090
        %1092 = vmatmul.f32.gmra.mxu0 %v659
        %v1093 = vpop.f32.mrf.mxu0
        %v1094 = vadd.f32 0.0, %v1093
        %1095 = vmatmul.f32.gmra.mxu0 %v662
        %v1096 = vpop.f32.mrf.mxu0
        %v1097 = vadd.f32 0.0, %v1096
        %1098 = vdwg.mxu0
        %1099 = vmatpush.msra.mxu0 0.0
        %1100 = vmatpush.msra.mxu0 0.0
        %1101 = vmatpush.msra.mxu0 0.0
        %1102 = vmatpush.msra.mxu0 0.0
        %1103 = vmatpush.msra.mxu0 0.0
        %1104 = vmatpush.msra.mxu0 0.0
        %1105 = vmatpush.msra.mxu0 0.0
        %1106 = vmatpush.msra.mxu0 0.0
        %1107 = vmatpush.msra.mxu0 0.0
        %1108 = vmatpush.msra.mxu0 0.0
        %1109 = vmatpush.msra.mxu0 0.0
        %1110 = vmatpush.msra.mxu0 0.0
        %1111 = vmatpush.msra.mxu0 0.0
        %1112 = vmatpush.msra.mxu0 0.0
        %1113 = vmatpush.msra.mxu0 %v651
        %1114 = vmatpush.msra.mxu0 %v635
        %1115 = vmatmul.f32.gmra.mxu0 %v653
        %v1116 = vpop.f32.mrf.mxu0
        %v1117 = vadd.f32 0.0, %v1116
        %1118 = vmatmul.f32.gmra.mxu0 %v656
        %v1119 = vpop.f32.mrf.mxu0
        %v1120 = vadd.f32 0.0, %v1119
        %1121 = vmatmul.f32.gmra.mxu0 %v659
        %v1122 = vpop.f32.mrf.mxu0
        %v1123 = vadd.f32 0.0, %v1122
        %1124 = vmatmul.f32.gmra.mxu0 %v662
        %v1125 = vpop.f32.mrf.mxu0
        %v1126 = vadd.f32 0.0, %v1125
        %1127 = vdwg.mxu0
        %v1128 = vmul.f32 %v682, %v314
        %v1129 = vmul.f32 %v711, %v334
        %v1130 = vmul.f32 %v740, %v354
        %v1131 = vmul.f32 %v769, %v374
        %v1132 = vmul.f32 %v798, %v394
        %v1133 = vmul.f32 %v827, %v414
        %v1134 = vmul.f32 %v856, %v434
        %v1135 = vmul.f32 %v885, %v454
        %v1136 = vmul.f32 %v914, %v474
        %v1137 = vmul.f32 %v943, %v494
        %v1138 = vmul.f32 %v972, %v514
        %v1139 = vmul.f32 %v1001, %v534
        %v1140 = vmul.f32 %v1030, %v554
        %v1141 = vmul.f32 %v1059, %v574
        %v1142 = vmul.f32 %v1088, %v594
        %v1143 = vmul.f32 %v1117, %v614
        %v1144 = vmul.f32 %v685, %v314
        %v1145 = vmul.f32 %v714, %v334
        %v1146 = vmul.f32 %v743, %v354
        %v1147 = vmul.f32 %v772, %v374
        %v1148 = vmul.f32 %v801, %v394
        %v1149 = vmul.f32 %v830, %v414
        %v1150 = vmul.f32 %v859, %v434
        %v1151 = vmul.f32 %v888, %v454
        %v1152 = vmul.f32 %v917, %v474
        %v1153 = vmul.f32 %v946, %v494
        %v1154 = vmul.f32 %v975, %v514
        %v1155 = vmul.f32 %v1004, %v534
        %v1156 = vmul.f32 %v1033, %v554
        %v1157 = vmul.f32 %v1062, %v574
        %v1158 = vmul.f32 %v1091, %v594
        %v1159 = vmul.f32 %v1120, %v614
        %v1160 = vmul.f32 %v688, %v314
        %v1161 = vmul.f32 %v717, %v334
        %v1162 = vmul.f32 %v746, %v354
        %v1163 = vmul.f32 %v775, %v374
        %v1164 = vmul.f32 %v804, %v394
        %v1165 = vmul.f32 %v833, %v414
        %v1166 = vmul.f32 %v862, %v434
        %v1167 = vmul.f32 %v891, %v454
        %v1168 = vmul.f32 %v920, %v474
        %v1169 = vmul.f32 %v949, %v494
        %v1170 = vmul.f32 %v978, %v514
        %v1171 = vmul.f32 %v1007, %v534
        %v1172 = vmul.f32 %v1036, %v554
        %v1173 = vmul.f32 %v1065, %v574
        %v1174 = vmul.f32 %v1094, %v594
        %v1175 = vmul.f32 %v1123, %v614
        %v1176 = vmul.f32 %v691, %v314
        %v1177 = vmul.f32 %v720, %v334
        %v1178 = vmul.f32 %v749, %v354
        %v1179 = vmul.f32 %v778, %v374
        %v1180 = vmul.f32 %v807, %v394
        %v1181 = vmul.f32 %v836, %v414
        %v1182 = vmul.f32 %v865, %v434
        %v1183 = vmul.f32 %v894, %v454
        %v1184 = vmul.f32 %v923, %v474
        %v1185 = vmul.f32 %v952, %v494
        %v1186 = vmul.f32 %v981, %v514
        %v1187 = vmul.f32 %v1010, %v534
        %v1188 = vmul.f32 %v1039, %v554
        %v1189 = vmul.f32 %v1068, %v574
        %v1190 = vmul.f32 %v1097, %v594
        %v1191 = vmul.f32 %v1126, %v614
        %1192 = vst [vmem:[%s255] sm:$0xff] %v1128
        %1193 = vst [vmem:[%s255 + $0x8] sm:$0xff] %v1129
        %1194 = vst [vmem:[%s255 + $0x10] sm:$0xff] %v1130
        %1195 = vst [vmem:[%s255 + $0x18] sm:$0xff] %v1131
        %1196 = vst [vmem:[%s255 + $0x20] sm:$0xff] %v1132
        %1197 = vst [vmem:[%s255 + $0x28] sm:$0xff] %v1133
        %1198 = vst [vmem:[%s255 + $0x30] sm:$0xff] %v1134
        %1199 = vst [vmem:[%s255 + $0x38] sm:$0xff] %v1135
        %1200 = vst [vmem:[%s255 + $0x40] sm:$0xff] %v1136
        %1201 = vst [vmem:[%s255 + $0x48] sm:$0xff] %v1137
        %1202 = vst [vmem:[%s255 + $0x50] sm:$0xff] %v1138
        %1203 = vst [vmem:[%s255 + $0x58] sm:$0xff] %v1139
        %1204 = vst [vmem:[%s255 + $0x60] sm:$0xff] %v1140
        %1205 = vst [vmem:[%s255 + $0x68] sm:$0xff] %v1141
        %1206 = vst [vmem:[%s255 + $0x70] sm:$0xff] %v1142
        %1207 = vst [vmem:[%s255 + $0x78] sm:$0xff] %v1143
        %1208 = vst [vmem:[%s255 + $0x80] sm:$0xff] %v1144
        %1209 = vst [vmem:[%s255 + $0x88] sm:$0xff] %v1145
        %1210 = vst [vmem:[%s255 + $0x90] sm:$0xff] %v1146
        %1211 = vst [vmem:[%s255 + $0x98] sm:$0xff] %v1147
        %1212 = vst [vmem:[%s255 + $0xa0] sm:$0xff] %v1148
        %1213 = vst [vmem:[%s255 + $0xa8] sm:$0xff] %v1149
        %1214 = vst [vmem:[%s255 + $0xb0] sm:$0xff] %v1150
        %1215 = vst [vmem:[%s255 + $0xb8] sm:$0xff] %v1151
        %1216 = vst [vmem:[%s255 + $0xc0] sm:$0xff] %v1152
        %1217 = vst [vmem:[%s255 + $0xc8] sm:$0xff] %v1153
        %1218 = vst [vmem:[%s255 + $0xd0] sm:$0xff] %v1154
        %1219 = vst [vmem:[%s255 + $0xd8] sm:$0xff] %v1155
        %1220 = vst [vmem:[%s255 + $0xe0] sm:$0xff] %v1156
        %1221 = vst [vmem:[%s255 + $0xe8] sm:$0xff] %v1157
        %1222 = vst [vmem:[%s255 + $0xf0] sm:$0xff] %v1158
        %1223 = vst [vmem:[%s255 + $0xf8] sm:$0xff] %v1159
        %1224 = vst [vmem:[%s255 + $0x100] sm:$0xff] %v1160
        %1225 = vst [vmem:[%s255 + $0x108] sm:$0xff] %v1161
        %1226 = vst [vmem:[%s255 + $0x110] sm:$0xff] %v1162
        %1227 = vst [vmem:[%s255 + $0x118] sm:$0xff] %v1163
        %1228 = vst [vmem:[%s255 + $0x120] sm:$0xff] %v1164
        %1229 = vst [vmem:[%s255 + $0x128] sm:$0xff] %v1165
        %1230 = vst [vmem:[%s255 + $0x130] sm:$0xff] %v1166
        %1231 = vst [vmem:[%s255 + $0x138] sm:$0xff] %v1167
        %1232 = vst [vmem:[%s255 + $0x140] sm:$0xff] %v1168
        %1233 = vst [vmem:[%s255 + $0x148] sm:$0xff] %v1169
        %1234 = vst [vmem:[%s255 + $0x150] sm:$0xff] %v1170
        %1235 = vst [vmem:[%s255 + $0x158] sm:$0xff] %v1171
        %1236 = vst [vmem:[%s255 + $0x160] sm:$0xff] %v1172
        %1237 = vst [vmem:[%s255 + $0x168] sm:$0xff] %v1173
        %1238 = vst [vmem:[%s255 + $0x170] sm:$0xff] %v1174
        %1239 = vst [vmem:[%s255 + $0x178] sm:$0xff] %v1175
        %1240 = vst [vmem:[%s255 + $0x180] sm:$0xff] %v1176
        %1241 = vst [vmem:[%s255 + $0x188] sm:$0xff] %v1177
        %1242 = vst [vmem:[%s255 + $0x190] sm:$0xff] %v1178
        %1243 = vst [vmem:[%s255 + $0x198] sm:$0xff] %v1179
        %1244 = vst [vmem:[%s255 + $0x1a0] sm:$0xff] %v1180
        %1245 = vst [vmem:[%s255 + $0x1a8] sm:$0xff] %v1181
        %1246 = vst [vmem:[%s255 + $0x1b0] sm:$0xff] %v1182
        %1247 = vst [vmem:[%s255 + $0x1b8] sm:$0xff] %v1183
        %1248 = vst [vmem:[%s255 + $0x1c0] sm:$0xff] %v1184
        %1249 = vst [vmem:[%s255 + $0x1c8] sm:$0xff] %v1185
        %1250 = vst [vmem:[%s255 + $0x1d0] sm:$0xff] %v1186
        %1251 = vst [vmem:[%s255 + $0x1d8] sm:$0xff] %v1187
        %1252 = vst [vmem:[%s255 + $0x1e0] sm:$0xff] %v1188
        %1253 = vst [vmem:[%s255 + $0x1e8] sm:$0xff] %v1189
        %1254 = vst [vmem:[%s255 + $0x1f0] sm:$0xff] %v1190
        %1255 = vst [vmem:[%s255 + $0x1f8] sm:$0xff] %v1191
        %s1256 = sand.u32 %s123, 1
        %s1257 = sand.u32 %s123, 1
        %s1258 = smul.addr %s1257, 512
        %s1259 = scalar_lea.vmem [#allocation6], %s1258
        // Predicated region
        $region45: #{_lambda_.3} parent=35 // pred_check
          %p1260 = pneg %p133
        $region46: #{_lambda_.3} parent=35 // pred_check_branch
          %1262 = sbr.rel (%p1260) target = $region48
        $region47: #{_lambda_.3} parent=35 // pred_region
          %s1263 = smul.u32 16, %s21
          %s1264 = smul.addr %s1263, 8
          %s1265 = scalar_lea.vmem %s4, %s1264
          // Predicated region
          $region49: #{_lambda_.3} parent=47 // pred_check
            _
          $region50: #{_lambda_.3} parent=47 // pred_check_branch
            %1267 = sbr.rel (0) target = $region52
          $region51: #{_lambda_.3} parent=47 // pred_region
            // Predicated region
            $region53: #{_lambda_.3} parent=51 // pred_check
              _
            $region54: #{_lambda_.3} parent=51 // pred_check_branch
              %1269 = sbr.rel (0) target = $region56
            $region55: #{_lambda_.3} parent=51 // pred_region
              loop: start=0, step=1, limit=1
              $region57: #{_lambda_.3} parent=55 // loop_pre_header
                _
              $region58: #{_lambda_.3} parent=55 // loop_header
                %s1271 = sphi 0, %s1275
                %p1272 = scmp.ge.s32.totalorder %s1271, 1
                %s1276 = sphi %s1259, %s1259
                %s1277 = sphi %s1265, %s1265
              $region59: #{_lambda_.3} parent=55 // loop_header_branch
                %1274 = sbr.rel (%p1272) target = $region63
              $region60: #{_lambda_.3} parent=55 // loop_body
                %v1278 = vld [vmem:[%s1276] sm:$0xff]
                %1279 = vst [vmem:[%s1277] sm:$0xff] %v1278
                %v1280 = vld [vmem:[%s1276 + $0x8] sm:$0xff]
                %1281 = vst [vmem:[%s1277 + $0x8] sm:$0xff] %v1280
                %v1282 = vld [vmem:[%s1276 + $0x10] sm:$0xff]
                %1283 = vst [vmem:[%s1277 + $0x10] sm:$0xff] %v1282
                %v1284 = vld [vmem:[%s1276 + $0x18] sm:$0xff]
                %1285 = vst [vmem:[%s1277 + $0x18] sm:$0xff] %v1284
                %v1286 = vld [vmem:[%s1276 + $0x20] sm:$0xff]
                %1287 = vst [vmem:[%s1277 + $0x20] sm:$0xff] %v1286
                %v1288 = vld [vmem:[%s1276 + $0x28] sm:$0xff]
                %1289 = vst [vmem:[%s1277 + $0x28] sm:$0xff] %v1288
                %v1290 = vld [vmem:[%s1276 + $0x30] sm:$0xff]
                %1291 = vst [vmem:[%s1277 + $0x30] sm:$0xff] %v1290
                %v1292 = vld [vmem:[%s1276 + $0x38] sm:$0xff]
                %1293 = vst [vmem:[%s1277 + $0x38] sm:$0xff] %v1292
                %v1294 = vld [vmem:[%s1276 + $0x40] sm:$0xff]
                %1295 = vst [vmem:[%s1277 + $0x40] sm:$0xff] %v1294
                %v1296 = vld [vmem:[%s1276 + $0x48] sm:$0xff]
                %1297 = vst [vmem:[%s1277 + $0x48] sm:$0xff] %v1296
                %v1298 = vld [vmem:[%s1276 + $0x50] sm:$0xff]
                %1299 = vst [vmem:[%s1277 + $0x50] sm:$0xff] %v1298
                %v1300 = vld [vmem:[%s1276 + $0x58] sm:$0xff]
                %1301 = vst [vmem:[%s1277 + $0x58] sm:$0xff] %v1300
                %v1302 = vld [vmem:[%s1276 + $0x60] sm:$0xff]
                %1303 = vst [vmem:[%s1277 + $0x60] sm:$0xff] %v1302
                %v1304 = vld [vmem:[%s1276 + $0x68] sm:$0xff]
                %1305 = vst [vmem:[%s1277 + $0x68] sm:$0xff] %v1304
                %v1306 = vld [vmem:[%s1276 + $0x70] sm:$0xff]
                %1307 = vst [vmem:[%s1277 + $0x70] sm:$0xff] %v1306
                %v1308 = vld [vmem:[%s1276 + $0x78] sm:$0xff]
                %1309 = vst [vmem:[%s1277 + $0x78] sm:$0xff] %v1308
                %v1310 = vld [vmem:[%s1276 + $0x80] sm:$0xff]
                %1311 = vst [vmem:[%s1277 + $0x100] sm:$0xff] %v1310
                %v1312 = vld [vmem:[%s1276 + $0x88] sm:$0xff]
                %1313 = vst [vmem:[%s1277 + $0x108] sm:$0xff] %v1312
                %v1314 = vld [vmem:[%s1276 + $0x90] sm:$0xff]
                %1315 = vst [vmem:[%s1277 + $0x110] sm:$0xff] %v1314
                %v1316 = vld [vmem:[%s1276 + $0x98] sm:$0xff]
                %1317 = vst [vmem:[%s1277 + $0x118] sm:$0xff] %v1316
                %v1318 = vld [vmem:[%s1276 + $0xa0] sm:$0xff]
                %1319 = vst [vmem:[%s1277 + $0x120] sm:$0xff] %v1318
                %v1320 = vld [vmem:[%s1276 + $0xa8] sm:$0xff]
                %1321 = vst [vmem:[%s1277 + $0x128] sm:$0xff] %v1320
                %v1322 = vld [vmem:[%s1276 + $0xb0] sm:$0xff]
                %1323 = vst [vmem:[%s1277 + $0x130] sm:$0xff] %v1322
                %v1324 = vld [vmem:[%s1276 + $0xb8] sm:$0xff]
                %1325 = vst [vmem:[%s1277 + $0x138] sm:$0xff] %v1324
                %v1326 = vld [vmem:[%s1276 + $0xc0] sm:$0xff]
                %1327 = vst [vmem:[%s1277 + $0x140] sm:$0xff] %v1326
                %v1328 = vld [vmem:[%s1276 + $0xc8] sm:$0xff]
                %1329 = vst [vmem:[%s1277 + $0x148] sm:$0xff] %v1328
                %v1330 = vld [vmem:[%s1276 + $0xd0] sm:$0xff]
                %1331 = vst [vmem:[%s1277 + $0x150] sm:$0xff] %v1330
                %v1332 = vld [vmem:[%s1276 + $0xd8] sm:$0xff]
                %1333 = vst [vmem:[%s1277 + $0x158] sm:$0xff] %v1332
                %v1334 = vld [vmem:[%s1276 + $0xe0] sm:$0xff]
                %1335 = vst [vmem:[%s1277 + $0x160] sm:$0xff] %v1334
                %v1336 = vld [vmem:[%s1276 + $0xe8] sm:$0xff]
                %1337 = vst [vmem:[%s1277 + $0x168] sm:$0xff] %v1336
                %v1338 = vld [vmem:[%s1276 + $0xf0] sm:$0xff]
                %1339 = vst [vmem:[%s1277 + $0x170] sm:$0xff] %v1338
                %v1340 = vld [vmem:[%s1276 + $0xf8] sm:$0xff]
                %1341 = vst [vmem:[%s1277 + $0x178] sm:$0xff] %v1340
                %v1342 = vld [vmem:[%s1276 + $0x100] sm:$0xff]
                %1343 = vst [vmem:[%s1277 + $0x200] sm:$0xff] %v1342
                %v1344 = vld [vmem:[%s1276 + $0x108] sm:$0xff]
                %1345 = vst [vmem:[%s1277 + $0x208] sm:$0xff] %v1344
                %v1346 = vld [vmem:[%s1276 + $0x110] sm:$0xff]
                %1347 = vst [vmem:[%s1277 + $0x210] sm:$0xff] %v1346
                %v1348 = vld [vmem:[%s1276 + $0x118] sm:$0xff]
                %1349 = vst [vmem:[%s1277 + $0x218] sm:$0xff] %v1348
                %v1350 = vld [vmem:[%s1276 + $0x120] sm:$0xff]
                %1351 = vst [vmem:[%s1277 + $0x220] sm:$0xff] %v1350
                %v1352 = vld [vmem:[%s1276 + $0x128] sm:$0xff]
                %1353 = vst [vmem:[%s1277 + $0x228] sm:$0xff] %v1352
                %v1354 = vld [vmem:[%s1276 + $0x130] sm:$0xff]
                %1355 = vst [vmem:[%s1277 + $0x230] sm:$0xff] %v1354
                %v1356 = vld [vmem:[%s1276 + $0x138] sm:$0xff]
                %1357 = vst [vmem:[%s1277 + $0x238] sm:$0xff] %v1356
                %v1358 = vld [vmem:[%s1276 + $0x140] sm:$0xff]
                %1359 = vst [vmem:[%s1277 + $0x240] sm:$0xff] %v1358
                %v1360 = vld [vmem:[%s1276 + $0x148] sm:$0xff]
                %1361 = vst [vmem:[%s1277 + $0x248] sm:$0xff] %v1360
                %v1362 = vld [vmem:[%s1276 + $0x150] sm:$0xff]
                %1363 = vst [vmem:[%s1277 + $0x250] sm:$0xff] %v1362
                %v1364 = vld [vmem:[%s1276 + $0x158] sm:$0xff]
                %1365 = vst [vmem:[%s1277 + $0x258] sm:$0xff] %v1364
                %v1366 = vld [vmem:[%s1276 + $0x160] sm:$0xff]
                %1367 = vst [vmem:[%s1277 + $0x260] sm:$0xff] %v1366
                %v1368 = vld [vmem:[%s1276 + $0x168] sm:$0xff]
                %1369 = vst [vmem:[%s1277 + $0x268] sm:$0xff] %v1368
                %v1370 = vld [vmem:[%s1276 + $0x170] sm:$0xff]
                %1371 = vst [vmem:[%s1277 + $0x270] sm:$0xff] %v1370
                %v1372 = vld [vmem:[%s1276 + $0x178] sm:$0xff]
                %1373 = vst [vmem:[%s1277 + $0x278] sm:$0xff] %v1372
                %v1374 = vld [vmem:[%s1276 + $0x180] sm:$0xff]
                %1375 = vst [vmem:[%s1277 + $0x300] sm:$0xff] %v1374
                %v1376 = vld [vmem:[%s1276 + $0x188] sm:$0xff]
                %1377 = vst [vmem:[%s1277 + $0x308] sm:$0xff] %v1376
                %v1378 = vld [vmem:[%s1276 + $0x190] sm:$0xff]
                %1379 = vst [vmem:[%s1277 + $0x310] sm:$0xff] %v1378
                %v1380 = vld [vmem:[%s1276 + $0x198] sm:$0xff]
                %1381 = vst [vmem:[%s1277 + $0x318] sm:$0xff] %v1380
                %v1382 = vld [vmem:[%s1276 + $0x1a0] sm:$0xff]
                %1383 = vst [vmem:[%s1277 + $0x320] sm:$0xff] %v1382
                %v1384 = vld [vmem:[%s1276 + $0x1a8] sm:$0xff]
                %1385 = vst [vmem:[%s1277 + $0x328] sm:$0xff] %v1384
                %v1386 = vld [vmem:[%s1276 + $0x1b0] sm:$0xff]
                %1387 = vst [vmem:[%s1277 + $0x330] sm:$0xff] %v1386
                %v1388 = vld [vmem:[%s1276 + $0x1b8] sm:$0xff]
                %1389 = vst [vmem:[%s1277 + $0x338] sm:$0xff] %v1388
                %v1390 = vld [vmem:[%s1276 + $0x1c0] sm:$0xff]
                %1391 = vst [vmem:[%s1277 + $0x340] sm:$0xff] %v1390
                %v1392 = vld [vmem:[%s1276 + $0x1c8] sm:$0xff]
                %1393 = vst [vmem:[%s1277 + $0x348] sm:$0xff] %v1392
                %v1394 = vld [vmem:[%s1276 + $0x1d0] sm:$0xff]
                %1395 = vst [vmem:[%s1277 + $0x350] sm:$0xff] %v1394
                %v1396 = vld [vmem:[%s1276 + $0x1d8] sm:$0xff]
                %1397 = vst [vmem:[%s1277 + $0x358] sm:$0xff] %v1396
                %v1398 = vld [vmem:[%s1276 + $0x1e0] sm:$0xff]
                %1399 = vst [vmem:[%s1277 + $0x360] sm:$0xff] %v1398
                %v1400 = vld [vmem:[%s1276 + $0x1e8] sm:$0xff]
                %1401 = vst [vmem:[%s1277 + $0x368] sm:$0xff] %v1400
                %v1402 = vld [vmem:[%s1276 + $0x1f0] sm:$0xff]
                %1403 = vst [vmem:[%s1277 + $0x370] sm:$0xff] %v1402
                %v1404 = vld [vmem:[%s1276 + $0x1f8] sm:$0xff]
                %1405 = vst [vmem:[%s1277 + $0x378] sm:$0xff] %v1404
              $region61: #{_lambda_.3} parent=55 // loop_footer
                %s1275 = sadd.s32 1, %s1271
              $region62: #{_lambda_.3} parent=55 // loop_footer_branch
                %1270 = sbr.rel target = $region58
              $region63: #{_lambda_.3} parent=55 // loop_exit
                _
            $region56: #{_lambda_.3} parent=51 // pred_fallthru
              _
            // Predicated region
            $region64: #{_lambda_.3} parent=51 // pred_check
              _
            $region65: #{_lambda_.3} parent=51 // pred_check_branch
              %1407 = sbr.rel target = $region67
            $region66: #{_lambda_.3} parent=51 // pred_region
              _
            $region67: #{_lambda_.3} parent=51 // pred_fallthru
              _
          $region52: #{_lambda_.3} parent=47 // pred_fallthru
            _
          %1408 = vnop
        $region48: #{_lambda_.3} parent=35 // pred_fallthru
          _
      $region36: #{_lambda_.3} parent=5 // pred_fallthru
        _
      %p1409 = scmp.le.s32.totalorder 2, %s16
      // Predicated region
      $region68: #{_lambda_.3} parent=5 // pred_check
        %p1410 = pneg %p1409
      $region69: #{_lambda_.3} parent=5 // pred_check_branch
        %1412 = sbr.rel (%p1410) target = $region71
      $region70: #{_lambda_.3} parent=5 // pred_region
        %s1413 = ssub.s32 %s16, 2
        // Predicated region
        $region72: #{_lambda_.3} parent=70 // pred_check
          %p1414 = pneg %p139
        $region73: #{_lambda_.3} parent=70 // pred_check_branch
          %1416 = sbr.rel (%p1414) target = $region75
        $region74: #{_lambda_.3} parent=70 // pred_region
          %s1417 = sand.u32 %s124, 1
          %s1418 = sand.u32 %s124, 1
          %s1419 = smul.addr %s1418, 512
          %s1420 = scalar_lea.vmem [#allocation6], %s1419
        $region75: #{_lambda_.3} parent=70 // pred_fallthru
          _
      $region71: #{_lambda_.3} parent=5 // pred_fallthru
        _
    $region6: #{_lambda_.3} parent=1 // loop_footer
      %s20 = sadd.s32 1, %s16
    $region7: #{_lambda_.3} parent=1 // loop_footer_branch
      %15 = sbr.rel target = $region3
    $region8: #{_lambda_.3} parent=1 // loop_exit
      _
    %1421 = vsyncpa [#allocation3], 1
    %s1422 = scalar_lea.sflag [#allocation3], 1
    %1423 = vsyncpa %s1422, 1
    %1424 = vsyncpa [#allocation5], 1
    %s1425 = scalar_lea.sflag [#allocation5], 1
    %1426 = vsyncpa %s1425, 1

// kernel: reverse.5
$region0: #{reverse.5}
  %s0 = inlined_call_operand.vmem [shape: f32[4,8,4096], index: 0, kind: input, shape index: {}]
  %s1 = inlined_call_operand.vmem [shape: f32[4,8,4096], index: 1, kind: output, shape index: {}]
  %v2 = vlaneseq
  %v3 = vsub.s32 127, %v2
  %4 = vset.pattern.permute.xlu0 %v3
  $region1: #{reverse.5} parent=0
    #allocation0 [shape = 'u8[32768]{0}', space=vmem, size = 0x8000, scoped, tag = 'operand span for operand 0']
    #allocation1 [shape = 'u8[32768]{0}', space=vmem, size = 0x8000, scoped, tag = 'operand span for operand 1']
    loop: start=0, step=1, limit=34
    $region2: #{reverse.5} parent=1 // loop_pre_header
      _
    $region3: #{reverse.5} parent=1 // loop_header
      %s6 = sphi 0, %s10
      %p7 = scmp.ge.s32.totalorder %s6, 34
      %s13 = sphi 0, %s32
      %s14 = sphi 0, %s28
      %s15 = sphi 0, %s24
      %s16 = sphi 0, %s13
      %s17 = sphi 0, %s14
      %s18 = sphi 0, %s15
      %s19 = sphi 0, %s16
      %s20 = sphi 0, %s17
      %s21 = sphi 0, %s18
    $region4: #{reverse.5} parent=1 // loop_header_branch
      %9 = sbr.rel (%p7) target = $region8
    $region5: #{reverse.5} parent=1 // loop_body
      %s11 = ssub.s32 %s6, 1
      %s12 = ssub.s32 %s6, 2
      %s22 = sadd.s32 1, %s15
      %p23 = scmp.ge.s32.totalorder %s22, 32
      %s24 = scalar_select %p23, 0, %s22
      %s25 = sadd.s32 1, %s14
      %s26 = scalar_select %p23, %s25, %s14
      %p27 = scmp.ge.s32.totalorder %s26, 1
      %s28 = scalar_select %p27, 0, %s26
      %s29 = sadd.s32 1, %s13
      %s30 = scalar_select %p27, %s29, %s13
      %p31 = scmp.ge.s32.totalorder %s30, 1
      %s32 = scalar_select %p31, 0, %s30
      %p33 = scmp.le.s32.totalorder 1, %s6
      %p34 = scmp.lt.s32.totalorder %s6, 33
      %p35 = pnand %p33, %p34
      %p36 = pneg %p35
      // Predicated region
      $region9: #{reverse.5} parent=5 // pred_check
        _
      $region10: #{reverse.5} parent=5 // pred_check_branch
        %38 = sbr.rel (%p35) target = $region12
      $region11: #{reverse.5} parent=5 // pred_region
        %s39 = ssub.s32 %s6, 1
      $region12: #{reverse.5} parent=5 // pred_fallthru
        _
      %p40 = scmp.lt.s32.totalorder %s6, 32
      // Predicated region
      $region13: #{reverse.5} parent=5 // pred_check
        %p41 = pneg %p40
      $region14: #{reverse.5} parent=5 // pred_check_branch
        %43 = sbr.rel (%p41) target = $region16
      $region15: #{reverse.5} parent=5 // pred_region
        %s44 = sand.u32 %s6, 1
        %s45 = sand.u32 %s6, 1
        %s46 = smul.addr %s45, 32
        %s47 = scalar_lea.vmem [#allocation0], %s46
        %s48 = ssub.s32 31, %s15
        %s49 = smul.u32 4, %s13
        %s50 = smul.addr %s14, 32
        %s51 = sadd.s32 %s48, %s50
        %s52 = smul.addr %s49, 32
        %s53 = sadd.s32 %s51, %s52
        %s54 = smul.addr %s53, 8
        %s55 = scalar_lea.vmem %s0, %s54
        // Predicated region
        $region17: #{reverse.5} parent=15 // pred_check
          _
        $region18: #{reverse.5} parent=15 // pred_check_branch
          %57 = sbr.rel (0) target = $region20
        $region19: #{reverse.5} parent=15 // pred_region
          // Predicated region
          $region21: #{reverse.5} parent=19 // pred_check
            _
          $region22: #{reverse.5} parent=19 // pred_check_branch
            %59 = sbr.rel (0) target = $region24
          $region23: #{reverse.5} parent=19 // pred_region
            // Predicated region
            $region36: #{reverse.5} parent=23 // pred_check
              _
            $region37: #{reverse.5} parent=23 // pred_check_branch
              %81 = sbr.rel (0) target = $region39
            $region38: #{reverse.5} parent=23 // pred_region
              loop: start=0, step=1, limit=1
              $region40: #{reverse.5} parent=38 // loop_pre_header
                _
              $region41: #{reverse.5} parent=38 // loop_header
                %s83 = sphi 0, %s87
                %p84 = scmp.ge.s32.totalorder %s83, 1
                %s88 = sphi %s55, %s55
                %s89 = sphi %s47, %s47
              $region42: #{reverse.5} parent=38 // loop_header_branch
                %86 = sbr.rel (%p84) target = $region46
              $region43: #{reverse.5} parent=38 // loop_body
                %v90 = vld [vmem:[%s88] sm:$0xff]
                %91 = vst [vmem:[%s89] sm:$0xff] %v90
                %v92 = vld [vmem:[%s88 + $0x100] sm:$0xff]
                %93 = vst [vmem:[%s89 + $0x8] sm:$0xff] %v92
                %v94 = vld [vmem:[%s88 + $0x200] sm:$0xff]
                %95 = vst [vmem:[%s89 + $0x10] sm:$0xff] %v94
                %v96 = vld [vmem:[%s88 + $0x300] sm:$0xff]
                %97 = vst [vmem:[%s89 + $0x18] sm:$0xff] %v96
              $region44: #{reverse.5} parent=38 // loop_footer
                %s87 = sadd.s32 1, %s83
              $region45: #{reverse.5} parent=38 // loop_footer_branch
                %82 = sbr.rel target = $region41
              $region46: #{reverse.5} parent=38 // loop_exit
                _
            $region39: #{reverse.5} parent=23 // pred_fallthru
              _
            // Predicated region
            $region47: #{reverse.5} parent=23 // pred_check
              _
            $region48: #{reverse.5} parent=23 // pred_check_branch
              %99 = sbr.rel target = $region50
            $region49: #{reverse.5} parent=23 // pred_region
              _
            $region50: #{reverse.5} parent=23 // pred_fallthru
              _
          $region24: #{reverse.5} parent=19 // pred_fallthru
            _
          // Predicated region
          $region25: #{reverse.5} parent=19 // pred_check
            _
          $region26: #{reverse.5} parent=19 // pred_check_branch
            %61 = sbr.rel target = $region28
          $region27: #{reverse.5} parent=19 // pred_region
            %s63 = ssub.s32 256, 1
            loop: start=0, step=1, limit=1
            $region29: #{reverse.5} parent=27 // loop_pre_header
              _
            $region30: #{reverse.5} parent=27 // loop_header
              %s65 = sphi 0, %s69
              %p66 = scmp.ge.s32.totalorder %s65, 1
              %s70 = sphi %s55, %s55
              %s71 = sphi %s47, %s47
            $region31: #{reverse.5} parent=27 // loop_header_branch
              %68 = sbr.rel (%p66) target = $region35
            $region32: #{reverse.5} parent=27 // loop_body
              %v72 = vld [vmem:[%s70] sm:%s63]
              %73 = vst [vmem:[%s71] sm:%s63] %v72
              %v74 = vld [vmem:[%s70 + $0x100] sm:%s63]
              %75 = vst [vmem:[%s71 + $0x8] sm:%s63] %v74
              %v76 = vld [vmem:[%s70 + $0x200] sm:%s63]
              %77 = vst [vmem:[%s71 + $0x10] sm:%s63] %v76
              %v78 = vld [vmem:[%s70 + $0x300] sm:%s63]
              %79 = vst [vmem:[%s71 + $0x18] sm:%s63] %v78
            $region33: #{reverse.5} parent=27 // loop_footer
              %s69 = sadd.s32 1, %s65
            $region34: #{reverse.5} parent=27 // loop_footer_branch
              %64 = sbr.rel target = $region30
            $region35: #{reverse.5} parent=27 // loop_exit
              _
          $region28: #{reverse.5} parent=19 // pred_fallthru
            _
        $region20: #{reverse.5} parent=15 // pred_fallthru
          _
        %100 = vnop
      $region16: #{reverse.5} parent=5 // pred_fallthru
        _
      %p101 = scmp.le.s32.totalorder 1, %s6
      %p102 = scmp.lt.s32.totalorder %s6, 33
      %p103 = pnand %p101, %p102
      %p104 = pneg %p103
      // Predicated region
      $region51: #{reverse.5} parent=5 // pred_check
        _
      $region52: #{reverse.5} parent=5 // pred_check_branch
        %106 = sbr.rel (%p103) target = $region54
      $region53: #{reverse.5} parent=5 // pred_region
        %s107 = ssub.s32 %s6, 1
        %s108 = sand.u32 %s11, 1
        %s109 = sand.u32 %s11, 1
        %s110 = smul.addr %s109, 32
        %s111 = scalar_lea.vmem [#allocation0], %s110
        %s112 = sand.u32 %s11, 1
        %s113 = sand.u32 %s11, 1
        %s114 = smul.addr %s113, 32
        %s115 = scalar_lea.vmem [#allocation0], %s114
        %s116 = sand.u32 %s11, 1
        %s117 = sand.u32 %s11, 1
        %s118 = smul.addr %s117, 32
        %s119 = scalar_lea.vmem [#allocation1], %s118
        %s120 = ssub.s32 31, %s18
        %s121 = smul.u32 4, %s16
        %s122 = smul.u32 4, %s16
        %v123 = vld [vmem:[%s111] sm:$0xff]
        %124 = vperm.xlu0 %4, %v123
        %v125 = vpop.permute.xlu0 %124
        %126 = vst [vmem:[%s119] sm:$0xff] %v125
        %s127 = scalar_lea.vmem %s119, 8 [#allocation1]
        %s128 = scalar_lea.vmem %s111, 8 [#allocation0]
        %v129 = vld [vmem:[%s128] sm:$0xff]
        %130 = vperm.xlu0 %4, %v129
        %v131 = vpop.permute.xlu0 %130
        %132 = vst [vmem:[%s127] sm:$0xff] %v131
        %s133 = scalar_lea.vmem %s119, 16 [#allocation1]
        %s134 = scalar_lea.vmem %s111, 16 [#allocation0]
        %v135 = vld [vmem:[%s134] sm:$0xff]
        %136 = vperm.xlu0 %4, %v135
        %v137 = vpop.permute.xlu0 %136
        %138 = vst [vmem:[%s133] sm:$0xff] %v137
        %s139 = scalar_lea.vmem %s119, 24 [#allocation1]
        %s140 = scalar_lea.vmem %s111, 24 [#allocation0]
        %v141 = vld [vmem:[%s140] sm:$0xff]
        %142 = vperm.xlu0 %4, %v141
        %v143 = vpop.permute.xlu0 %142
        %144 = vst [vmem:[%s139] sm:$0xff] %v143
        %s145 = sand.u32 %s11, 1
        %s146 = sand.u32 %s11, 1
        %s147 = smul.addr %s146, 32
        %s148 = scalar_lea.vmem [#allocation1], %s147
        %s149 = smul.u32 4, %s16
        %s150 = smul.addr %s17, 32
        %s151 = sadd.s32 %s18, %s150
        %s152 = smul.addr %s149, 32
        %s153 = sadd.s32 %s151, %s152
        %s154 = smul.addr %s153, 8
        %s155 = scalar_lea.vmem %s1, %s154
        // Predicated region
        $region55: #{reverse.5} parent=53 // pred_check
          _
        $region56: #{reverse.5} parent=53 // pred_check_branch
          %157 = sbr.rel (0) target = $region58
        $region57: #{reverse.5} parent=53 // pred_region
          // Predicated region
          $region59: #{reverse.5} parent=57 // pred_check
            _
          $region60: #{reverse.5} parent=57 // pred_check_branch
            %159 = sbr.rel (0) target = $region62
          $region61: #{reverse.5} parent=57 // pred_region
            // Predicated region
            $region74: #{reverse.5} parent=61 // pred_check
              _
            $region75: #{reverse.5} parent=61 // pred_check_branch
              %181 = sbr.rel (0) target = $region77
            $region76: #{reverse.5} parent=61 // pred_region
              loop: start=0, step=1, limit=1
              $region78: #{reverse.5} parent=76 // loop_pre_header
                _
              $region79: #{reverse.5} parent=76 // loop_header
                %s183 = sphi 0, %s187
                %p184 = scmp.ge.s32.totalorder %s183, 1
                %s188 = sphi %s148, %s148
                %s189 = sphi %s155, %s155
              $region80: #{reverse.5} parent=76 // loop_header_branch
                %186 = sbr.rel (%p184) target = $region84
              $region81: #{reverse.5} parent=76 // loop_body
                %v190 = vld [vmem:[%s188] sm:$0xff]
                %191 = vst [vmem:[%s189] sm:$0xff] %v190
                %v192 = vld [vmem:[%s188 + $0x8] sm:$0xff]
                %193 = vst [vmem:[%s189 + $0x100] sm:$0xff] %v192
                %v194 = vld [vmem:[%s188 + $0x10] sm:$0xff]
                %195 = vst [vmem:[%s189 + $0x200] sm:$0xff] %v194
                %v196 = vld [vmem:[%s188 + $0x18] sm:$0xff]
                %197 = vst [vmem:[%s189 + $0x300] sm:$0xff] %v196
              $region82: #{reverse.5} parent=76 // loop_footer
                %s187 = sadd.s32 1, %s183
              $region83: #{reverse.5} parent=76 // loop_footer_branch
                %182 = sbr.rel target = $region79
              $region84: #{reverse.5} parent=76 // loop_exit
                _
            $region77: #{reverse.5} parent=61 // pred_fallthru
              _
            // Predicated region
            $region85: #{reverse.5} parent=61 // pred_check
              _
            $region86: #{reverse.5} parent=61 // pred_check_branch
              %199 = sbr.rel target = $region88
            $region87: #{reverse.5} parent=61 // pred_region
              _
            $region88: #{reverse.5} parent=61 // pred_fallthru
              _
          $region62: #{reverse.5} parent=57 // pred_fallthru
            _
          // Predicated region
          $region63: #{reverse.5} parent=57 // pred_check
            _
          $region64: #{reverse.5} parent=57 // pred_check_branch
            %161 = sbr.rel target = $region66
          $region65: #{reverse.5} parent=57 // pred_region
            %s163 = ssub.s32 256, 1
            loop: start=0, step=1, limit=1
            $region67: #{reverse.5} parent=65 // loop_pre_header
              _
            $region68: #{reverse.5} parent=65 // loop_header
              %s165 = sphi 0, %s169
              %p166 = scmp.ge.s32.totalorder %s165, 1
              %s170 = sphi %s148, %s148
              %s171 = sphi %s155, %s155
            $region69: #{reverse.5} parent=65 // loop_header_branch
              %168 = sbr.rel (%p166) target = $region73
            $region70: #{reverse.5} parent=65 // loop_body
              %v172 = vld [vmem:[%s170] sm:%s163]
              %173 = vst [vmem:[%s171] sm:%s163] %v172
              %v174 = vld [vmem:[%s170 + $0x8] sm:%s163]
              %175 = vst [vmem:[%s171 + $0x100] sm:%s163] %v174
              %v176 = vld [vmem:[%s170 + $0x10] sm:%s163]
              %177 = vst [vmem:[%s171 + $0x200] sm:%s163] %v176
              %v178 = vld [vmem:[%s170 + $0x18] sm:%s163]
              %179 = vst [vmem:[%s171 + $0x300] sm:%s163] %v178
            $region71: #{reverse.5} parent=65 // loop_footer
              %s169 = sadd.s32 1, %s165
            $region72: #{reverse.5} parent=65 // loop_footer_branch
              %164 = sbr.rel target = $region68
            $region73: #{reverse.5} parent=65 // loop_exit
              _
          $region66: #{reverse.5} parent=57 // pred_fallthru
            _
        $region58: #{reverse.5} parent=53 // pred_fallthru
          _
        %200 = vnop
      $region54: #{reverse.5} parent=5 // pred_fallthru
        _
      %p201 = scmp.le.s32.totalorder 2, %s6
      // Predicated region
      $region89: #{reverse.5} parent=5 // pred_check
        %p202 = pneg %p201
      $region90: #{reverse.5} parent=5 // pred_check_branch
        %204 = sbr.rel (%p202) target = $region92
      $region91: #{reverse.5} parent=5 // pred_region
        %s205 = ssub.s32 %s6, 2
        %s206 = sand.u32 %s12, 1
        %s207 = sand.u32 %s12, 1
        %s208 = smul.addr %s207, 32
        %s209 = scalar_lea.vmem [#allocation1], %s208
      $region92: #{reverse.5} parent=5 // pred_fallthru
        _
    $region6: #{reverse.5} parent=1 // loop_footer
      %s10 = sadd.s32 1, %s6
    $region7: #{reverse.5} parent=1 // loop_footer_branch
      %5 = sbr.rel target = $region3
    $region8: #{reverse.5} parent=1 // loop_exit
      _

// kernel: _lambda_.4
$region0: #{_lambda_.4}
  #allocation0 [shape = 'u32[]', space=smem, size = 0x4, offset = 0x4, fixed_abs, tag = 'smem constant byte address 0x4 - core index']
  #allocation1 [shape = 'u32[72,128]{1,0:T(1,128)}', space=vmem, size = 0x9000, scoped, tag = 'internal scratch']
  %s0 = inlined_call_operand.vmem [shape: f32[4,8,16], index: 0, kind: input, shape index: {}]
  %s1 = inlined_call_operand.vmem [shape: f32[16,4096], index: 1, kind: input, shape index: {}]
  %s2 = inlined_call_operand.vmem [shape: f32[4,8,4096], index: 2, kind: input, shape index: {}]
  %s3 = inlined_call_operand.vmem [shape: f32[8,4096], index: 3, kind: output, shape index: {}]
  %s4 = sld [smem:[#allocation0]]
  $region91: #{_lambda_.4} parent=0
    _
  %s6 = ssub.s32 1, %s4
  %s7 = scalar_select 0, %s6, %s4
  $region1: #{_lambda_.4} parent=0
    #allocation2 [shape = 'u8[262144]{0}', space=vmem, size = 0x40000, scoped, tag = 'input window, operand 1']
    #allocation3 [shape = 'u8[524288]{0}', space=vmem, size = 0x80000, scoped, tag = 'input window, operand 2']
    loop: start=0, step=1, limit=4
    $region2: #{_lambda_.4} parent=1 // loop_pre_header
      _
    $region3: #{_lambda_.4} parent=1 // loop_header
      %s9 = sphi 0, %s13
      %p10 = scmp.ge.s32.totalorder %s9, 4
      %s17 = sphi 0, %s17
      %s19 = sphi 0, %s17
      %s20 = sphi 0, %s19
      %s34 = sphi 0, %s20
      %s40 = sphi 0, %s42
      %s43 = sphi 0, %s40
      %s44 = sphi 0, %s43
      %s60 = sphi 0, %s44
      %s66 = sphi 0, %s68
      %s69 = sphi 0, %s66
      %s70 = sphi 0, %s69
      %s86 = sphi 0, %s70
      %s92 = sphi 0, %s94
      %s95 = sphi 0, %s92
      %s96 = sphi 0, %s95
      %s112 = sphi 0, %s96
    $region4: #{_lambda_.4} parent=1 // loop_header_branch
      %12 = sbr.rel (%p10) target = $region8
    $region5: #{_lambda_.4} parent=1 // loop_body
      %s14 = ssub.s32 %s9, 1
      %s15 = ssub.s32 %s9, 2
      %s16 = sadd.s32 %s9, 1
      %s18 = sadd.s32 %s17, 1
      %p21 = scmp.eq.s32.totalorder %s9, 1
      %p22 = scmp.ne.s32.totalorder %s17, %s19
      %p23 = scmp.eq.s32.totalorder %s9, 0
      %p24 = por %p22, %p23
      %p25 = scmp.ne.s32.totalorder %s17, %s19
      %p26 = scmp.eq.s32.totalorder %s14, 1
      %p27 = por %p25, %p26
      %p28 = scmp.ne.s32.totalorder %s19, %s20
      %p29 = scmp.eq.s32.totalorder %s14, 0
      %p30 = por %p28, %p29
      %p31 = scmp.ne.s32.totalorder %s19, %s20
      %p32 = scmp.eq.s32.totalorder %s15, 1
      %p33 = por %p31, %p32
      %p35 = scmp.ne.s32.totalorder %s20, %s34
      %p36 = scmp.eq.s32.totalorder %s15, 0
      %p37 = por %p35, %p36
      %s38 = ssub.s32 %s9, %s16
      %p39 = scmp.eq.s32.totalorder %s38, 0
      %s41 = sadd.s32 %s40, 1
      %s42 = scalar_select %p39, %s40, %s41
      %p45 = pneg %p39
      %p46 = scmp.eq.s32.totalorder %s9, 1
      %p47 = por %p45, %p46
      %p48 = scmp.ne.s32.totalorder %s40, %s43
      %p49 = scmp.eq.s32.totalorder %s9, 0
      %p50 = por %p48, %p49
      %p51 = scmp.ne.s32.totalorder %s40, %s43
      %p52 = scmp.eq.s32.totalorder %s14, 1
      %p53 = por %p51, %p52
      %p54 = scmp.ne.s32.totalorder %s43, %s44
      %p55 = scmp.eq.s32.totalorder %s14, 0
      %p56 = por %p54, %p55
      %p57 = scmp.ne.s32.totalorder %s43, %s44
      %p58 = scmp.eq.s32.totalorder %s15, 1
      %p59 = por %p57, %p58
      %p61 = scmp.ne.s32.totalorder %s44, %s60
      %p62 = scmp.eq.s32.totalorder %s15, 0
      %p63 = por %p61, %p62
      %s64 = ssub.s32 %s9, %s16
      %p65 = scmp.eq.s32.totalorder %s64, 0
      %s67 = sadd.s32 %s66, 1
      %s68 = scalar_select %p65, %s66, %s67
      %p71 = pneg %p65
      %p72 = scmp.eq.s32.totalorder %s9, 1
      %p73 = por %p71, %p72
      %p74 = scmp.ne.s32.totalorder %s66, %s69
      %p75 = scmp.eq.s32.totalorder %s9, 0
      %p76 = por %p74, %p75
      %p77 = scmp.ne.s32.totalorder %s66, %s69
      %p78 = scmp.eq.s32.totalorder %s14, 1
      %p79 = por %p77, %p78
      %p80 = scmp.ne.s32.totalorder %s69, %s70
      %p81 = scmp.eq.s32.totalorder %s14, 0
      %p82 = por %p80, %p81
      %p83 = scmp.ne.s32.totalorder %s69, %s70
      %p84 = scmp.eq.s32.totalorder %s15, 1
      %p85 = por %p83, %p84
      %p87 = scmp.ne.s32.totalorder %s70, %s86
      %p88 = scmp.eq.s32.totalorder %s15, 0
      %p89 = por %p87, %p88
      %s90 = ssub.s32 %s9, %s16
      %p91 = scmp.eq.s32.totalorder %s90, 0
      %s93 = sadd.s32 %s92, 1
      %s94 = scalar_select %p91, %s92, %s93
      %p97 = pneg %p91
      %p98 = scmp.eq.s32.totalorder %s9, 1
      %p99 = por %p97, %p98
      %p100 = scmp.ne.s32.totalorder %s92, %s95
      %p101 = scmp.eq.s32.totalorder %s9, 0
      %p102 = por %p100, %p101
      %p103 = scmp.ne.s32.totalorder %s92, %s95
      %p104 = scmp.eq.s32.totalorder %s14, 1
      %p105 = por %p103, %p104
      %p106 = scmp.ne.s32.totalorder %s95, %s96
      %p107 = scmp.eq.s32.totalorder %s14, 0
      %p108 = por %p106, %p107
      %p109 = scmp.ne.s32.totalorder %s95, %s96
      %p110 = scmp.eq.s32.totalorder %s15, 1
      %p111 = por %p109, %p110
      %p113 = scmp.ne.s32.totalorder %s96, %s112
      %p114 = scmp.eq.s32.totalorder %s15, 0
      %p115 = por %p113, %p114
      %p116 = scmp.le.s32.totalorder 1, %s9
      %p117 = scmp.lt.s32.totalorder %s9, 3
      %p118 = pnand %p116, %p117
      %p119 = pneg %p118
      // Predicated region
      $region9: #{_lambda_.4} parent=5 // pred_check
        _
      $region10: #{_lambda_.4} parent=5 // pred_check_branch
        %121 = sbr.rel (%p118) target = $region12
      $region11: #{_lambda_.4} parent=5 // pred_region
        %s122 = ssub.s32 %s9, 1
        // Predicated region
        $region13: #{_lambda_.4} parent=11 // pred_check
          %p123 = pneg %p30
        $region14: #{_lambda_.4} parent=11 // pred_check_branch
          %125 = sbr.rel (%p123) target = $region16
        $region15: #{_lambda_.4} parent=11 // pred_region
          _
        $region16: #{_lambda_.4} parent=11 // pred_fallthru
          _
      $region12: #{_lambda_.4} parent=5 // pred_fallthru
        _
      %p126 = scmp.lt.s32.totalorder %s9, 2
      // Predicated region
      $region17: #{_lambda_.4} parent=5 // pred_check
        %p127 = pneg %p126
      $region18: #{_lambda_.4} parent=5 // pred_check_branch
        %129 = sbr.rel (%p127) target = $region20
      $region19: #{_lambda_.4} parent=5 // pred_region
        // Predicated region
        $region21: #{_lambda_.4} parent=19 // pred_check
          %p130 = pneg %p50
        $region22: #{_lambda_.4} parent=19 // pred_check_branch
          %132 = sbr.rel (%p130) target = $region24
        $region23: #{_lambda_.4} parent=19 // pred_region
          %s133 = sand.u32 %s40, 1
          %s134 = sand.u32 %s40, 1
          %s135 = smul.addr %s134, 256
          %s136 = scalar_lea.vmem [#allocation2], %s135
          %s137 = smul.u32 16, %s9
          %s138 = smul.addr %s137, 8
          %s139 = scalar_lea.vmem %s1, %s138
          // Predicated region
          $region25: #{_lambda_.4} parent=23 // pred_check
            _
          $region26: #{_lambda_.4} parent=23 // pred_check_branch
            %141 = sbr.rel (0) target = $region28
          $region27: #{_lambda_.4} parent=23 // pred_region
            // Predicated region
            $region29: #{_lambda_.4} parent=27 // pred_check
              _
            $region30: #{_lambda_.4} parent=27 // pred_check_branch
              %143 = sbr.rel (0) target = $region32
            $region31: #{_lambda_.4} parent=27 // pred_region
              loop: start=0, step=1, limit=1
              $region33: #{_lambda_.4} parent=31 // loop_pre_header
                _
              $region34: #{_lambda_.4} parent=31 // loop_header
                %s145 = sphi 0, %s149
                %p146 = scmp.ge.s32.totalorder %s145, 1
                %s150 = sphi %s139, %s139
                %s151 = sphi %s136, %s136
              $region35: #{_lambda_.4} parent=31 // loop_header_branch
                %148 = sbr.rel (%p146) target = $region39
              $region36: #{_lambda_.4} parent=31 // loop_body
                %v152 = vld [vmem:[%s150] sm:$0xff]
                %153 = vst [vmem:[%s151] sm:$0xff] %v152
                %v154 = vld [vmem:[%s150 + $0x8] sm:$0xff]
                %155 = vst [vmem:[%s151 + $0x8] sm:$0xff] %v154
                %v156 = vld [vmem:[%s150 + $0x10] sm:$0xff]
                %157 = vst [vmem:[%s151 + $0x10] sm:$0xff] %v156
                %v158 = vld [vmem:[%s150 + $0x18] sm:$0xff]
                %159 = vst [vmem:[%s151 + $0x18] sm:$0xff] %v158
                %v160 = vld [vmem:[%s150 + $0x20] sm:$0xff]
                %161 = vst [vmem:[%s151 + $0x20] sm:$0xff] %v160
                %v162 = vld [vmem:[%s150 + $0x28] sm:$0xff]
                %163 = vst [vmem:[%s151 + $0x28] sm:$0xff] %v162
                %v164 = vld [vmem:[%s150 + $0x30] sm:$0xff]
                %165 = vst [vmem:[%s151 + $0x30] sm:$0xff] %v164
                %v166 = vld [vmem:[%s150 + $0x38] sm:$0xff]
                %167 = vst [vmem:[%s151 + $0x38] sm:$0xff] %v166
                %v168 = vld [vmem:[%s150 + $0x40] sm:$0xff]
                %169 = vst [vmem:[%s151 + $0x40] sm:$0xff] %v168
                %v170 = vld [vmem:[%s150 + $0x48] sm:$0xff]
                %171 = vst [vmem:[%s151 + $0x48] sm:$0xff] %v170
                %v172 = vld [vmem:[%s150 + $0x50] sm:$0xff]
                %173 = vst [vmem:[%s151 + $0x50] sm:$0xff] %v172
                %v174 = vld [vmem:[%s150 + $0x58] sm:$0xff]
                %175 = vst [vmem:[%s151 + $0x58] sm:$0xff] %v174
                %v176 = vld [vmem:[%s150 + $0x60] sm:$0xff]
                %177 = vst [vmem:[%s151 + $0x60] sm:$0xff] %v176
                %v178 = vld [vmem:[%s150 + $0x68] sm:$0xff]
                %179 = vst [vmem:[%s151 + $0x68] sm:$0xff] %v178
                %v180 = vld [vmem:[%s150 + $0x70] sm:$0xff]
                %181 = vst [vmem:[%s151 + $0x70] sm:$0xff] %v180
                %v182 = vld [vmem:[%s150 + $0x78] sm:$0xff]
                %183 = vst [vmem:[%s151 + $0x78] sm:$0xff] %v182
                %v184 = vld [vmem:[%s150 + $0x100] sm:$0xff]
                %185 = vst [vmem:[%s151 + $0x80] sm:$0xff] %v184
                %v186 = vld [vmem:[%s150 + $0x108] sm:$0xff]
                %187 = vst [vmem:[%s151 + $0x88] sm:$0xff] %v186
                %v188 = vld [vmem:[%s150 + $0x110] sm:$0xff]
                %189 = vst [vmem:[%s151 + $0x90] sm:$0xff] %v188
                %v190 = vld [vmem:[%s150 + $0x118] sm:$0xff]
                %191 = vst [vmem:[%s151 + $0x98] sm:$0xff] %v190
                %v192 = vld [vmem:[%s150 + $0x120] sm:$0xff]
                %193 = vst [vmem:[%s151 + $0xa0] sm:$0xff] %v192
                %v194 = vld [vmem:[%s150 + $0x128] sm:$0xff]
                %195 = vst [vmem:[%s151 + $0xa8] sm:$0xff] %v194
                %v196 = vld [vmem:[%s150 + $0x130] sm:$0xff]
                %197 = vst [vmem:[%s151 + $0xb0] sm:$0xff] %v196
                %v198 = vld [vmem:[%s150 + $0x138] sm:$0xff]
                %199 = vst [vmem:[%s151 + $0xb8] sm:$0xff] %v198
                %v200 = vld [vmem:[%s150 + $0x140] sm:$0xff]
                %201 = vst [vmem:[%s151 + $0xc0] sm:$0xff] %v200
                %v202 = vld [vmem:[%s150 + $0x148] sm:$0xff]
                %203 = vst [vmem:[%s151 + $0xc8] sm:$0xff] %v202
                %v204 = vld [vmem:[%s150 + $0x150] sm:$0xff]
                %205 = vst [vmem:[%s151 + $0xd0] sm:$0xff] %v204
                %v206 = vld [vmem:[%s150 + $0x158] sm:$0xff]
                %207 = vst [vmem:[%s151 + $0xd8] sm:$0xff] %v206
                %v208 = vld [vmem:[%s150 + $0x160] sm:$0xff]
                %209 = vst [vmem:[%s151 + $0xe0] sm:$0xff] %v208
                %v210 = vld [vmem:[%s150 + $0x168] sm:$0xff]
                %211 = vst [vmem:[%s151 + $0xe8] sm:$0xff] %v210
                %v212 = vld [vmem:[%s150 + $0x170] sm:$0xff]
                %213 = vst [vmem:[%s151 + $0xf0] sm:$0xff] %v212
                %v214 = vld [vmem:[%s150 + $0x178] sm:$0xff]
                %215 = vst [vmem:[%s151 + $0xf8] sm:$0xff] %v214
              $region37: #{_lambda_.4} parent=31 // loop_footer
                %s149 = sadd.s32 1, %s145
              $region38: #{_lambda_.4} parent=31 // loop_footer_branch
                %144 = sbr.rel target = $region34
              $region39: #{_lambda_.4} parent=31 // loop_exit
                _
            $region32: #{_lambda_.4} parent=27 // pred_fallthru
              _
            // Predicated region
            $region40: #{_lambda_.4} parent=27 // pred_check
              _
            $region41: #{_lambda_.4} parent=27 // pred_check_branch
              %217 = sbr.rel target = $region43
            $region42: #{_lambda_.4} parent=27 // pred_region
              _
            $region43: #{_lambda_.4} parent=27 // pred_fallthru
              _
          $region28: #{_lambda_.4} parent=23 // pred_fallthru
            _
          %218 = vnop
        $region24: #{_lambda_.4} parent=19 // pred_fallthru
          _
        // Predicated region
        $region44: #{_lambda_.4} parent=19 // pred_check
          %p219 = pneg %p76
        $region45: #{_lambda_.4} parent=19 // pred_check_branch
          %221 = sbr.rel (%p219) target = $region47
        $region46: #{_lambda_.4} parent=19 // pred_region
          %s222 = sand.u32 %s66, 1
          %s223 = sand.u32 %s66, 1
          %s224 = smul.addr %s223, 512
          %s225 = scalar_lea.vmem [#allocation3], %s224
          %s226 = smul.u32 16, %s9
          %s227 = smul.addr %s226, 8
          %s228 = scalar_lea.vmem %s2, %s227
          // Predicated region
          $region48: #{_lambda_.4} parent=46 // pred_check
            _
          $region49: #{_lambda_.4} parent=46 // pred_check_branch
            %230 = sbr.rel (0) target = $region51
          $region50: #{_lambda_.4} parent=46 // pred_region
            // Predicated region
            $region52: #{_lambda_.4} parent=50 // pred_check
              _
            $region53: #{_lambda_.4} parent=50 // pred_check_branch
              %232 = sbr.rel (0) target = $region55
            $region54: #{_lambda_.4} parent=50 // pred_region
              loop: start=0, step=1, limit=1
              $region56: #{_lambda_.4} parent=54 // loop_pre_header
                _
              $region57: #{_lambda_.4} parent=54 // loop_header
                %s234 = sphi 0, %s238
                %p235 = scmp.ge.s32.totalorder %s234, 1
                %s239 = sphi %s228, %s228
                %s240 = sphi %s225, %s225
              $region58: #{_lambda_.4} parent=54 // loop_header_branch
                %237 = sbr.rel (%p235) target = $region62
              $region59: #{_lambda_.4} parent=54 // loop_body
                %v241 = vld [vmem:[%s239] sm:$0xff]
                %242 = vst [vmem:[%s240] sm:$0xff] %v241
                %v243 = vld [vmem:[%s239 + $0x8] sm:$0xff]
                %244 = vst [vmem:[%s240 + $0x8] sm:$0xff] %v243
                %v245 = vld [vmem:[%s239 + $0x10] sm:$0xff]
                %246 = vst [vmem:[%s240 + $0x10] sm:$0xff] %v245
                %v247 = vld [vmem:[%s239 + $0x18] sm:$0xff]
                %248 = vst [vmem:[%s240 + $0x18] sm:$0xff] %v247
                %v249 = vld [vmem:[%s239 + $0x20] sm:$0xff]
                %250 = vst [vmem:[%s240 + $0x20] sm:$0xff] %v249
                %v251 = vld [vmem:[%s239 + $0x28] sm:$0xff]
                %252 = vst [vmem:[%s240 + $0x28] sm:$0xff] %v251
                %v253 = vld [vmem:[%s239 + $0x30] sm:$0xff]
                %254 = vst [vmem:[%s240 + $0x30] sm:$0xff] %v253
                %v255 = vld [vmem:[%s239 + $0x38] sm:$0xff]
                %256 = vst [vmem:[%s240 + $0x38] sm:$0xff] %v255
                %v257 = vld [vmem:[%s239 + $0x40] sm:$0xff]
                %258 = vst [vmem:[%s240 + $0x40] sm:$0xff] %v257
                %v259 = vld [vmem:[%s239 + $0x48] sm:$0xff]
                %260 = vst [vmem:[%s240 + $0x48] sm:$0xff] %v259
                %v261 = vld [vmem:[%s239 + $0x50] sm:$0xff]
                %262 = vst [vmem:[%s240 + $0x50] sm:$0xff] %v261
                %v263 = vld [vmem:[%s239 + $0x58] sm:$0xff]
                %264 = vst [vmem:[%s240 + $0x58] sm:$0xff] %v263
                %v265 = vld [vmem:[%s239 + $0x60] sm:$0xff]
                %266 = vst [vmem:[%s240 + $0x60] sm:$0xff] %v265
                %v267 = vld [vmem:[%s239 + $0x68] sm:$0xff]
                %268 = vst [vmem:[%s240 + $0x68] sm:$0xff] %v267
                %v269 = vld [vmem:[%s239 + $0x70] sm:$0xff]
                %270 = vst [vmem:[%s240 + $0x70] sm:$0xff] %v269
                %v271 = vld [vmem:[%s239 + $0x78] sm:$0xff]
                %272 = vst [vmem:[%s240 + $0x78] sm:$0xff] %v271
                %v273 = vld [vmem:[%s239 + $0x100] sm:$0xff]
                %274 = vst [vmem:[%s240 + $0x80] sm:$0xff] %v273
                %v275 = vld [vmem:[%s239 + $0x108] sm:$0xff]
                %276 = vst [vmem:[%s240 + $0x88] sm:$0xff] %v275
                %v277 = vld [vmem:[%s239 + $0x110] sm:$0xff]
                %278 = vst [vmem:[%s240 + $0x90] sm:$0xff] %v277
                %v279 = vld [vmem:[%s239 + $0x118] sm:$0xff]
                %280 = vst [vmem:[%s240 + $0x98] sm:$0xff] %v279
                %v281 = vld [vmem:[%s239 + $0x120] sm:$0xff]
                %282 = vst [vmem:[%s240 + $0xa0] sm:$0xff] %v281
                %v283 = vld [vmem:[%s239 + $0x128] sm:$0xff]
                %284 = vst [vmem:[%s240 + $0xa8] sm:$0xff] %v283
                %v285 = vld [vmem:[%s239 + $0x130] sm:$0xff]
                %286 = vst [vmem:[%s240 + $0xb0] sm:$0xff] %v285
                %v287 = vld [vmem:[%s239 + $0x138] sm:$0xff]
                %288 = vst [vmem:[%s240 + $0xb8] sm:$0xff] %v287
                %v289 = vld [vmem:[%s239 + $0x140] sm:$0xff]
                %290 = vst [vmem:[%s240 + $0xc0] sm:$0xff] %v289
                %v291 = vld [vmem:[%s239 + $0x148] sm:$0xff]
                %292 = vst [vmem:[%s240 + $0xc8] sm:$0xff] %v291
                %v293 = vld [vmem:[%s239 + $0x150] sm:$0xff]
                %294 = vst [vmem:[%s240 + $0xd0] sm:$0xff] %v293
                %v295 = vld [vmem:[%s239 + $0x158] sm:$0xff]
                %296 = vst [vmem:[%s240 + $0xd8] sm:$0xff] %v295
                %v297 = vld [vmem:[%s239 + $0x160] sm:$0xff]
                %298 = vst [vmem:[%s240 + $0xe0] sm:$0xff] %v297
                %v299 = vld [vmem:[%s239 + $0x168] sm:$0xff]
                %300 = vst [vmem:[%s240 + $0xe8] sm:$0xff] %v299
                %v301 = vld [vmem:[%s239 + $0x170] sm:$0xff]
                %302 = vst [vmem:[%s240 + $0xf0] sm:$0xff] %v301
                %v303 = vld [vmem:[%s239 + $0x178] sm:$0xff]
                %304 = vst [vmem:[%s240 + $0xf8] sm:$0xff] %v303
                %v305 = vld [vmem:[%s239 + $0x200] sm:$0xff]
                %306 = vst [vmem:[%s240 + $0x100] sm:$0xff] %v305
                %v307 = vld [vmem:[%s239 + $0x208] sm:$0xff]
                %308 = vst [vmem:[%s240 + $0x108] sm:$0xff] %v307
                %v309 = vld [vmem:[%s239 + $0x210] sm:$0xff]
                %310 = vst [vmem:[%s240 + $0x110] sm:$0xff] %v309
                %v311 = vld [vmem:[%s239 + $0x218] sm:$0xff]
                %312 = vst [vmem:[%s240 + $0x118] sm:$0xff] %v311
                %v313 = vld [vmem:[%s239 + $0x220] sm:$0xff]
                %314 = vst [vmem:[%s240 + $0x120] sm:$0xff] %v313
                %v315 = vld [vmem:[%s239 + $0x228] sm:$0xff]
                %316 = vst [vmem:[%s240 + $0x128] sm:$0xff] %v315
                %v317 = vld [vmem:[%s239 + $0x230] sm:$0xff]
                %318 = vst [vmem:[%s240 + $0x130] sm:$0xff] %v317
                %v319 = vld [vmem:[%s239 + $0x238] sm:$0xff]
                %320 = vst [vmem:[%s240 + $0x138] sm:$0xff] %v319
                %v321 = vld [vmem:[%s239 + $0x240] sm:$0xff]
                %322 = vst [vmem:[%s240 + $0x140] sm:$0xff] %v321
                %v323 = vld [vmem:[%s239 + $0x248] sm:$0xff]
                %324 = vst [vmem:[%s240 + $0x148] sm:$0xff] %v323
                %v325 = vld [vmem:[%s239 + $0x250] sm:$0xff]
                %326 = vst [vmem:[%s240 + $0x150] sm:$0xff] %v325
                %v327 = vld [vmem:[%s239 + $0x258] sm:$0xff]
                %328 = vst [vmem:[%s240 + $0x158] sm:$0xff] %v327
                %v329 = vld [vmem:[%s239 + $0x260] sm:$0xff]
                %330 = vst [vmem:[%s240 + $0x160] sm:$0xff] %v329
                %v331 = vld [vmem:[%s239 + $0x268] sm:$0xff]
                %332 = vst [vmem:[%s240 + $0x168] sm:$0xff] %v331
                %v333 = vld [vmem:[%s239 + $0x270] sm:$0xff]
                %334 = vst [vmem:[%s240 + $0x170] sm:$0xff] %v333
                %v335 = vld [vmem:[%s239 + $0x278] sm:$0xff]
                %336 = vst [vmem:[%s240 + $0x178] sm:$0xff] %v335
                %v337 = vld [vmem:[%s239 + $0x300] sm:$0xff]
                %338 = vst [vmem:[%s240 + $0x180] sm:$0xff] %v337
                %v339 = vld [vmem:[%s239 + $0x308] sm:$0xff]
                %340 = vst [vmem:[%s240 + $0x188] sm:$0xff] %v339
                %v341 = vld [vmem:[%s239 + $0x310] sm:$0xff]
                %342 = vst [vmem:[%s240 + $0x190] sm:$0xff] %v341
                %v343 = vld [vmem:[%s239 + $0x318] sm:$0xff]
                %344 = vst [vmem:[%s240 + $0x198] sm:$0xff] %v343
                %v345 = vld [vmem:[%s239 + $0x320] sm:$0xff]
                %346 = vst [vmem:[%s240 + $0x1a0] sm:$0xff] %v345
                %v347 = vld [vmem:[%s239 + $0x328] sm:$0xff]
                %348 = vst [vmem:[%s240 + $0x1a8] sm:$0xff] %v347
                %v349 = vld [vmem:[%s239 + $0x330] sm:$0xff]
                %350 = vst [vmem:[%s240 + $0x1b0] sm:$0xff] %v349
                %v351 = vld [vmem:[%s239 + $0x338] sm:$0xff]
                %352 = vst [vmem:[%s240 + $0x1b8] sm:$0xff] %v351
                %v353 = vld [vmem:[%s239 + $0x340] sm:$0xff]
                %354 = vst [vmem:[%s240 + $0x1c0] sm:$0xff] %v353
                %v355 = vld [vmem:[%s239 + $0x348] sm:$0xff]
                %356 = vst [vmem:[%s240 + $0x1c8] sm:$0xff] %v355
                %v357 = vld [vmem:[%s239 + $0x350] sm:$0xff]
                %358 = vst [vmem:[%s240 + $0x1d0] sm:$0xff] %v357
                %v359 = vld [vmem:[%s239 + $0x358] sm:$0xff]
                %360 = vst [vmem:[%s240 + $0x1d8] sm:$0xff] %v359
                %v361 = vld [vmem:[%s239 + $0x360] sm:$0xff]
                %362 = vst [vmem:[%s240 + $0x1e0] sm:$0xff] %v361
                %v363 = vld [vmem:[%s239 + $0x368] sm:$0xff]
                %364 = vst [vmem:[%s240 + $0x1e8] sm:$0xff] %v363
                %v365 = vld [vmem:[%s239 + $0x370] sm:$0xff]
                %366 = vst [vmem:[%s240 + $0x1f0] sm:$0xff] %v365
                %v367 = vld [vmem:[%s239 + $0x378] sm:$0xff]
                %368 = vst [vmem:[%s240 + $0x1f8] sm:$0xff] %v367
              $region60: #{_lambda_.4} parent=54 // loop_footer
                %s238 = sadd.s32 1, %s234
              $region61: #{_lambda_.4} parent=54 // loop_footer_branch
                %233 = sbr.rel target = $region57
              $region62: #{_lambda_.4} parent=54 // loop_exit
                _
            $region55: #{_lambda_.4} parent=50 // pred_fallthru
              _
            // Predicated region
            $region63: #{_lambda_.4} parent=50 // pred_check
              _
            $region64: #{_lambda_.4} parent=50 // pred_check_branch
              %370 = sbr.rel target = $region66
            $region65: #{_lambda_.4} parent=50 // pred_region
              _
            $region66: #{_lambda_.4} parent=50 // pred_fallthru
              _
          $region51: #{_lambda_.4} parent=46 // pred_fallthru
            _
          %371 = vnop
        $region47: #{_lambda_.4} parent=19 // pred_fallthru
          _
      $region20: #{_lambda_.4} parent=5 // pred_fallthru
        _
      %p372 = scmp.le.s32.totalorder 1, %s9
      %p373 = scmp.lt.s32.totalorder %s9, 3
      %p374 = pnand %p372, %p373
      %p375 = pneg %p374
      // Predicated region
      $region67: #{_lambda_.4} parent=5 // pred_check
        _
      $region68: #{_lambda_.4} parent=5 // pred_check_branch
        %377 = sbr.rel (%p374) target = $region70
      $region69: #{_lambda_.4} parent=5 // pred_region
        %s378 = ssub.s32 %s9, 1
        %s379 = sand.u32 %s43, 1
        %s380 = sand.u32 %s43, 1
        %s381 = smul.addr %s380, 256
        %s382 = scalar_lea.vmem [#allocation2], %s381
        // Predicated region
        $region71: #{_lambda_.4} parent=69 // pred_check
          %p383 = pneg %p56
        $region72: #{_lambda_.4} parent=69 // pred_check_branch
          %385 = sbr.rel (%p383) target = $region74
        $region73: #{_lambda_.4} parent=69 // pred_region
          _
        $region74: #{_lambda_.4} parent=69 // pred_fallthru
          _
        %s386 = sand.u32 %s69, 1
        %s387 = sand.u32 %s69, 1
        %s388 = smul.addr %s387, 512
        %s389 = scalar_lea.vmem [#allocation3], %s388
        // Predicated region
        $region75: #{_lambda_.4} parent=69 // pred_check
          %p390 = pneg %p82
        $region76: #{_lambda_.4} parent=69 // pred_check_branch
          %392 = sbr.rel (%p390) target = $region78
        $region77: #{_lambda_.4} parent=69 // pred_region
          _
        $region78: #{_lambda_.4} parent=69 // pred_fallthru
          _
        %p393 = pneg %p30
        %p394 = pneg %p27
        %s395 = sand.u32 %s43, 1
        %s396 = sand.u32 %s43, 1
        %s397 = smul.addr %s396, 256
        %s398 = scalar_lea.vmem [#allocation2], %s397
        %p399 = pneg %p56
        %p400 = pneg %p53
        %s401 = sand.u32 %s69, 1
        %s402 = sand.u32 %s69, 1
        %s403 = smul.addr %s402, 512
        %s404 = scalar_lea.vmem [#allocation3], %s403
        %p405 = pneg %p82
        %p406 = pneg %p79
        %p407 = pneg %p108
        %p408 = pneg %p105
        %s409 = smul.u32 16, %s14
        %p410 = scmp.lt.s32.totalorder %s409, 31
        %s411 = scalar_select %p410, %s409, 31
        %s412 = smul.addr %s411, 8
        %s413 = scalar_lea.vmem %s3, %s412
        %s414 = smul.u32 16, %s14
        %s415 = smul.u32 16, %s14
        %s416 = smul.u32 16, %s14
        %p417 = scmp.lt.s32.totalorder %s416, 31
        %s418 = scalar_select %p417, %s416, 31
        %s419 = smul.addr %s418, 8
        %s420 = scalar_lea.vmem %s3, %s419
        %s421 = smul.u32 16, %s14
        %v422 = vld [vmem:[%s0] sm:$0xff]
        %v423 = vld [vmem:[%s0 + $0x8] sm:$0xff]
        %v424 = vld [vmem:[%s0 + $0x10] sm:$0xff]
        %v425 = vld [vmem:[%s0 + $0x18] sm:$0xff]
        %v426 = vld [vmem:[%s382] sm:$0xff]
        %v427 = vld [vmem:[%s382 + $0x8] sm:$0xff]
        %v428 = vld [vmem:[%s382 + $0x10] sm:$0xff]
        %v429 = vld [vmem:[%s382 + $0x18] sm:$0xff]
        %v430 = vld [vmem:[%s382 + $0x20] sm:$0xff]
        %v431 = vld [vmem:[%s382 + $0x28] sm:$0xff]
        %v432 = vld [vmem:[%s382 + $0x30] sm:$0xff]
        %v433 = vld [vmem:[%s382 + $0x38] sm:$0xff]
        %v434 = vld [vmem:[%s382 + $0x40] sm:$0xff]
        %v435 = vld [vmem:[%s382 + $0x48] sm:$0xff]
        %v436 = vld [vmem:[%s382 + $0x50] sm:$0xff]
        %v437 = vld [vmem:[%s382 + $0x58] sm:$0xff]
        %v438 = vld [vmem:[%s382 + $0x60] sm:$0xff]
        %v439 = vld [vmem:[%s382 + $0x68] sm:$0xff]
        %v440 = vld [vmem:[%s382 + $0x70] sm:$0xff]
        %v441 = vld [vmem:[%s382 + $0x78] sm:$0xff]
        %v442 = vld [vmem:[%s382 + $0x80] sm:$0xff]
        %v443 = vld [vmem:[%s382 + $0x88] sm:$0xff]
        %v444 = vld [vmem:[%s382 + $0x90] sm:$0xff]
        %v445 = vld [vmem:[%s382 + $0x98] sm:$0xff]
        %v446 = vld [vmem:[%s382 + $0xa0] sm:$0xff]
        %v447 = vld [vmem:[%s382 + $0xa8] sm:$0xff]
        %v448 = vld [vmem:[%s382 + $0xb0] sm:$0xff]
        %v449 = vld [vmem:[%s382 + $0xb8] sm:$0xff]
        %v450 = vld [vmem:[%s382 + $0xc0] sm:$0xff]
        %v451 = vld [vmem:[%s382 + $0xc8] sm:$0xff]
        %v452 = vld [vmem:[%s382 + $0xd0] sm:$0xff]
        %v453 = vld [vmem:[%s382 + $0xd8] sm:$0xff]
        %v454 = vld [vmem:[%s382 + $0xe0] sm:$0xff]
        %v455 = vld [vmem:[%s382 + $0xe8] sm:$0xff]
        %v456 = vld [vmem:[%s382 + $0xf0] sm:$0xff]
        %v457 = vld [vmem:[%s382 + $0xf8] sm:$0xff]
        %vm458 = vcmask 130048
        %v460 = vsel %vm458, %v422, 0
        %v463 = vsel %vm458, %v423, 0
        %v466 = vsel %vm458, %v424, 0
        %v469 = vsel %vm458, %v425, 0
        %471 = vmatpush.msra.mxu0 0.0
        %472 = vmatpush.msra.mxu0 0.0
        %473 = vmatpush.msra.mxu0 0.0
        %474 = vmatpush.msra.mxu0 0.0
        %475 = vmatpush.msra.mxu0 0.0
        %476 = vmatpush.msra.mxu0 0.0
        %477 = vmatpush.msra.mxu0 0.0
        %478 = vmatpush.msra.mxu0 0.0
        %479 = vmatpush.msra.mxu0 0.0
        %480 = vmatpush.msra.mxu0 0.0
        %481 = vmatpush.msra.mxu0 0.0
        %482 = vmatpush.msra.mxu0 0.0
        %483 = vmatpush.msra.mxu0 0.0
        %484 = vmatpush.msra.mxu0 0.0
        %485 = vmatpush.msra.mxu0 %v442
        %486 = vmatpush.msra.mxu0 %v426
        %487 = vmatmul.f32.gmra.mxu0 %v460
        %v488 = vpop.f32.mrf.mxu0
        %v489 = vadd.f32 0.0, %v488
        %490 = vmatmul.f32.gmra.mxu0 %v463
        %v491 = vpop.f32.mrf.mxu0
        %v492 = vadd.f32 0.0, %v491
        %493 = vmatmul.f32.gmra.mxu0 %v466
        %v494 = vpop.f32.mrf.mxu0
        %v495 = vadd.f32 0.0, %v494
        %496 = vmatmul.f32.gmra.mxu0 %v469
        %v497 = vpop.f32.mrf.mxu0
        %v498 = vadd.f32 0.0, %v497
        %499 = vdwg.mxu0
        %500 = vmatpush.msra.mxu0 0.0
        %501 = vmatpush.msra.mxu0 0.0
        %502 = vmatpush.msra.mxu0 0.0
        %503 = vmatpush.msra.mxu0 0.0
        %504 = vmatpush.msra.mxu0 0.0
        %505 = vmatpush.msra.mxu0 0.0
        %506 = vmatpush.msra.mxu0 0.0
        %507 = vmatpush.msra.mxu0 0.0
        %508 = vmatpush.msra.mxu0 0.0
        %509 = vmatpush.msra.mxu0 0.0
        %510 = vmatpush.msra.mxu0 0.0
        %511 = vmatpush.msra.mxu0 0.0
        %512 = vmatpush.msra.mxu0 0.0
        %513 = vmatpush.msra.mxu0 0.0
        %514 = vmatpush.msra.mxu0 %v443
        %515 = vmatpush.msra.mxu0 %v427
        %516 = vmatmul.f32.gmra.mxu0 %v460
        %v517 = vpop.f32.mrf.mxu0
        %v518 = vadd.f32 0.0, %v517
        %519 = vmatmul.f32.gmra.mxu0 %v463
        %v520 = vpop.f32.mrf.mxu0
        %v521 = vadd.f32 0.0, %v520
        %522 = vmatmul.f32.gmra.mxu0 %v466
        %v523 = vpop.f32.mrf.mxu0
        %v524 = vadd.f32 0.0, %v523
        %525 = vmatmul.f32.gmra.mxu0 %v469
        %v526 = vpop.f32.mrf.mxu0
        %v527 = vadd.f32 0.0, %v526
        %528 = vdwg.mxu0
        %529 = vmatpush.msra.mxu0 0.0
        %530 = vmatpush.msra.mxu0 0.0
        %531 = vmatpush.msra.mxu0 0.0
        %532 = vmatpush.msra.mxu0 0.0
        %533 = vmatpush.msra.mxu0 0.0
        %534 = vmatpush.msra.mxu0 0.0
        %535 = vmatpush.msra.mxu0 0.0
        %536 = vmatpush.msra.mxu0 0.0
        %537 = vmatpush.msra.mxu0 0.0
        %538 = vmatpush.msra.mxu0 0.0
        %539 = vmatpush.msra.mxu0 0.0
        %540 = vmatpush.msra.mxu0 0.0
        %541 = vmatpush.msra.mxu0 0.0
        %542 = vmatpush.msra.mxu0 0.0
        %543 = vmatpush.msra.mxu0 %v444
        %544 = vmatpush.msra.mxu0 %v428
        %545 = vmatmul.f32.gmra.mxu0 %v460
        %v546 = vpop.f32.mrf.mxu0
        %v547 = vadd.f32 0.0, %v546
        %548 = vmatmul.f32.gmra.mxu0 %v463
        %v549 = vpop.f32.mrf.mxu0
        %v550 = vadd.f32 0.0, %v549
        %551 = vmatmul.f32.gmra.mxu0 %v466
        %v552 = vpop.f32.mrf.mxu0
        %v553 = vadd.f32 0.0, %v552
        %554 = vmatmul.f32.gmra.mxu0 %v469
        %v555 = vpop.f32.mrf.mxu0
        %v556 = vadd.f32 0.0, %v555
        %557 = vdwg.mxu0
        %558 = vmatpush.msra.mxu0 0.0
        %559 = vmatpush.msra.mxu0 0.0
        %560 = vmatpush.msra.mxu0 0.0
        %561 = vmatpush.msra.mxu0 0.0
        %562 = vmatpush.msra.mxu0 0.0
        %563 = vmatpush.msra.mxu0 0.0
        %564 = vmatpush.msra.mxu0 0.0
        %565 = vmatpush.msra.mxu0 0.0
        %566 = vmatpush.msra.mxu0 0.0
        %567 = vmatpush.msra.mxu0 0.0
        %568 = vmatpush.msra.mxu0 0.0
        %569 = vmatpush.msra.mxu0 0.0
        %570 = vmatpush.msra.mxu0 0.0
        %571 = vmatpush.msra.mxu0 0.0
        %572 = vmatpush.msra.mxu0 %v445
        %573 = vmatpush.msra.mxu0 %v429
        %574 = vmatmul.f32.gmra.mxu0 %v460
        %v575 = vpop.f32.mrf.mxu0
        %v576 = vadd.f32 0.0, %v575
        %577 = vmatmul.f32.gmra.mxu0 %v463
        %v578 = vpop.f32.mrf.mxu0
        %v579 = vadd.f32 0.0, %v578
        %580 = vmatmul.f32.gmra.mxu0 %v466
        %v581 = vpop.f32.mrf.mxu0
        %v582 = vadd.f32 0.0, %v581
        %583 = vmatmul.f32.gmra.mxu0 %v469
        %v584 = vpop.f32.mrf.mxu0
        %v585 = vadd.f32 0.0, %v584
        %586 = vdwg.mxu0
        %587 = vmatpush.msra.mxu0 0.0
        %588 = vmatpush.msra.mxu0 0.0
        %589 = vmatpush.msra.mxu0 0.0
        %590 = vmatpush.msra.mxu0 0.0
        %591 = vmatpush.msra.mxu0 0.0
        %592 = vmatpush.msra.mxu0 0.0
        %593 = vmatpush.msra.mxu0 0.0
        %594 = vmatpush.msra.mxu0 0.0
        %595 = vmatpush.msra.mxu0 0.0
        %596 = vmatpush.msra.mxu0 0.0
        %597 = vmatpush.msra.mxu0 0.0
        %598 = vmatpush.msra.mxu0 0.0
        %599 = vmatpush.msra.mxu0 0.0
        %600 = vmatpush.msra.mxu0 0.0
        %601 = vmatpush.msra.mxu0 %v446
        %602 = vmatpush.msra.mxu0 %v430
        %603 = vmatmul.f32.gmra.mxu0 %v460
        %v604 = vpop.f32.mrf.mxu0
        %v605 = vadd.f32 0.0, %v604
        %606 = vmatmul.f32.gmra.mxu0 %v463
        %v607 = vpop.f32.mrf.mxu0
        %v608 = vadd.f32 0.0, %v607
        %609 = vmatmul.f32.gmra.mxu0 %v466
        %v610 = vpop.f32.mrf.mxu0
        %v611 = vadd.f32 0.0, %v610
        %612 = vmatmul.f32.gmra.mxu0 %v469
        %v613 = vpop.f32.mrf.mxu0
        %v614 = vadd.f32 0.0, %v613
        %615 = vdwg.mxu0
        %616 = vmatpush.msra.mxu0 0.0
        %617 = vmatpush.msra.mxu0 0.0
        %618 = vmatpush.msra.mxu0 0.0
        %619 = vmatpush.msra.mxu0 0.0
        %620 = vmatpush.msra.mxu0 0.0
        %621 = vmatpush.msra.mxu0 0.0
        %622 = vmatpush.msra.mxu0 0.0
        %623 = vmatpush.msra.mxu0 0.0
        %624 = vmatpush.msra.mxu0 0.0
        %625 = vmatpush.msra.mxu0 0.0
        %626 = vmatpush.msra.mxu0 0.0
        %627 = vmatpush.msra.mxu0 0.0
        %628 = vmatpush.msra.mxu0 0.0
        %629 = vmatpush.msra.mxu0 0.0
        %630 = vmatpush.msra.mxu0 %v447
        %631 = vmatpush.msra.mxu0 %v431
        %632 = vmatmul.f32.gmra.mxu0 %v460
        %v633 = vpop.f32.mrf.mxu0
        %v634 = vadd.f32 0.0, %v633
        %635 = vmatmul.f32.gmra.mxu0 %v463
        %v636 = vpop.f32.mrf.mxu0
        %v637 = vadd.f32 0.0, %v636
        %638 = vmatmul.f32.gmra.mxu0 %v466
        %v639 = vpop.f32.mrf.mxu0
        %v640 = vadd.f32 0.0, %v639
        %641 = vmatmul.f32.gmra.mxu0 %v469
        %v642 = vpop.f32.mrf.mxu0
        %v643 = vadd.f32 0.0, %v642
        %644 = vdwg.mxu0
        %645 = vmatpush.msra.mxu0 0.0
        %646 = vmatpush.msra.mxu0 0.0
        %647 = vmatpush.msra.mxu0 0.0
        %648 = vmatpush.msra.mxu0 0.0
        %649 = vmatpush.msra.mxu0 0.0
        %650 = vmatpush.msra.mxu0 0.0
        %651 = vmatpush.msra.mxu0 0.0
        %652 = vmatpush.msra.mxu0 0.0
        %653 = vmatpush.msra.mxu0 0.0
        %654 = vmatpush.msra.mxu0 0.0
        %655 = vmatpush.msra.mxu0 0.0
        %656 = vmatpush.msra.mxu0 0.0
        %657 = vmatpush.msra.mxu0 0.0
        %658 = vmatpush.msra.mxu0 0.0
        %659 = vmatpush.msra.mxu0 %v448
        %660 = vmatpush.msra.mxu0 %v432
        %661 = vmatmul.f32.gmra.mxu0 %v460
        %v662 = vpop.f32.mrf.mxu0
        %v663 = vadd.f32 0.0, %v662
        %664 = vmatmul.f32.gmra.mxu0 %v463
        %v665 = vpop.f32.mrf.mxu0
        %v666 = vadd.f32 0.0, %v665
        %667 = vmatmul.f32.gmra.mxu0 %v466
        %v668 = vpop.f32.mrf.mxu0
        %v669 = vadd.f32 0.0, %v668
        %670 = vmatmul.f32.gmra.mxu0 %v469
        %v671 = vpop.f32.mrf.mxu0
        %v672 = vadd.f32 0.0, %v671
        %673 = vdwg.mxu0
        %674 = vmatpush.msra.mxu0 0.0
        %675 = vmatpush.msra.mxu0 0.0
        %676 = vmatpush.msra.mxu0 0.0
        %677 = vmatpush.msra.mxu0 0.0
        %678 = vmatpush.msra.mxu0 0.0
        %679 = vmatpush.msra.mxu0 0.0
        %680 = vmatpush.msra.mxu0 0.0
        %681 = vmatpush.msra.mxu0 0.0
        %682 = vmatpush.msra.mxu0 0.0
        %683 = vmatpush.msra.mxu0 0.0
        %684 = vmatpush.msra.mxu0 0.0
        %685 = vmatpush.msra.mxu0 0.0
        %686 = vmatpush.msra.mxu0 0.0
        %687 = vmatpush.msra.mxu0 0.0
        %688 = vmatpush.msra.mxu0 %v449
        %689 = vmatpush.msra.mxu0 %v433
        %690 = vmatmul.f32.gmra.mxu0 %v460
        %v691 = vpop.f32.mrf.mxu0
        %v692 = vadd.f32 0.0, %v691
        %693 = vmatmul.f32.gmra.mxu0 %v463
        %v694 = vpop.f32.mrf.mxu0
        %v695 = vadd.f32 0.0, %v694
        %696 = vmatmul.f32.gmra.mxu0 %v466
        %v697 = vpop.f32.mrf.mxu0
        %v698 = vadd.f32 0.0, %v697
        %699 = vmatmul.f32.gmra.mxu0 %v469
        %v700 = vpop.f32.mrf.mxu0
        %v701 = vadd.f32 0.0, %v700
        %702 = vdwg.mxu0
        %703 = vmatpush.msra.mxu0 0.0
        %704 = vmatpush.msra.mxu0 0.0
        %705 = vmatpush.msra.mxu0 0.0
        %706 = vmatpush.msra.mxu0 0.0
        %707 = vmatpush.msra.mxu0 0.0
        %708 = vmatpush.msra.mxu0 0.0
        %709 = vmatpush.msra.mxu0 0.0
        %710 = vmatpush.msra.mxu0 0.0
        %711 = vmatpush.msra.mxu0 0.0
        %712 = vmatpush.msra.mxu0 0.0
        %713 = vmatpush.msra.mxu0 0.0
        %714 = vmatpush.msra.mxu0 0.0
        %715 = vmatpush.msra.mxu0 0.0
        %716 = vmatpush.msra.mxu0 0.0
        %717 = vmatpush.msra.mxu0 %v450
        %718 = vmatpush.msra.mxu0 %v434
        %719 = vmatmul.f32.gmra.mxu0 %v460
        %v720 = vpop.f32.mrf.mxu0
        %v721 = vadd.f32 0.0, %v720
        %722 = vmatmul.f32.gmra.mxu0 %v463
        %v723 = vpop.f32.mrf.mxu0
        %v724 = vadd.f32 0.0, %v723
        %725 = vmatmul.f32.gmra.mxu0 %v466
        %v726 = vpop.f32.mrf.mxu0
        %v727 = vadd.f32 0.0, %v726
        %728 = vmatmul.f32.gmra.mxu0 %v469
        %v729 = vpop.f32.mrf.mxu0
        %v730 = vadd.f32 0.0, %v729
        %731 = vdwg.mxu0
        %732 = vmatpush.msra.mxu0 0.0
        %733 = vmatpush.msra.mxu0 0.0
        %734 = vmatpush.msra.mxu0 0.0
        %735 = vmatpush.msra.mxu0 0.0
        %736 = vmatpush.msra.mxu0 0.0
        %737 = vmatpush.msra.mxu0 0.0
        %738 = vmatpush.msra.mxu0 0.0
        %739 = vmatpush.msra.mxu0 0.0
        %740 = vmatpush.msra.mxu0 0.0
        %741 = vmatpush.msra.mxu0 0.0
        %742 = vmatpush.msra.mxu0 0.0
        %743 = vmatpush.msra.mxu0 0.0
        %744 = vmatpush.msra.mxu0 0.0
        %745 = vmatpush.msra.mxu0 0.0
        %746 = vmatpush.msra.mxu0 %v451
        %747 = vmatpush.msra.mxu0 %v435
        %748 = vmatmul.f32.gmra.mxu0 %v460
        %v749 = vpop.f32.mrf.mxu0
        %v750 = vadd.f32 0.0, %v749
        %751 = vmatmul.f32.gmra.mxu0 %v463
        %v752 = vpop.f32.mrf.mxu0
        %v753 = vadd.f32 0.0, %v752
        %754 = vmatmul.f32.gmra.mxu0 %v466
        %v755 = vpop.f32.mrf.mxu0
        %v756 = vadd.f32 0.0, %v755
        %757 = vmatmul.f32.gmra.mxu0 %v469
        %v758 = vpop.f32.mrf.mxu0
        %v759 = vadd.f32 0.0, %v758
        %760 = vdwg.mxu0
        %761 = vmatpush.msra.mxu0 0.0
        %762 = vmatpush.msra.mxu0 0.0
        %763 = vmatpush.msra.mxu0 0.0
        %764 = vmatpush.msra.mxu0 0.0
        %765 = vmatpush.msra.mxu0 0.0
        %766 = vmatpush.msra.mxu0 0.0
        %767 = vmatpush.msra.mxu0 0.0
        %768 = vmatpush.msra.mxu0 0.0
        %769 = vmatpush.msra.mxu0 0.0
        %770 = vmatpush.msra.mxu0 0.0
        %771 = vmatpush.msra.mxu0 0.0
        %772 = vmatpush.msra.mxu0 0.0
        %773 = vmatpush.msra.mxu0 0.0
        %774 = vmatpush.msra.mxu0 0.0
        %775 = vmatpush.msra.mxu0 %v452
        %776 = vmatpush.msra.mxu0 %v436
        %777 = vmatmul.f32.gmra.mxu0 %v460
        %v778 = vpop.f32.mrf.mxu0
        %v779 = vadd.f32 0.0, %v778
        %780 = vmatmul.f32.gmra.mxu0 %v463
        %v781 = vpop.f32.mrf.mxu0
        %v782 = vadd.f32 0.0, %v781
        %783 = vmatmul.f32.gmra.mxu0 %v466
        %v784 = vpop.f32.mrf.mxu0
        %v785 = vadd.f32 0.0, %v784
        %786 = vmatmul.f32.gmra.mxu0 %v469
        %v787 = vpop.f32.mrf.mxu0
        %v788 = vadd.f32 0.0, %v787
        %789 = vdwg.mxu0
        %790 = vmatpush.msra.mxu0 0.0
        %791 = vmatpush.msra.mxu0 0.0
        %792 = vmatpush.msra.mxu0 0.0
        %793 = vmatpush.msra.mxu0 0.0
        %794 = vmatpush.msra.mxu0 0.0
        %795 = vmatpush.msra.mxu0 0.0
        %796 = vmatpush.msra.mxu0 0.0
        %797 = vmatpush.msra.mxu0 0.0
        %798 = vmatpush.msra.mxu0 0.0
        %799 = vmatpush.msra.mxu0 0.0
        %800 = vmatpush.msra.mxu0 0.0
        %801 = vmatpush.msra.mxu0 0.0
        %802 = vmatpush.msra.mxu0 0.0
        %803 = vmatpush.msra.mxu0 0.0
        %804 = vmatpush.msra.mxu0 %v453
        %805 = vmatpush.msra.mxu0 %v437
        %806 = vmatmul.f32.gmra.mxu0 %v460
        %v807 = vpop.f32.mrf.mxu0
        %v808 = vadd.f32 0.0, %v807
        %809 = vmatmul.f32.gmra.mxu0 %v463
        %v810 = vpop.f32.mrf.mxu0
        %v811 = vadd.f32 0.0, %v810
        %812 = vmatmul.f32.gmra.mxu0 %v466
        %v813 = vpop.f32.mrf.mxu0
        %v814 = vadd.f32 0.0, %v813
        %815 = vmatmul.f32.gmra.mxu0 %v469
        %v816 = vpop.f32.mrf.mxu0
        %v817 = vadd.f32 0.0, %v816
        %818 = vdwg.mxu0
        %819 = vmatpush.msra.mxu0 0.0
        %820 = vmatpush.msra.mxu0 0.0
        %821 = vmatpush.msra.mxu0 0.0
        %822 = vmatpush.msra.mxu0 0.0
        %823 = vmatpush.msra.mxu0 0.0
        %824 = vmatpush.msra.mxu0 0.0
        %825 = vmatpush.msra.mxu0 0.0
        %826 = vmatpush.msra.mxu0 0.0
        %827 = vmatpush.msra.mxu0 0.0
        %828 = vmatpush.msra.mxu0 0.0
        %829 = vmatpush.msra.mxu0 0.0
        %830 = vmatpush.msra.mxu0 0.0
        %831 = vmatpush.msra.mxu0 0.0
        %832 = vmatpush.msra.mxu0 0.0
        %833 = vmatpush.msra.mxu0 %v454
        %834 = vmatpush.msra.mxu0 %v438
        %835 = vmatmul.f32.gmra.mxu0 %v460
        %v836 = vpop.f32.mrf.mxu0
        %v837 = vadd.f32 0.0, %v836
        %838 = vmatmul.f32.gmra.mxu0 %v463
        %v839 = vpop.f32.mrf.mxu0
        %v840 = vadd.f32 0.0, %v839
        %841 = vmatmul.f32.gmra.mxu0 %v466
        %v842 = vpop.f32.mrf.mxu0
        %v843 = vadd.f32 0.0, %v842
        %844 = vmatmul.f32.gmra.mxu0 %v469
        %v845 = vpop.f32.mrf.mxu0
        %v846 = vadd.f32 0.0, %v845
        %847 = vdwg.mxu0
        %848 = vmatpush.msra.mxu0 0.0
        %849 = vmatpush.msra.mxu0 0.0
        %850 = vmatpush.msra.mxu0 0.0
        %851 = vmatpush.msra.mxu0 0.0
        %852 = vmatpush.msra.mxu0 0.0
        %853 = vmatpush.msra.mxu0 0.0
        %854 = vmatpush.msra.mxu0 0.0
        %855 = vmatpush.msra.mxu0 0.0
        %856 = vmatpush.msra.mxu0 0.0
        %857 = vmatpush.msra.mxu0 0.0
        %858 = vmatpush.msra.mxu0 0.0
        %859 = vmatpush.msra.mxu0 0.0
        %860 = vmatpush.msra.mxu0 0.0
        %861 = vmatpush.msra.mxu0 0.0
        %862 = vmatpush.msra.mxu0 %v455
        %863 = vmatpush.msra.mxu0 %v439
        %864 = vmatmul.f32.gmra.mxu0 %v460
        %v865 = vpop.f32.mrf.mxu0
        %v866 = vadd.f32 0.0, %v865
        %867 = vmatmul.f32.gmra.mxu0 %v463
        %v868 = vpop.f32.mrf.mxu0
        %v869 = vadd.f32 0.0, %v868
        %870 = vmatmul.f32.gmra.mxu0 %v466
        %v871 = vpop.f32.mrf.mxu0
        %v872 = vadd.f32 0.0, %v871
        %873 = vmatmul.f32.gmra.mxu0 %v469
        %v874 = vpop.f32.mrf.mxu0
        %v875 = vadd.f32 0.0, %v874
        %876 = vdwg.mxu0
        %877 = vmatpush.msra.mxu0 0.0
        %878 = vmatpush.msra.mxu0 0.0
        %879 = vmatpush.msra.mxu0 0.0
        %880 = vmatpush.msra.mxu0 0.0
        %881 = vmatpush.msra.mxu0 0.0
        %882 = vmatpush.msra.mxu0 0.0
        %883 = vmatpush.msra.mxu0 0.0
        %884 = vmatpush.msra.mxu0 0.0
        %885 = vmatpush.msra.mxu0 0.0
        %886 = vmatpush.msra.mxu0 0.0
        %887 = vmatpush.msra.mxu0 0.0
        %888 = vmatpush.msra.mxu0 0.0
        %889 = vmatpush.msra.mxu0 0.0
        %890 = vmatpush.msra.mxu0 0.0
        %891 = vmatpush.msra.mxu0 %v456
        %892 = vmatpush.msra.mxu0 %v440
        %893 = vmatmul.f32.gmra.mxu0 %v460
        %v894 = vpop.f32.mrf.mxu0
        %v895 = vadd.f32 0.0, %v894
        %896 = vmatmul.f32.gmra.mxu0 %v463
        %v897 = vpop.f32.mrf.mxu0
        %v898 = vadd.f32 0.0, %v897
        %899 = vmatmul.f32.gmra.mxu0 %v466
        %v900 = vpop.f32.mrf.mxu0
        %v901 = vadd.f32 0.0, %v900
        %902 = vmatmul.f32.gmra.mxu0 %v469
        %v903 = vpop.f32.mrf.mxu0
        %v904 = vadd.f32 0.0, %v903
        %905 = vdwg.mxu0
        %906 = vmatpush.msra.mxu0 0.0
        %907 = vmatpush.msra.mxu0 0.0
        %908 = vmatpush.msra.mxu0 0.0
        %909 = vmatpush.msra.mxu0 0.0
        %910 = vmatpush.msra.mxu0 0.0
        %911 = vmatpush.msra.mxu0 0.0
        %912 = vmatpush.msra.mxu0 0.0
        %913 = vmatpush.msra.mxu0 0.0
        %914 = vmatpush.msra.mxu0 0.0
        %915 = vmatpush.msra.mxu0 0.0
        %916 = vmatpush.msra.mxu0 0.0
        %917 = vmatpush.msra.mxu0 0.0
        %918 = vmatpush.msra.mxu0 0.0
        %919 = vmatpush.msra.mxu0 0.0
        %920 = vmatpush.msra.mxu0 %v457
        %921 = vmatpush.msra.mxu0 %v441
        %922 = vmatmul.f32.gmra.mxu0 %v460
        %v923 = vpop.f32.mrf.mxu0
        %v924 = vadd.f32 0.0, %v923
        %925 = vmatmul.f32.gmra.mxu0 %v463
        %v926 = vpop.f32.mrf.mxu0
        %v927 = vadd.f32 0.0, %v926
        %928 = vmatmul.f32.gmra.mxu0 %v466
        %v929 = vpop.f32.mrf.mxu0
        %v930 = vadd.f32 0.0, %v929
        %931 = vmatmul.f32.gmra.mxu0 %v469
        %v932 = vpop.f32.mrf.mxu0
        %v933 = vadd.f32 0.0, %v932
        %934 = vdwg.mxu0
        %v935 = vmax.f32 %v489, %v492
        %v936 = vmax.f32 %v935, %v495
        %v937 = vmax.f32 %v936, %v498
        %v938 = vmax.f32 %v518, %v521
        %v939 = vmax.f32 %v938, %v524
        %v940 = vmax.f32 %v939, %v527
        %v941 = vmax.f32 %v547, %v550
        %v942 = vmax.f32 %v941, %v553
        %v943 = vmax.f32 %v942, %v556
        %v944 = vmax.f32 %v576, %v579
        %v945 = vmax.f32 %v944, %v582
        %v946 = vmax.f32 %v945, %v585
        %v947 = vmax.f32 %v605, %v608
        %v948 = vmax.f32 %v947, %v611
        %v949 = vmax.f32 %v948, %v614
        %v950 = vmax.f32 %v634, %v637
        %v951 = vmax.f32 %v950, %v640
        %v952 = vmax.f32 %v951, %v643
        %v953 = vmax.f32 %v663, %v666
        %v954 = vmax.f32 %v953, %v669
        %v955 = vmax.f32 %v954, %v672
        %v956 = vmax.f32 %v692, %v695
        %v957 = vmax.f32 %v956, %v698
        %v958 = vmax.f32 %v957, %v701
        %v959 = vmax.f32 %v721, %v724
        %v960 = vmax.f32 %v959, %v727
        %v961 = vmax.f32 %v960, %v730
        %v962 = vmax.f32 %v750, %v753
        %v963 = vmax.f32 %v962, %v756
        %v964 = vmax.f32 %v963, %v759
        %v965 = vmax.f32 %v779, %v782
        %v966 = vmax.f32 %v965, %v785
        %v967 = vmax.f32 %v966, %v788
        %v968 = vmax.f32 %v808, %v811
        %v969 = vmax.f32 %v968, %v814
        %v970 = vmax.f32 %v969, %v817
        %v971 = vmax.f32 %v837, %v840
        %v972 = vmax.f32 %v971, %v843
        %v973 = vmax.f32 %v972, %v846
        %v974 = vmax.f32 %v866, %v869
        %v975 = vmax.f32 %v974, %v872
        %v976 = vmax.f32 %v975, %v875
        %v977 = vmax.f32 %v895, %v898
        %v978 = vmax.f32 %v977, %v901
        %v979 = vmax.f32 %v978, %v904
        %v980 = vmax.f32 %v924, %v927
        %v981 = vmax.f32 %v980, %v930
        %v982 = vmax.f32 %v981, %v933
        %v983 = vsub.f32 %v489, %v937
        %v984 = vsub.f32 %v518, %v940
        %v985 = vsub.f32 %v547, %v943
        %v986 = vsub.f32 %v576, %v946
        %v987 = vsub.f32 %v605, %v949
        %v988 = vsub.f32 %v634, %v952
        %v989 = vsub.f32 %v663, %v955
        %v990 = vsub.f32 %v692, %v958
        %v991 = vsub.f32 %v721, %v961
        %v992 = vsub.f32 %v750, %v964
        %v993 = vsub.f32 %v779, %v967
        %v994 = vsub.f32 %v808, %v970
        %v995 = vsub.f32 %v837, %v973
        %v996 = vsub.f32 %v866, %v976
        %v997 = vsub.f32 %v895, %v979
        %v998 = vsub.f32 %v924, %v982
        %v999 = vsub.f32 %v492, %v937
        %v1000 = vsub.f32 %v521, %v940
        %v1001 = vsub.f32 %v550, %v943
        %v1002 = vsub.f32 %v579, %v946
        %v1003 = vsub.f32 %v608, %v949
        %v1004 = vsub.f32 %v637, %v952
        %v1005 = vsub.f32 %v666, %v955
        %v1006 = vsub.f32 %v695, %v958
        %v1007 = vsub.f32 %v724, %v961
        %v1008 = vsub.f32 %v753, %v964
        %v1009 = vsub.f32 %v782, %v967
        %v1010 = vsub.f32 %v811, %v970
        %v1011 = vsub.f32 %v840, %v973
        %v1012 = vsub.f32 %v869, %v976
        %v1013 = vsub.f32 %v898, %v979
        %v1014 = vsub.f32 %v927, %v982
        %v1015 = vsub.f32 %v495, %v937
        %v1016 = vsub.f32 %v524, %v940
        %v1017 = vsub.f32 %v553, %v943
        %v1018 = vsub.f32 %v582, %v946
        %v1019 = vsub.f32 %v611, %v949
        %v1020 = vsub.f32 %v640, %v952
        %v1021 = vsub.f32 %v669, %v955
        %v1022 = vsub.f32 %v698, %v958
        %v1023 = vsub.f32 %v727, %v961
        %v1024 = vsub.f32 %v756, %v964
        %v1025 = vsub.f32 %v785, %v967
        %v1026 = vsub.f32 %v814, %v970
        %v1027 = vsub.f32 %v843, %v973
        %v1028 = vsub.f32 %v872, %v976
        %v1029 = vsub.f32 %v901, %v979
        %v1030 = vsub.f32 %v930, %v982
        %v1031 = vsub.f32 %v498, %v937
        %v1032 = vsub.f32 %v527, %v940
        %v1033 = vsub.f32 %v556, %v943
        %v1034 = vsub.f32 %v585, %v946
        %v1035 = vsub.f32 %v614, %v949
        %v1036 = vsub.f32 %v643, %v952
        %v1037 = vsub.f32 %v672, %v955
        %v1038 = vsub.f32 %v701, %v958
        %v1039 = vsub.f32 %v730, %v961
        %v1040 = vsub.f32 %v759, %v964
        %v1041 = vsub.f32 %v788, %v967
        %v1042 = vsub.f32 %v817, %v970
        %v1043 = vsub.f32 %v846, %v973
        %v1044 = vsub.f32 %v875, %v976
        %v1045 = vsub.f32 %v904, %v979
        %v1046 = vsub.f32 %v933, %v982
        %v1047 = vmul.f32 %v983, 1.442695
        %v1048 = vpow.pop %v1047
        %v1049 = vmul.f32 %v984, 1.442695
        %v1050 = vpow.pop %v1049
        %v1051 = vmul.f32 %v985, 1.442695
        %v1052 = vpow.pop %v1051
        %v1053 = vmul.f32 %v986, 1.442695
        %v1054 = vpow.pop %v1053
        %v1055 = vmul.f32 %v987, 1.442695
        %v1056 = vpow.pop %v1055
        %v1057 = vmul.f32 %v988, 1.442695
        %v1058 = vpow.pop %v1057
        %v1059 = vmul.f32 %v989, 1.442695
        %v1060 = vpow.pop %v1059
        %v1061 = vmul.f32 %v990, 1.442695
        %v1062 = vpow.pop %v1061
        %v1063 = vmul.f32 %v991, 1.442695
        %v1064 = vpow.pop %v1063
        %v1065 = vmul.f32 %v992, 1.442695
        %v1066 = vpow.pop %v1065
        %v1067 = vmul.f32 %v993, 1.442695
        %v1068 = vpow.pop %v1067
        %v1069 = vmul.f32 %v994, 1.442695
        %v1070 = vpow.pop %v1069
        %v1071 = vmul.f32 %v995, 1.442695
        %v1072 = vpow.pop %v1071
        %v1073 = vmul.f32 %v996, 1.442695
        %v1074 = vpow.pop %v1073
        %v1075 = vmul.f32 %v997, 1.442695
        %v1076 = vpow.pop %v1075
        %v1077 = vmul.f32 %v998, 1.442695
        %v1078 = vpow.pop %v1077
        %v1079 = vmul.f32 %v999, 1.442695
        %v1080 = vpow.pop %v1079
        %v1081 = vmul.f32 %v1000, 1.442695
        %v1082 = vpow.pop %v1081
        %v1083 = vmul.f32 %v1001, 1.442695
        %v1084 = vpow.pop %v1083
        %v1085 = vmul.f32 %v1002, 1.442695
        %v1086 = vpow.pop %v1085
        %v1087 = vmul.f32 %v1003, 1.442695
        %v1088 = vpow.pop %v1087
        %v1089 = vmul.f32 %v1004, 1.442695
        %v1090 = vpow.pop %v1089
        %v1091 = vmul.f32 %v1005, 1.442695
        %v1092 = vpow.pop %v1091
        %v1093 = vmul.f32 %v1006, 1.442695
        %v1094 = vpow.pop %v1093
        %v1095 = vmul.f32 %v1007, 1.442695
        %v1096 = vpow.pop %v1095
        %v1097 = vmul.f32 %v1008, 1.442695
        %v1098 = vpow.pop %v1097
        %v1099 = vmul.f32 %v1009, 1.442695
        %v1100 = vpow.pop %v1099
        %v1101 = vmul.f32 %v1010, 1.442695
        %v1102 = vpow.pop %v1101
        %v1103 = vmul.f32 %v1011, 1.442695
        %v1104 = vpow.pop %v1103
        %v1105 = vmul.f32 %v1012, 1.442695
        %v1106 = vpow.pop %v1105
        %v1107 = vmul.f32 %v1013, 1.442695
        %v1108 = vpow.pop %v1107
        %v1109 = vmul.f32 %v1014, 1.442695
        %v1110 = vpow.pop %v1109
        %v1111 = vmul.f32 %v1015, 1.442695
        %v1112 = vpow.pop %v1111
        %v1113 = vmul.f32 %v1016, 1.442695
        %v1114 = vpow.pop %v1113
        %v1115 = vmul.f32 %v1017, 1.442695
        %v1116 = vpow.pop %v1115
        %v1117 = vmul.f32 %v1018, 1.442695
        %v1118 = vpow.pop %v1117
        %v1119 = vmul.f32 %v1019, 1.442695
        %v1120 = vpow.pop %v1119
        %v1121 = vmul.f32 %v1020, 1.442695
        %v1122 = vpow.pop %v1121
        %v1123 = vmul.f32 %v1021, 1.442695
        %v1124 = vpow.pop %v1123
        %v1125 = vmul.f32 %v1022, 1.442695
        %v1126 = vpow.pop %v1125
        %v1127 = vmul.f32 %v1023, 1.442695
        %v1128 = vpow.pop %v1127
        %v1129 = vmul.f32 %v1024, 1.442695
        %v1130 = vpow.pop %v1129
        %v1131 = vmul.f32 %v1025, 1.442695
        %v1132 = vpow.pop %v1131
        %v1133 = vmul.f32 %v1026, 1.442695
        %v1134 = vpow.pop %v1133
        %v1135 = vmul.f32 %v1027, 1.442695
        %v1136 = vpow.pop %v1135
        %v1137 = vmul.f32 %v1028, 1.442695
        %v1138 = vpow.pop %v1137
        %v1139 = vmul.f32 %v1029, 1.442695
        %v1140 = vpow.pop %v1139
        %v1141 = vmul.f32 %v1030, 1.442695
        %v1142 = vpow.pop %v1141
        %v1143 = vmul.f32 %v1031, 1.442695
        %v1144 = vpow.pop %v1143
        %v1145 = vmul.f32 %v1032, 1.442695
        %v1146 = vpow.pop %v1145
        %v1147 = vmul.f32 %v1033, 1.442695
        %v1148 = vpow.pop %v1147
        %v1149 = vmul.f32 %v1034, 1.442695
        %v1150 = vpow.pop %v1149
        %v1151 = vmul.f32 %v1035, 1.442695
        %v1152 = vpow.pop %v1151
        %v1153 = vmul.f32 %v1036, 1.442695
        %v1154 = vpow.pop %v1153
        %v1155 = vmul.f32 %v1037, 1.442695
        %v1156 = vpow.pop %v1155
        %v1157 = vmul.f32 %v1038, 1.442695
        %v1158 = vpow.pop %v1157
        %v1159 = vmul.f32 %v1039, 1.442695
        %v1160 = vpow.pop %v1159
        %v1161 = vmul.f32 %v1040, 1.442695
        %v1162 = vpow.pop %v1161
        %v1163 = vmul.f32 %v1041, 1.442695
        %v1164 = vpow.pop %v1163
        %v1165 = vmul.f32 %v1042, 1.442695
        %v1166 = vpow.pop %v1165
        %v1167 = vmul.f32 %v1043, 1.442695
        %v1168 = vpow.pop %v1167
        %v1169 = vmul.f32 %v1044, 1.442695
        %v1170 = vpow.pop %v1169
        %v1171 = vmul.f32 %v1045, 1.442695
        %v1172 = vpow.pop %v1171
        %v1173 = vmul.f32 %v1046, 1.442695
        %v1174 = vpow.pop %v1173
        %v1175 = vadd.f32 %v1048, %v1080
        %v1176 = vadd.f32 %v1175, %v1112
        %v1177 = vadd.f32 %v1176, %v1144
        %v1178 = vadd.f32 %v1050, %v1082
        %v1179 = vadd.f32 %v1178, %v1114
        %v1180 = vadd.f32 %v1179, %v1146
        %v1181 = vadd.f32 %v1052, %v1084
        %v1182 = vadd.f32 %v1181, %v1116
        %v1183 = vadd.f32 %v1182, %v1148
        %v1184 = vadd.f32 %v1054, %v1086
        %v1185 = vadd.f32 %v1184, %v1118
        %v1186 = vadd.f32 %v1185, %v1150
        %v1187 = vadd.f32 %v1056, %v1088
        %v1188 = vadd.f32 %v1187, %v1120
        %v1189 = vadd.f32 %v1188, %v1152
        %v1190 = vadd.f32 %v1058, %v1090
        %v1191 = vadd.f32 %v1190, %v1122
        %v1192 = vadd.f32 %v1191, %v1154
        %v1193 = vadd.f32 %v1060, %v1092
        %v1194 = vadd.f32 %v1193, %v1124
        %v1195 = vadd.f32 %v1194, %v1156
        %v1196 = vadd.f32 %v1062, %v1094
        %v1197 = vadd.f32 %v1196, %v1126
        %v1198 = vadd.f32 %v1197, %v1158
        %v1199 = vadd.f32 %v1064, %v1096
        %v1200 = vadd.f32 %v1199, %v1128
        %v1201 = vadd.f32 %v1200, %v1160
        %v1202 = vadd.f32 %v1066, %v1098
        %v1203 = vadd.f32 %v1202, %v1130
        %v1204 = vadd.f32 %v1203, %v1162
        %v1205 = vadd.f32 %v1068, %v1100
        %v1206 = vadd.f32 %v1205, %v1132
        %v1207 = vadd.f32 %v1206, %v1164
        %v1208 = vadd.f32 %v1070, %v1102
        %v1209 = vadd.f32 %v1208, %v1134
        %v1210 = vadd.f32 %v1209, %v1166
        %v1211 = vadd.f32 %v1072, %v1104
        %v1212 = vadd.f32 %v1211, %v1136
        %v1213 = vadd.f32 %v1212, %v1168
        %v1214 = vadd.f32 %v1074, %v1106
        %v1215 = vadd.f32 %v1214, %v1138
        %v1216 = vadd.f32 %v1215, %v1170
        %v1217 = vadd.f32 %v1076, %v1108
        %v1218 = vadd.f32 %v1217, %v1140
        %v1219 = vadd.f32 %v1218, %v1172
        %v1220 = vadd.f32 %v1078, %v1110
        %v1221 = vadd.f32 %v1220, %v1142
        %v1222 = vadd.f32 %v1221, %v1174
        %v1223 = vld [vmem:[%s389] sm:$0xff]
        %v1224 = vld [vmem:[%s389 + $0x8] sm:$0xff]
        %v1225 = vld [vmem:[%s389 + $0x10] sm:$0xff]
        %v1226 = vld [vmem:[%s389 + $0x18] sm:$0xff]
        %v1227 = vld [vmem:[%s389 + $0x20] sm:$0xff]
        %v1228 = vld [vmem:[%s389 + $0x28] sm:$0xff]
        %v1229 = vld [vmem:[%s389 + $0x30] sm:$0xff]
        %v1230 = vld [vmem:[%s389 + $0x38] sm:$0xff]
        %v1231 = vld [vmem:[%s389 + $0x40] sm:$0xff]
        %v1232 = vld [vmem:[%s389 + $0x48] sm:$0xff]
        %v1233 = vld [vmem:[%s389 + $0x50] sm:$0xff]
        %v1234 = vld [vmem:[%s389 + $0x58] sm:$0xff]
        %v1235 = vld [vmem:[%s389 + $0x60] sm:$0xff]
        %v1236 = vld [vmem:[%s389 + $0x68] sm:$0xff]
        %v1237 = vld [vmem:[%s389 + $0x70] sm:$0xff]
        %v1238 = vld [vmem:[%s389 + $0x78] sm:$0xff]
        %v1239 = vld [vmem:[%s389 + $0x80] sm:$0xff]
        %v1240 = vld [vmem:[%s389 + $0x88] sm:$0xff]
        %v1241 = vld [vmem:[%s389 + $0x90] sm:$0xff]
        %v1242 = vld [vmem:[%s389 + $0x98] sm:$0xff]
        %v1243 = vld [vmem:[%s389 + $0xa0] sm:$0xff]
        %v1244 = vld [vmem:[%s389 + $0xa8] sm:$0xff]
        %v1245 = vld [vmem:[%s389 + $0xb0] sm:$0xff]
        %v1246 = vld [vmem:[%s389 + $0xb8] sm:$0xff]
        %v1247 = vld [vmem:[%s389 + $0xc0] sm:$0xff]
        %v1248 = vld [vmem:[%s389 + $0xc8] sm:$0xff]
        %v1249 = vld [vmem:[%s389 + $0xd0] sm:$0xff]
        %v1250 = vld [vmem:[%s389 + $0xd8] sm:$0xff]
        %v1251 = vld [vmem:[%s389 + $0xe0] sm:$0xff]
        %v1252 = vld [vmem:[%s389 + $0xe8] sm:$0xff]
        %v1253 = vld [vmem:[%s389 + $0xf0] sm:$0xff]
        %v1254 = vld [vmem:[%s389 + $0xf8] sm:$0xff]
        %v1255 = vld [vmem:[%s389 + $0x100] sm:$0xff]
        %v1256 = vld [vmem:[%s389 + $0x108] sm:$0xff]
        %v1257 = vld [vmem:[%s389 + $0x110] sm:$0xff]
        %v1258 = vld [vmem:[%s389 + $0x118] sm:$0xff]
        %v1259 = vld [vmem:[%s389 + $0x120] sm:$0xff]
        %v1260 = vld [vmem:[%s389 + $0x128] sm:$0xff]
        %v1261 = vld [vmem:[%s389 + $0x130] sm:$0xff]
        %v1262 = vld [vmem:[%s389 + $0x138] sm:$0xff]
        %v1263 = vld [vmem:[%s389 + $0x140] sm:$0xff]
        %v1264 = vld [vmem:[%s389 + $0x148] sm:$0xff]
        %v1265 = vld [vmem:[%s389 + $0x150] sm:$0xff]
        %v1266 = vld [vmem:[%s389 + $0x158] sm:$0xff]
        %v1267 = vld [vmem:[%s389 + $0x160] sm:$0xff]
        %v1268 = vld [vmem:[%s389 + $0x168] sm:$0xff]
        %v1269 = vld [vmem:[%s389 + $0x170] sm:$0xff]
        %v1270 = vld [vmem:[%s389 + $0x178] sm:$0xff]
        %v1271 = vld [vmem:[%s389 + $0x180] sm:$0xff]
        %v1272 = vld [vmem:[%s389 + $0x188] sm:$0xff]
        %v1273 = vld [vmem:[%s389 + $0x190] sm:$0xff]
        %v1274 = vld [vmem:[%s389 + $0x198] sm:$0xff]
        %v1275 = vld [vmem:[%s389 + $0x1a0] sm:$0xff]
        %v1276 = vld [vmem:[%s389 + $0x1a8] sm:$0xff]
        %v1277 = vld [vmem:[%s389 + $0x1b0] sm:$0xff]
        %v1278 = vld [vmem:[%s389 + $0x1b8] sm:$0xff]
        %v1279 = vld [vmem:[%s389 + $0x1c0] sm:$0xff]
        %v1280 = vld [vmem:[%s389 + $0x1c8] sm:$0xff]
        %v1281 = vld [vmem:[%s389 + $0x1d0] sm:$0xff]
        %v1282 = vld [vmem:[%s389 + $0x1d8] sm:$0xff]
        %v1283 = vld [vmem:[%s389 + $0x1e0] sm:$0xff]
        %v1284 = vld [vmem:[%s389 + $0x1e8] sm:$0xff]
        %v1285 = vld [vmem:[%s389 + $0x1f0] sm:$0xff]
        %v1286 = vld [vmem:[%s389 + $0x1f8] sm:$0xff]
        %v1287 = vmul.f32 %v1048, %v1223
        %v1288 = vmul.f32 %v1050, %v1224
        %v1289 = vmul.f32 %v1052, %v1225
        %v1290 = vmul.f32 %v1054, %v1226
        %v1291 = vmul.f32 %v1056, %v1227
        %v1292 = vmul.f32 %v1058, %v1228
        %v1293 = vmul.f32 %v1060, %v1229
        %v1294 = vmul.f32 %v1062, %v1230
        %v1295 = vmul.f32 %v1064, %v1231
        %v1296 = vmul.f32 %v1066, %v1232
        %v1297 = vmul.f32 %v1068, %v1233
        %v1298 = vmul.f32 %v1070, %v1234
        %v1299 = vmul.f32 %v1072, %v1235
        %v1300 = vmul.f32 %v1074, %v1236
        %v1301 = vmul.f32 %v1076, %v1237
        %v1302 = vmul.f32 %v1078, %v1238
        %v1303 = vmul.f32 %v1080, %v1239
        %v1304 = vmul.f32 %v1082, %v1240
        %v1305 = vmul.f32 %v1084, %v1241
        %v1306 = vmul.f32 %v1086, %v1242
        %v1307 = vmul.f32 %v1088, %v1243
        %v1308 = vmul.f32 %v1090, %v1244
        %v1309 = vmul.f32 %v1092, %v1245
        %v1310 = vmul.f32 %v1094, %v1246
        %v1311 = vmul.f32 %v1096, %v1247
        %v1312 = vmul.f32 %v1098, %v1248
        %v1313 = vmul.f32 %v1100, %v1249
        %v1314 = vmul.f32 %v1102, %v1250
        %v1315 = vmul.f32 %v1104, %v1251
        %v1316 = vmul.f32 %v1106, %v1252
        %v1317 = vmul.f32 %v1108, %v1253
        %v1318 = vmul.f32 %v1110, %v1254
        %v1319 = vmul.f32 %v1112, %v1255
        %v1320 = vmul.f32 %v1114, %v1256
        %v1321 = vmul.f32 %v1116, %v1257
        %v1322 = vmul.f32 %v1118, %v1258
        %v1323 = vmul.f32 %v1120, %v1259
        %v1324 = vmul.f32 %v1122, %v1260
        %v1325 = vmul.f32 %v1124, %v1261
        %v1326 = vmul.f32 %v1126, %v1262
        %v1327 = vmul.f32 %v1128, %v1263
        %v1328 = vmul.f32 %v1130, %v1264
        %v1329 = vmul.f32 %v1132, %v1265
        %v1330 = vmul.f32 %v1134, %v1266
        %v1331 = vmul.f32 %v1136, %v1267
        %v1332 = vmul.f32 %v1138, %v1268
        %v1333 = vmul.f32 %v1140, %v1269
        %v1334 = vmul.f32 %v1142, %v1270
        %v1335 = vmul.f32 %v1144, %v1271
        %v1336 = vmul.f32 %v1146, %v1272
        %v1337 = vmul.f32 %v1148, %v1273
        %v1338 = vmul.f32 %v1150, %v1274
        %v1339 = vmul.f32 %v1152, %v1275
        %v1340 = vmul.f32 %v1154, %v1276
        %v1341 = vmul.f32 %v1156, %v1277
        %v1342 = vmul.f32 %v1158, %v1278
        %v1343 = vmul.f32 %v1160, %v1279
        %v1344 = vmul.f32 %v1162, %v1280
        %v1345 = vmul.f32 %v1164, %v1281
        %v1346 = vmul.f32 %v1166, %v1282
        %v1347 = vmul.f32 %v1168, %v1283
        %v1348 = vmul.f32 %v1170, %v1284
        %v1349 = vmul.f32 %v1172, %v1285
        %v1350 = vmul.f32 %v1174, %v1286
        %v1351 = vadd.f32 %v1287, %v1303
        %v1352 = vadd.f32 %v1351, %v1319
        %v1353 = vadd.f32 %v1352, %v1335
        %v1354 = vadd.f32 %v1288, %v1304
        %v1355 = vadd.f32 %v1354, %v1320
        %v1356 = vadd.f32 %v1355, %v1336
        %v1357 = vadd.f32 %v1289, %v1305
        %v1358 = vadd.f32 %v1357, %v1321
        %v1359 = vadd.f32 %v1358, %v1337
        %v1360 = vadd.f32 %v1290, %v1306
        %v1361 = vadd.f32 %v1360, %v1322
        %v1362 = vadd.f32 %v1361, %v1338
        %v1363 = vadd.f32 %v1291, %v1307
        %v1364 = vadd.f32 %v1363, %v1323
        %v1365 = vadd.f32 %v1364, %v1339
        %v1366 = vadd.f32 %v1292, %v1308
        %v1367 = vadd.f32 %v1366, %v1324
        %v1368 = vadd.f32 %v1367, %v1340
        %v1369 = vadd.f32 %v1293, %v1309
        %v1370 = vadd.f32 %v1369, %v1325
        %v1371 = vadd.f32 %v1370, %v1341
        %v1372 = vadd.f32 %v1294, %v1310
        %v1373 = vadd.f32 %v1372, %v1326
        %v1374 = vadd.f32 %v1373, %v1342
        %v1375 = vadd.f32 %v1295, %v1311
        %v1376 = vadd.f32 %v1375, %v1327
        %v1377 = vadd.f32 %v1376, %v1343
        %v1378 = vadd.f32 %v1296, %v1312
        %v1379 = vadd.f32 %v1378, %v1328
        %v1380 = vadd.f32 %v1379, %v1344
        %v1381 = vadd.f32 %v1297, %v1313
        %v1382 = vadd.f32 %v1381, %v1329
        %v1383 = vadd.f32 %v1382, %v1345
        %v1384 = vadd.f32 %v1298, %v1314
        %v1385 = vadd.f32 %v1384, %v1330
        %v1386 = vadd.f32 %v1385, %v1346
        %v1387 = vadd.f32 %v1299, %v1315
        %v1388 = vadd.f32 %v1387, %v1331
        %v1389 = vadd.f32 %v1388, %v1347
        %v1390 = vadd.f32 %v1300, %v1316
        %v1391 = vadd.f32 %v1390, %v1332
        %v1392 = vadd.f32 %v1391, %v1348
        %v1393 = vadd.f32 %v1301, %v1317
        %v1394 = vadd.f32 %v1393, %v1333
        %v1395 = vadd.f32 %v1394, %v1349
        %v1396 = vadd.f32 %v1302, %v1318
        %v1397 = vadd.f32 %v1396, %v1334
        %v1398 = vadd.f32 %v1397, %v1350
        %v1399 = vrcp.pop %v1177
        %v1400 = vrcp.pop %v1180
        %v1401 = vrcp.pop %v1183
        %v1402 = vrcp.pop %v1186
        %v1403 = vrcp.pop %v1189
        %v1404 = vrcp.pop %v1192
        %v1405 = vrcp.pop %v1195
        %v1406 = vrcp.pop %v1198
        %v1407 = vrcp.pop %v1201
        %v1408 = vrcp.pop %v1204
        %v1409 = vrcp.pop %v1207
        %v1410 = vrcp.pop %v1210
        %v1411 = vrcp.pop %v1213
        %v1412 = vrcp.pop %v1216
        %v1413 = vrcp.pop %v1219
        %v1414 = vrcp.pop %v1222
        %v1415 = vmul.f32 %v1353, %v1399
        %v1416 = vmul.f32 %v1356, %v1400
        %v1417 = vmul.f32 %v1359, %v1401
        %v1418 = vmul.f32 %v1362, %v1402
        %v1419 = vmul.f32 %v1365, %v1403
        %v1420 = vmul.f32 %v1368, %v1404
        %v1421 = vmul.f32 %v1371, %v1405
        %v1422 = vmul.f32 %v1374, %v1406
        %v1423 = vmul.f32 %v1377, %v1407
        %v1424 = vmul.f32 %v1380, %v1408
        %v1425 = vmul.f32 %v1383, %v1409
        %v1426 = vmul.f32 %v1386, %v1410
        %v1427 = vmul.f32 %v1389, %v1411
        %v1428 = vmul.f32 %v1392, %v1412
        %v1429 = vmul.f32 %v1395, %v1413
        %v1430 = vmul.f32 %v1398, %v1414
        %1431 = vst [vmem:[%s420] sm:$0xff] %v1415
        %1432 = vst [vmem:[%s420 + $0x8] sm:$0xff] %v1416
        %1433 = vst [vmem:[%s420 + $0x10] sm:$0xff] %v1417
        %1434 = vst [vmem:[%s420 + $0x18] sm:$0xff] %v1418
        %1435 = vst [vmem:[%s420 + $0x20] sm:$0xff] %v1419
        %1436 = vst [vmem:[%s420 + $0x28] sm:$0xff] %v1420
        %1437 = vst [vmem:[%s420 + $0x30] sm:$0xff] %v1421
        %1438 = vst [vmem:[%s420 + $0x38] sm:$0xff] %v1422
        %1439 = vst [vmem:[%s420 + $0x40] sm:$0xff] %v1423
        %1440 = vst [vmem:[%s420 + $0x48] sm:$0xff] %v1424
        %1441 = vst [vmem:[%s420 + $0x50] sm:$0xff] %v1425
        %1442 = vst [vmem:[%s420 + $0x58] sm:$0xff] %v1426
        %1443 = vst [vmem:[%s420 + $0x60] sm:$0xff] %v1427
        %1444 = vst [vmem:[%s420 + $0x68] sm:$0xff] %v1428
        %1445 = vst [vmem:[%s420 + $0x70] sm:$0xff] %v1429
        %1446 = vst [vmem:[%s420 + $0x78] sm:$0xff] %v1430
        %s1447 = smul.u32 16, %s14
        %p1448 = scmp.lt.s32.totalorder %s1447, 31
        %s1449 = scalar_select %p1448, %s1447, 31
        %s1450 = smul.addr %s1449, 8
        %s1451 = scalar_lea.vmem %s3, %s1450
        // Predicated region
        $region79: #{_lambda_.4} parent=69 // pred_check
          %p1452 = pneg %p105
        $region80: #{_lambda_.4} parent=69 // pred_check_branch
          %1454 = sbr.rel (%p1452) target = $region82
        $region81: #{_lambda_.4} parent=69 // pred_region
          %s1455 = smul.u32 16, %s14
        $region82: #{_lambda_.4} parent=69 // pred_fallthru
          _
      $region70: #{_lambda_.4} parent=5 // pred_fallthru
        _
      %p1456 = scmp.le.s32.totalorder 2, %s9
      // Predicated region
      $region83: #{_lambda_.4} parent=5 // pred_check
        %p1457 = pneg %p1456
      $region84: #{_lambda_.4} parent=5 // pred_check_branch
        %1459 = sbr.rel (%p1457) target = $region86
      $region85: #{_lambda_.4} parent=5 // pred_region
        %s1460 = ssub.s32 %s9, 2
        // Predicated region
        $region87: #{_lambda_.4} parent=85 // pred_check
          %p1461 = pneg %p111
        $region88: #{_lambda_.4} parent=85 // pred_check_branch
          %1463 = sbr.rel (%p1461) target = $region90
        $region89: #{_lambda_.4} parent=85 // pred_region
          %s1464 = smul.u32 16, %s15
          %p1465 = scmp.lt.s32.totalorder %s1464, 31
          %s1466 = scalar_select %p1465, %s1464, 31
          %s1467 = smul.addr %s1466, 8
          %s1468 = scalar_lea.vmem %s3, %s1467
        $region90: #{_lambda_.4} parent=85 // pred_fallthru
          _
      $region86: #{_lambda_.4} parent=5 // pred_fallthru
        _
    $region6: #{_lambda_.4} parent=1 // loop_footer
      %s13 = sadd.s32 1, %s9
    $region7: #{_lambda_.4} parent=1 // loop_footer_branch
      %8 = sbr.rel target = $region3
    $region8: #{_lambda_.4} parent=1 // loop_exit
      _

// kernel: reverse.7
$region0: #{reverse.7}
  %s0 = inlined_call_operand.vmem [shape: f32[2,4,16,256], index: 0, kind: input, shape index: {}]
  %s1 = inlined_call_operand.vmem [shape: f32[2,4,16,256], index: 1, kind: output, shape index: {}]
  %v2 = vlaneseq
  %v3 = vsub.s32 127, %v2
  %4 = vset.pattern.permute.xlu0 %v3
  $region1: #{reverse.7} parent=0
    #allocation0 [shape = 'u8[131072]{0}', space=vmem, size = 0x20000, scoped, tag = 'operand span for operand 0']
    #allocation1 [shape = 'u8[131072]{0}', space=vmem, size = 0x20000, scoped, tag = 'operand span for operand 1']
    loop: start=0, step=1, limit=4
    $region2: #{reverse.7} parent=1 // loop_pre_header
      _
    $region3: #{reverse.7} parent=1 // loop_header
      %s6 = sphi 0, %s10
      %p7 = scmp.ge.s32.totalorder %s6, 4
      %s13 = sphi 0, %s39
      %s14 = sphi 0, %s35
      %s15 = sphi 0, %s31
      %s16 = sphi 0, %s27
      %s17 = sphi 0, %s13
      %s18 = sphi 0, %s14
      %s19 = sphi 0, %s15
      %s20 = sphi 0, %s16
      %s21 = sphi 0, %s17
      %s22 = sphi 0, %s18
      %s23 = sphi 0, %s19
      %s24 = sphi 0, %s20
    $region4: #{reverse.7} parent=1 // loop_header_branch
      %9 = sbr.rel (%p7) target = $region8
    $region5: #{reverse.7} parent=1 // loop_body
      %s11 = ssub.s32 %s6, 1
      %s12 = ssub.s32 %s6, 2
      %s25 = sadd.s32 1, %s16
      %p26 = scmp.ge.s32.totalorder %s25, 2
      %s27 = scalar_select %p26, 0, %s25
      %s28 = sadd.s32 1, %s15
      %s29 = scalar_select %p26, %s28, %s15
      %p30 = scmp.ge.s32.totalorder %s29, 1
      %s31 = scalar_select %p30, 0, %s29
      %s32 = sadd.s32 1, %s14
      %s33 = scalar_select %p30, %s32, %s14
      %p34 = scmp.ge.s32.totalorder %s33, 1
      %s35 = scalar_select %p34, 0, %s33
      %s36 = sadd.s32 1, %s13
      %s37 = scalar_select %p34, %s36, %s13
      %p38 = scmp.ge.s32.totalorder %s37, 1
      %s39 = scalar_select %p38, 0, %s37
      %p40 = scmp.le.s32.totalorder 1, %s6
      %p41 = scmp.lt.s32.totalorder %s6, 3
      %p42 = pnand %p40, %p41
      %p43 = pneg %p42
      // Predicated region
      $region9: #{reverse.7} parent=5 // pred_check
        _
      $region10: #{reverse.7} parent=5 // pred_check_branch
        %45 = sbr.rel (%p42) target = $region12
      $region11: #{reverse.7} parent=5 // pred_region
        %s46 = ssub.s32 %s6, 1
      $region12: #{reverse.7} parent=5 // pred_fallthru
        _
      %p47 = scmp.lt.s32.totalorder %s6, 2
      // Predicated region
      $region13: #{reverse.7} parent=5 // pred_check
        %p48 = pneg %p47
      $region14: #{reverse.7} parent=5 // pred_check_branch
        %50 = sbr.rel (%p48) target = $region16
      $region15: #{reverse.7} parent=5 // pred_region
        %s51 = sand.u32 %s6, 1
        %s52 = sand.u32 %s6, 1
        %s53 = smul.addr %s52, 128
        %s54 = scalar_lea.vmem [#allocation0], %s53
        %s55 = ssub.s32 1, %s16
        %s56 = smul.u32 2, %s13
        %s57 = smul.u32 4, %s14
        %s58 = smul.u32 2, %s15
        %s59 = smul.addr %s58, 2
        %s60 = sadd.s32 %s55, %s59
        %s61 = smul.addr %s57, 4
        %s62 = sadd.s32 %s60, %s61
        %s63 = smul.addr %s56, 16
        %s64 = sadd.s32 %s62, %s63
        %s65 = smul.addr %s64, 8
        %s66 = scalar_lea.vmem %s0, %s65
        // Predicated region
        $region17: #{reverse.7} parent=15 // pred_check
          _
        $region18: #{reverse.7} parent=15 // pred_check_branch
          %68 = sbr.rel (0) target = $region20
        $region19: #{reverse.7} parent=15 // pred_region
          // Predicated region
          $region21: #{reverse.7} parent=19 // pred_check
            _
          $region22: #{reverse.7} parent=19 // pred_check_branch
            %70 = sbr.rel (0) target = $region24
          $region23: #{reverse.7} parent=19 // pred_region
            // Predicated region
            $region36: #{reverse.7} parent=23 // pred_check
              _
            $region37: #{reverse.7} parent=23 // pred_check_branch
              %116 = sbr.rel (0) target = $region39
            $region38: #{reverse.7} parent=23 // pred_region
              loop: start=0, step=1, limit=1
              $region40: #{reverse.7} parent=38 // loop_pre_header
                _
              $region41: #{reverse.7} parent=38 // loop_header
                %s118 = sphi 0, %s122
                %p119 = scmp.ge.s32.totalorder %s118, 1
                %s123 = sphi %s66, %s66
                %s124 = sphi %s54, %s54
              $region42: #{reverse.7} parent=38 // loop_header_branch
                %121 = sbr.rel (%p119) target = $region46
              $region43: #{reverse.7} parent=38 // loop_body
                %v125 = vld [vmem:[%s123] sm:$0xff]
                %126 = vst [vmem:[%s124] sm:$0xff] %v125
                %v127 = vld [vmem:[%s123 + $0x10] sm:$0xff]
                %128 = vst [vmem:[%s124 + $0x8] sm:$0xff] %v127
                %v129 = vld [vmem:[%s123 + $0x20] sm:$0xff]
                %130 = vst [vmem:[%s124 + $0x10] sm:$0xff] %v129
                %v131 = vld [vmem:[%s123 + $0x30] sm:$0xff]
                %132 = vst [vmem:[%s124 + $0x18] sm:$0xff] %v131
                %v133 = vld [vmem:[%s123 + $0x40] sm:$0xff]
                %134 = vst [vmem:[%s124 + $0x20] sm:$0xff] %v133
                %v135 = vld [vmem:[%s123 + $0x50] sm:$0xff]
                %136 = vst [vmem:[%s124 + $0x28] sm:$0xff] %v135
                %v137 = vld [vmem:[%s123 + $0x60] sm:$0xff]
                %138 = vst [vmem:[%s124 + $0x30] sm:$0xff] %v137
                %v139 = vld [vmem:[%s123 + $0x70] sm:$0xff]
                %140 = vst [vmem:[%s124 + $0x38] sm:$0xff] %v139
                %v141 = vld [vmem:[%s123 + $0x80] sm:$0xff]
                %142 = vst [vmem:[%s124 + $0x40] sm:$0xff] %v141
                %v143 = vld [vmem:[%s123 + $0x90] sm:$0xff]
                %144 = vst [vmem:[%s124 + $0x48] sm:$0xff] %v143
                %v145 = vld [vmem:[%s123 + $0xa0] sm:$0xff]
                %146 = vst [vmem:[%s124 + $0x50] sm:$0xff] %v145
                %v147 = vld [vmem:[%s123 + $0xb0] sm:$0xff]
                %148 = vst [vmem:[%s124 + $0x58] sm:$0xff] %v147
                %v149 = vld [vmem:[%s123 + $0xc0] sm:$0xff]
                %150 = vst [vmem:[%s124 + $0x60] sm:$0xff] %v149
                %v151 = vld [vmem:[%s123 + $0xd0] sm:$0xff]
                %152 = vst [vmem:[%s124 + $0x68] sm:$0xff] %v151
                %v153 = vld [vmem:[%s123 + $0xe0] sm:$0xff]
                %154 = vst [vmem:[%s124 + $0x70] sm:$0xff] %v153
                %v155 = vld [vmem:[%s123 + $0xf0] sm:$0xff]
                %156 = vst [vmem:[%s124 + $0x78] sm:$0xff] %v155
              $region44: #{reverse.7} parent=38 // loop_footer
                %s122 = sadd.s32 1, %s118
              $region45: #{reverse.7} parent=38 // loop_footer_branch
                %117 = sbr.rel target = $region41
              $region46: #{reverse.7} parent=38 // loop_exit
                _
            $region39: #{reverse.7} parent=23 // pred_fallthru
              _
            // Predicated region
            $region47: #{reverse.7} parent=23 // pred_check
              _
            $region48: #{reverse.7} parent=23 // pred_check_branch
              %158 = sbr.rel target = $region50
            $region49: #{reverse.7} parent=23 // pred_region
              _
            $region50: #{reverse.7} parent=23 // pred_fallthru
              _
          $region24: #{reverse.7} parent=19 // pred_fallthru
            _
          // Predicated region
          $region25: #{reverse.7} parent=19 // pred_check
            _
          $region26: #{reverse.7} parent=19 // pred_check_branch
            %72 = sbr.rel target = $region28
          $region27: #{reverse.7} parent=19 // pred_region
            %s74 = ssub.s32 256, 1
            loop: start=0, step=1, limit=1
            $region29: #{reverse.7} parent=27 // loop_pre_header
              _
            $region30: #{reverse.7} parent=27 // loop_header
              %s76 = sphi 0, %s80
              %p77 = scmp.ge.s32.totalorder %s76, 1
              %s81 = sphi %s66, %s66
              %s82 = sphi %s54, %s54
            $region31: #{reverse.7} parent=27 // loop_header_branch
              %79 = sbr.rel (%p77) target = $region35
            $region32: #{reverse.7} parent=27 // loop_body
              %v83 = vld [vmem:[%s81] sm:%s74]
              %84 = vst [vmem:[%s82] sm:%s74] %v83
              %v85 = vld [vmem:[%s81 + $0x10] sm:%s74]
              %86 = vst [vmem:[%s82 + $0x8] sm:%s74] %v85
              %v87 = vld [vmem:[%s81 + $0x20] sm:%s74]
              %88 = vst [vmem:[%s82 + $0x10] sm:%s74] %v87
              %v89 = vld [vmem:[%s81 + $0x30] sm:%s74]
              %90 = vst [vmem:[%s82 + $0x18] sm:%s74] %v89
              %v91 = vld [vmem:[%s81 + $0x40] sm:%s74]
              %92 = vst [vmem:[%s82 + $0x20] sm:%s74] %v91
              %v93 = vld [vmem:[%s81 + $0x50] sm:%s74]
              %94 = vst [vmem:[%s82 + $0x28] sm:%s74] %v93
              %v95 = vld [vmem:[%s81 + $0x60] sm:%s74]
              %96 = vst [vmem:[%s82 + $0x30] sm:%s74] %v95
              %v97 = vld [vmem:[%s81 + $0x70] sm:%s74]
              %98 = vst [vmem:[%s82 + $0x38] sm:%s74] %v97
              %v99 = vld [vmem:[%s81 + $0x80] sm:%s74]
              %100 = vst [vmem:[%s82 + $0x40] sm:%s74] %v99
              %v101 = vld [vmem:[%s81 + $0x90] sm:%s74]
              %102 = vst [vmem:[%s82 + $0x48] sm:%s74] %v101
              %v103 = vld [vmem:[%s81 + $0xa0] sm:%s74]
              %104 = vst [vmem:[%s82 + $0x50] sm:%s74] %v103
              %v105 = vld [vmem:[%s81 + $0xb0] sm:%s74]
              %106 = vst [vmem:[%s82 + $0x58] sm:%s74] %v105
              %v107 = vld [vmem:[%s81 + $0xc0] sm:%s74]
              %108 = vst [vmem:[%s82 + $0x60] sm:%s74] %v107
              %v109 = vld [vmem:[%s81 + $0xd0] sm:%s74]
              %110 = vst [vmem:[%s82 + $0x68] sm:%s74] %v109
              %v111 = vld [vmem:[%s81 + $0xe0] sm:%s74]
              %112 = vst [vmem:[%s82 + $0x70] sm:%s74] %v111
              %v113 = vld [vmem:[%s81 + $0xf0] sm:%s74]
              %114 = vst [vmem:[%s82 + $0x78] sm:%s74] %v113
            $region33: #{reverse.7} parent=27 // loop_footer
              %s80 = sadd.s32 1, %s76
            $region34: #{reverse.7} parent=27 // loop_footer_branch
              %75 = sbr.rel target = $region30
            $region35: #{reverse.7} parent=27 // loop_exit
              _
          $region28: #{reverse.7} parent=19 // pred_fallthru
            _
        $region20: #{reverse.7} parent=15 // pred_fallthru
          _
        %159 = vnop
      $region16: #{reverse.7} parent=5 // pred_fallthru
        _
      %p160 = scmp.le.s32.totalorder 1, %s6
      %p161 = scmp.lt.s32.totalorder %s6, 3
      %p162 = pnand %p160, %p161
      %p163 = pneg %p162
      // Predicated region
      $region51: #{reverse.7} parent=5 // pred_check
        _
      $region52: #{reverse.7} parent=5 // pred_check_branch
        %165 = sbr.rel (%p162) target = $region54
      $region53: #{reverse.7} parent=5 // pred_region
        %s166 = ssub.s32 %s6, 1
        %s167 = sand.u32 %s11, 1
        %s168 = sand.u32 %s11, 1
        %s169 = smul.addr %s168, 128
        %s170 = scalar_lea.vmem [#allocation0], %s169
        %s171 = sand.u32 %s11, 1
        %s172 = sand.u32 %s11, 1
        %s173 = smul.addr %s172, 128
        %s174 = scalar_lea.vmem [#allocation0], %s173
        %s175 = sand.u32 %s11, 1
        %s176 = sand.u32 %s11, 1
        %s177 = smul.addr %s176, 128
        %s178 = scalar_lea.vmem [#allocation1], %s177
        %s179 = ssub.s32 1, %s20
        %s180 = smul.u32 2, %s17
        %s181 = smul.u32 4, %s18
        %s182 = smul.u32 2, %s19
        %s183 = smul.u32 2, %s17
        %s184 = smul.u32 4, %s18
        %s185 = smul.u32 2, %s19
        %v186 = vld [vmem:[%s170] sm:$0xff]
        %187 = vperm.xlu0 %4, %v186
        %v188 = vpop.permute.xlu0 %187
        %189 = vst [vmem:[%s178] sm:$0xff] %v188
        %s190 = scalar_lea.vmem %s178, 8 [#allocation1]
        %s191 = scalar_lea.vmem %s170, 8 [#allocation0]
        %v192 = vld [vmem:[%s191] sm:$0xff]
        %193 = vperm.xlu0 %4, %v192
        %v194 = vpop.permute.xlu0 %193
        %195 = vst [vmem:[%s190] sm:$0xff] %v194
        %s196 = scalar_lea.vmem %s178, 16 [#allocation1]
        %s197 = scalar_lea.vmem %s170, 16 [#allocation0]
        %v198 = vld [vmem:[%s197] sm:$0xff]
        %199 = vperm.xlu0 %4, %v198
        %v200 = vpop.permute.xlu0 %199
        %201 = vst [vmem:[%s196] sm:$0xff] %v200
        %s202 = scalar_lea.vmem %s196, 8 [#allocation1]
        %s203 = scalar_lea.vmem %s197, 8 [#allocation0]
        %v204 = vld [vmem:[%s203] sm:$0xff]
        %205 = vperm.xlu0 %4, %v204
        %v206 = vpop.permute.xlu0 %205
        %207 = vst [vmem:[%s202] sm:$0xff] %v206
        %s208 = scalar_lea.vmem %s178, 32 [#allocation1]
        %s209 = scalar_lea.vmem %s170, 32 [#allocation0]
        %v210 = vld [vmem:[%s209] sm:$0xff]
        %211 = vperm.xlu0 %4, %v210
        %v212 = vpop.permute.xlu0 %211
        %213 = vst [vmem:[%s208] sm:$0xff] %v212
        %s214 = scalar_lea.vmem %s208, 8 [#allocation1]
        %s215 = scalar_lea.vmem %s209, 8 [#allocation0]
        %v216 = vld [vmem:[%s215] sm:$0xff]
        %217 = vperm.xlu0 %4, %v216
        %v218 = vpop.permute.xlu0 %217
        %219 = vst [vmem:[%s214] sm:$0xff] %v218
        %s220 = scalar_lea.vmem %s178, 48 [#allocation1]
        %s221 = scalar_lea.vmem %s170, 48 [#allocation0]
        %v222 = vld [vmem:[%s221] sm:$0xff]
        %223 = vperm.xlu0 %4, %v222
        %v224 = vpop.permute.xlu0 %223
        %225 = vst [vmem:[%s220] sm:$0xff] %v224
        %s226 = scalar_lea.vmem %s220, 8 [#allocation1]
        %s227 = scalar_lea.vmem %s221, 8 [#allocation0]
        %v228 = vld [vmem:[%s227] sm:$0xff]
        %229 = vperm.xlu0 %4, %v228
        %v230 = vpop.permute.xlu0 %229
        %231 = vst [vmem:[%s226] sm:$0xff] %v230
        %s232 = scalar_lea.vmem %s178, 64 [#allocation1]
        %s233 = scalar_lea.vmem %s170, 64 [#allocation0]
        %v234 = vld [vmem:[%s233] sm:$0xff]
        %235 = vperm.xlu0 %4, %v234
        %v236 = vpop.permute.xlu0 %235
        %237 = vst [vmem:[%s232] sm:$0xff] %v236
        %s238 = scalar_lea.vmem %s232, 8 [#allocation1]
        %s239 = scalar_lea.vmem %s233, 8 [#allocation0]
        %v240 = vld [vmem:[%s239] sm:$0xff]
        %241 = vperm.xlu0 %4, %v240
        %v242 = vpop.permute.xlu0 %241
        %243 = vst [vmem:[%s238] sm:$0xff] %v242
        %s244 = scalar_lea.vmem %s178, 80 [#allocation1]
        %s245 = scalar_lea.vmem %s170, 80 [#allocation0]
        %v246 = vld [vmem:[%s245] sm:$0xff]
        %247 = vperm.xlu0 %4, %v246
        %v248 = vpop.permute.xlu0 %247
        %249 = vst [vmem:[%s244] sm:$0xff] %v248
        %s250 = scalar_lea.vmem %s244, 8 [#allocation1]
        %s251 = scalar_lea.vmem %s245, 8 [#allocation0]
        %v252 = vld [vmem:[%s251] sm:$0xff]
        %253 = vperm.xlu0 %4, %v252
        %v254 = vpop.permute.xlu0 %253
        %255 = vst [vmem:[%s250] sm:$0xff] %v254
        %s256 = scalar_lea.vmem %s178, 96 [#allocation1]
        %s257 = scalar_lea.vmem %s170, 96 [#allocation0]
        %v258 = vld [vmem:[%s257] sm:$0xff]
        %259 = vperm.xlu0 %4, %v258
        %v260 = vpop.permute.xlu0 %259
        %261 = vst [vmem:[%s256] sm:$0xff] %v260
        %s262 = scalar_lea.vmem %s256, 8 [#allocation1]
        %s263 = scalar_lea.vmem %s257, 8 [#allocation0]
        %v264 = vld [vmem:[%s263] sm:$0xff]
        %265 = vperm.xlu0 %4, %v264
        %v266 = vpop.permute.xlu0 %265
        %267 = vst [vmem:[%s262] sm:$0xff] %v266
        %s268 = scalar_lea.vmem %s178, 112 [#allocation1]
        %s269 = scalar_lea.vmem %s170, 112 [#allocation0]
        %v270 = vld [vmem:[%s269] sm:$0xff]
        %271 = vperm.xlu0 %4, %v270
        %v272 = vpop.permute.xlu0 %271
        %273 = vst [vmem:[%s268] sm:$0xff] %v272
        %s274 = scalar_lea.vmem %s268, 8 [#allocation1]
        %s275 = scalar_lea.vmem %s269, 8 [#allocation0]
        %v276 = vld [vmem:[%s275] sm:$0xff]
        %277 = vperm.xlu0 %4, %v276
        %v278 = vpop.permute.xlu0 %277
        %279 = vst [vmem:[%s274] sm:$0xff] %v278
        %s280 = sand.u32 %s11, 1
        %s281 = sand.u32 %s11, 1
        %s282 = smul.addr %s281, 128
        %s283 = scalar_lea.vmem [#allocation1], %s282
        %s284 = smul.u32 2, %s17
        %s285 = smul.u32 4, %s18
        %s286 = smul.u32 2, %s19
        %s287 = smul.addr %s286, 2
        %s288 = sadd.s32 %s20, %s287
        %s289 = smul.addr %s285, 4
        %s290 = sadd.s32 %s288, %s289
        %s291 = smul.addr %s284, 16
        %s292 = sadd.s32 %s290, %s291
        %s293 = smul.addr %s292, 8
        %s294 = scalar_lea.vmem %s1, %s293
        // Predicated region
        $region55: #{reverse.7} parent=53 // pred_check
          _
        $region56: #{reverse.7} parent=53 // pred_check_branch
          %296 = sbr.rel (0) target = $region58
        $region57: #{reverse.7} parent=53 // pred_region
          // Predicated region
          $region59: #{reverse.7} parent=57 // pred_check
            _
          $region60: #{reverse.7} parent=57 // pred_check_branch
            %298 = sbr.rel (0) target = $region62
          $region61: #{reverse.7} parent=57 // pred_region
            // Predicated region
            $region74: #{reverse.7} parent=61 // pred_check
              _
            $region75: #{reverse.7} parent=61 // pred_check_branch
              %344 = sbr.rel (0) target = $region77
            $region76: #{reverse.7} parent=61 // pred_region
              loop: start=0, step=1, limit=1
              $region78: #{reverse.7} parent=76 // loop_pre_header
                _
              $region79: #{reverse.7} parent=76 // loop_header
                %s346 = sphi 0, %s350
                %p347 = scmp.ge.s32.totalorder %s346, 1
                %s351 = sphi %s283, %s283
                %s352 = sphi %s294, %s294
              $region80: #{reverse.7} parent=76 // loop_header_branch
                %349 = sbr.rel (%p347) target = $region84
              $region81: #{reverse.7} parent=76 // loop_body
                %v353 = vld [vmem:[%s351] sm:$0xff]
                %354 = vst [vmem:[%s352] sm:$0xff] %v353
                %v355 = vld [vmem:[%s351 + $0x8] sm:$0xff]
                %356 = vst [vmem:[%s352 + $0x10] sm:$0xff] %v355
                %v357 = vld [vmem:[%s351 + $0x10] sm:$0xff]
                %358 = vst [vmem:[%s352 + $0x20] sm:$0xff] %v357
                %v359 = vld [vmem:[%s351 + $0x18] sm:$0xff]
                %360 = vst [vmem:[%s352 + $0x30] sm:$0xff] %v359
                %v361 = vld [vmem:[%s351 + $0x20] sm:$0xff]
                %362 = vst [vmem:[%s352 + $0x40] sm:$0xff] %v361
                %v363 = vld [vmem:[%s351 + $0x28] sm:$0xff]
                %364 = vst [vmem:[%s352 + $0x50] sm:$0xff] %v363
                %v365 = vld [vmem:[%s351 + $0x30] sm:$0xff]
                %366 = vst [vmem:[%s352 + $0x60] sm:$0xff] %v365
                %v367 = vld [vmem:[%s351 + $0x38] sm:$0xff]
                %368 = vst [vmem:[%s352 + $0x70] sm:$0xff] %v367
                %v369 = vld [vmem:[%s351 + $0x40] sm:$0xff]
                %370 = vst [vmem:[%s352 + $0x80] sm:$0xff] %v369
                %v371 = vld [vmem:[%s351 + $0x48] sm:$0xff]
                %372 = vst [vmem:[%s352 + $0x90] sm:$0xff] %v371
                %v373 = vld [vmem:[%s351 + $0x50] sm:$0xff]
                %374 = vst [vmem:[%s352 + $0xa0] sm:$0xff] %v373
                %v375 = vld [vmem:[%s351 + $0x58] sm:$0xff]
                %376 = vst [vmem:[%s352 + $0xb0] sm:$0xff] %v375
                %v377 = vld [vmem:[%s351 + $0x60] sm:$0xff]
                %378 = vst [vmem:[%s352 + $0xc0] sm:$0xff] %v377
                %v379 = vld [vmem:[%s351 + $0x68] sm:$0xff]
                %380 = vst [vmem:[%s352 + $0xd0] sm:$0xff] %v379
                %v381 = vld [vmem:[%s351 + $0x70] sm:$0xff]
                %382 = vst [vmem:[%s352 + $0xe0] sm:$0xff] %v381
                %v383 = vld [vmem:[%s351 + $0x78] sm:$0xff]
                %384 = vst [vmem:[%s352 + $0xf0] sm:$0xff] %v383
              $region82: #{reverse.7} parent=76 // loop_footer
                %s350 = sadd.s32 1, %s346
              $region83: #{reverse.7} parent=76 // loop_footer_branch
                %345 = sbr.rel target = $region79
              $region84: #{reverse.7} parent=76 // loop_exit
                _
            $region77: #{reverse.7} parent=61 // pred_fallthru
              _
            // Predicated region
            $region85: #{reverse.7} parent=61 // pred_check
              _
            $region86: #{reverse.7} parent=61 // pred_check_branch
              %386 = sbr.rel target = $region88
            $region87: #{reverse.7} parent=61 // pred_region
              _
            $region88: #{reverse.7} parent=61 // pred_fallthru
              _
          $region62: #{reverse.7} parent=57 // pred_fallthru
            _
          // Predicated region
          $region63: #{reverse.7} parent=57 // pred_check
            _
          $region64: #{reverse.7} parent=57 // pred_check_branch
            %300 = sbr.rel target = $region66
          $region65: #{reverse.7} parent=57 // pred_region
            %s302 = ssub.s32 256, 1
            loop: start=0, step=1, limit=1
            $region67: #{reverse.7} parent=65 // loop_pre_header
              _
            $region68: #{reverse.7} parent=65 // loop_header
              %s304 = sphi 0, %s308
              %p305 = scmp.ge.s32.totalorder %s304, 1
              %s309 = sphi %s283, %s283
              %s310 = sphi %s294, %s294
            $region69: #{reverse.7} parent=65 // loop_header_branch
              %307 = sbr.rel (%p305) target = $region73
            $region70: #{reverse.7} parent=65 // loop_body
              %v311 = vld [vmem:[%s309] sm:%s302]
              %312 = vst [vmem:[%s310] sm:%s302] %v311
              %v313 = vld [vmem:[%s309 + $0x8] sm:%s302]
              %314 = vst [vmem:[%s310 + $0x10] sm:%s302] %v313
              %v315 = vld [vmem:[%s309 + $0x10] sm:%s302]
              %316 = vst [vmem:[%s310 + $0x20] sm:%s302] %v315
              %v317 = vld [vmem:[%s309 + $0x18] sm:%s302]
              %318 = vst [vmem:[%s310 + $0x30] sm:%s302] %v317
              %v319 = vld [vmem:[%s309 + $0x20] sm:%s302]
              %320 = vst [vmem:[%s310 + $0x40] sm:%s302] %v319
              %v321 = vld [vmem:[%s309 + $0x28] sm:%s302]
              %322 = vst [vmem:[%s310 + $0x50] sm:%s302] %v321
              %v323 = vld [vmem:[%s309 + $0x30] sm:%s302]
              %324 = vst [vmem:[%s310 + $0x60] sm:%s302] %v323
              %v325 = vld [vmem:[%s309 + $0x38] sm:%s302]
              %326 = vst [vmem:[%s310 + $0x70] sm:%s302] %v325
              %v327 = vld [vmem:[%s309 + $0x40] sm:%s302]
              %328 = vst [vmem:[%s310 + $0x80] sm:%s302] %v327
              %v329 = vld [vmem:[%s309 + $0x48] sm:%s302]
              %330 = vst [vmem:[%s310 + $0x90] sm:%s302] %v329
              %v331 = vld [vmem:[%s309 + $0x50] sm:%s302]
              %332 = vst [vmem:[%s310 + $0xa0] sm:%s302] %v331
              %v333 = vld [vmem:[%s309 + $0x58] sm:%s302]
              %334 = vst [vmem:[%s310 + $0xb0] sm:%s302] %v333
              %v335 = vld [vmem:[%s309 + $0x60] sm:%s302]
              %336 = vst [vmem:[%s310 + $0xc0] sm:%s302] %v335
              %v337 = vld [vmem:[%s309 + $0x68] sm:%s302]
              %338 = vst [vmem:[%s310 + $0xd0] sm:%s302] %v337
              %v339 = vld [vmem:[%s309 + $0x70] sm:%s302]
              %340 = vst [vmem:[%s310 + $0xe0] sm:%s302] %v339
              %v341 = vld [vmem:[%s309 + $0x78] sm:%s302]
              %342 = vst [vmem:[%s310 + $0xf0] sm:%s302] %v341
            $region71: #{reverse.7} parent=65 // loop_footer
              %s308 = sadd.s32 1, %s304
            $region72: #{reverse.7} parent=65 // loop_footer_branch
              %303 = sbr.rel target = $region68
            $region73: #{reverse.7} parent=65 // loop_exit
              _
          $region66: #{reverse.7} parent=57 // pred_fallthru
            _
        $region58: #{reverse.7} parent=53 // pred_fallthru
          _
        %387 = vnop
      $region54: #{reverse.7} parent=5 // pred_fallthru
        _
      %p388 = scmp.le.s32.totalorder 2, %s6
      // Predicated region
      $region89: #{reverse.7} parent=5 // pred_check
        %p389 = pneg %p388
      $region90: #{reverse.7} parent=5 // pred_check_branch
        %391 = sbr.rel (%p389) target = $region92
      $region91: #{reverse.7} parent=5 // pred_region
        %s392 = ssub.s32 %s6, 2
        %s393 = sand.u32 %s12, 1
        %s394 = sand.u32 %s12, 1
        %s395 = smul.addr %s394, 128
        %s396 = scalar_lea.vmem [#allocation1], %s395
      $region92: #{reverse.7} parent=5 // pred_fallthru
        _
    $region6: #{reverse.7} parent=1 // loop_footer
      %s10 = sadd.s32 1, %s6
    $region7: #{reverse.7} parent=1 // loop_footer_branch
      %5 = sbr.rel target = $region3
    $region8: #{reverse.7} parent=1 // loop_exit
      _

// kernel: _lambda_.5
$region0: #{_lambda_.5}
  #allocation0 [shape = 'u32[]', space=smem, size = 0x4, offset = 0x4, fixed_abs, tag = 'smem constant byte address 0x4 - core index']
  #allocation1 [shape = 'u32[72,128]{1,0:T(1,128)}', space=vmem, size = 0x9000, scoped, tag = 'internal scratch']
  %s0 = inlined_call_operand.vmem [shape: f32[8,1], index: 0, kind: input, shape index: {}]
  %s1 = inlined_call_operand.vmem [shape: f32[8,1], index: 1, kind: input, shape index: {}]
  %s2 = inlined_call_operand.vmem [shape: f32[8,4096], index: 2, kind: input, shape index: {}]
  %s3 = inlined_call_operand.vmem [shape: f32[8,4096], index: 3, kind: input, shape index: {}]
  %s4 = inlined_call_operand.vmem [shape: f32[8,4096], index: 4, kind: output, shape index: {}]
  %s5 = sld [smem:[#allocation0]]
  $region49: #{_lambda_.5} parent=0
    _
  %s7 = ssub.s32 1, %s5
  %s8 = scalar_select 0, %s7, %s5
  loop: start=0, step=1, limit=4
  $region2: #{_lambda_.5} parent=0 // loop_pre_header
    _
  $region3: #{_lambda_.5} parent=0 // loop_header
    %s10 = sphi 0, %s14
    %p11 = scmp.ge.s32.totalorder %s10, 4
    %s18 = sphi 0, %s18
    %s20 = sphi 0, %s18
    %s21 = sphi 0, %s20
    %s35 = sphi 0, %s21
    %s39 = sphi 0, %s39
    %s41 = sphi 0, %s39
    %s42 = sphi 0, %s41
    %s56 = sphi 0, %s42
    %s62 = sphi 0, %s64
    %s65 = sphi 0, %s62
    %s66 = sphi 0, %s65
    %s82 = sphi 0, %s66
    %s88 = sphi 0, %s90
    %s91 = sphi 0, %s88
    %s92 = sphi 0, %s91
    %s108 = sphi 0, %s92
    %s114 = sphi 0, %s116
    %s117 = sphi 0, %s114
    %s118 = sphi 0, %s117
    %s134 = sphi 0, %s118
  $region4: #{_lambda_.5} parent=0 // loop_header_branch
    %13 = sbr.rel (%p11) target = $region8
  $region5: #{_lambda_.5} parent=0 // loop_body
    %s15 = ssub.s32 %s10, 1
    %s16 = ssub.s32 %s10, 2
    %s17 = sadd.s32 %s10, 1
    %s19 = sadd.s32 %s18, 1
    %p22 = scmp.eq.s32.totalorder %s10, 1
    %p23 = scmp.ne.s32.totalorder %s18, %s20
    %p24 = scmp.eq.s32.totalorder %s10, 0
    %p25 = por %p23, %p24
    %p26 = scmp.ne.s32.totalorder %s18, %s20
    %p27 = scmp.eq.s32.totalorder %s15, 1
    %p28 = por %p26, %p27
    %p29 = scmp.ne.s32.totalorder %s20, %s21
    %p30 = scmp.eq.s32.totalorder %s15, 0
    %p31 = por %p29, %p30
    %p32 = scmp.ne.s32.totalorder %s20, %s21
    %p33 = scmp.eq.s32.totalorder %s16, 1
    %p34 = por %p32, %p33
    %p36 = scmp.ne.s32.totalorder %s21, %s35
    %p37 = scmp.eq.s32.totalorder %s16, 0
    %p38 = por %p36, %p37
    %s40 = sadd.s32 %s39, 1
    %p43 = scmp.eq.s32.totalorder %s10, 1
    %p44 = scmp.ne.s32.totalorder %s39, %s41
    %p45 = scmp.eq.s32.totalorder %s10, 0
    %p46 = por %p44, %p45
    %p47 = scmp.ne.s32.totalorder %s39, %s41
    %p48 = scmp.eq.s32.totalorder %s15, 1
    %p49 = por %p47, %p48
    %p50 = scmp.ne.s32.totalorder %s41, %s42
    %p51 = scmp.eq.s32.totalorder %s15, 0
    %p52 = por %p50, %p51
    %p53 = scmp.ne.s32.totalorder %s41, %s42
    %p54 = scmp.eq.s32.totalorder %s16, 1
    %p55 = por %p53, %p54
    %p57 = scmp.ne.s32.totalorder %s42, %s56
    %p58 = scmp.eq.s32.totalorder %s16, 0
    %p59 = por %p57, %p58
    %s60 = ssub.s32 %s10, %s17
    %p61 = scmp.eq.s32.totalorder %s60, 0
    %s63 = sadd.s32 %s62, 1
    %s64 = scalar_select %p61, %s62, %s63
    %p67 = pneg %p61
    %p68 = scmp.eq.s32.totalorder %s10, 1
    %p69 = por %p67, %p68
    %p70 = scmp.ne.s32.totalorder %s62, %s65
    %p71 = scmp.eq.s32.totalorder %s10, 0
    %p72 = por %p70, %p71
    %p73 = scmp.ne.s32.totalorder %s62, %s65
    %p74 = scmp.eq.s32.totalorder %s15, 1
    %p75 = por %p73, %p74
    %p76 = scmp.ne.s32.totalorder %s65, %s66
    %p77 = scmp.eq.s32.totalorder %s15, 0
    %p78 = por %p76, %p77
    %p79 = scmp.ne.s32.totalorder %s65, %s66
    %p80 = scmp.eq.s32.totalorder %s16, 1
    %p81 = por %p79, %p80
    %p83 = scmp.ne.s32.totalorder %s66, %s82
    %p84 = scmp.eq.s32.totalorder %s16, 0
    %p85 = por %p83, %p84
    %s86 = ssub.s32 %s10, %s17
    %p87 = scmp.eq.s32.totalorder %s86, 0
    %s89 = sadd.s32 %s88, 1
    %s90 = scalar_select %p87, %s88, %s89
    %p93 = pneg %p87
    %p94 = scmp.eq.s32.totalorder %s10, 1
    %p95 = por %p93, %p94
    %p96 = scmp.ne.s32.totalorder %s88, %s91
    %p97 = scmp.eq.s32.totalorder %s10, 0
    %p98 = por %p96, %p97
    %p99 = scmp.ne.s32.totalorder %s88, %s91
    %p100 = scmp.eq.s32.totalorder %s15, 1
    %p101 = por %p99, %p100
    %p102 = scmp.ne.s32.totalorder %s91, %s92
    %p103 = scmp.eq.s32.totalorder %s15, 0
    %p104 = por %p102, %p103
    %p105 = scmp.ne.s32.totalorder %s91, %s92
    %p106 = scmp.eq.s32.totalorder %s16, 1
    %p107 = por %p105, %p106
    %p109 = scmp.ne.s32.totalorder %s92, %s108
    %p110 = scmp.eq.s32.totalorder %s16, 0
    %p111 = por %p109, %p110
    %s112 = ssub.s32 %s10, %s17
    %p113 = scmp.eq.s32.totalorder %s112, 0
    %s115 = sadd.s32 %s114, 1
    %s116 = scalar_select %p113, %s114, %s115
    %p119 = pneg %p113
    %p120 = scmp.eq.s32.totalorder %s10, 1
    %p121 = por %p119, %p120
    %p122 = scmp.ne.s32.totalorder %s114, %s117
    %p123 = scmp.eq.s32.totalorder %s10, 0
    %p124 = por %p122, %p123
    %p125 = scmp.ne.s32.totalorder %s114, %s117
    %p126 = scmp.eq.s32.totalorder %s15, 1
    %p127 = por %p125, %p126
    %p128 = scmp.ne.s32.totalorder %s117, %s118
    %p129 = scmp.eq.s32.totalorder %s15, 0
    %p130 = por %p128, %p129
    %p131 = scmp.ne.s32.totalorder %s117, %s118
    %p132 = scmp.eq.s32.totalorder %s16, 1
    %p133 = por %p131, %p132
    %p135 = scmp.ne.s32.totalorder %s118, %s134
    %p136 = scmp.eq.s32.totalorder %s16, 0
    %p137 = por %p135, %p136
    %p138 = scmp.le.s32.totalorder 1, %s10
    %p139 = scmp.lt.s32.totalorder %s10, 3
    %p140 = pnand %p138, %p139
    %p141 = pneg %p140
    // Predicated region
    $region9: #{_lambda_.5} parent=5 // pred_check
      _
    $region10: #{_lambda_.5} parent=5 // pred_check_branch
      %143 = sbr.rel (%p140) target = $region12
    $region11: #{_lambda_.5} parent=5 // pred_region
      %s144 = ssub.s32 %s10, 1
      // Predicated region
      $region13: #{_lambda_.5} parent=11 // pred_check
        %p145 = pneg %p31
      $region14: #{_lambda_.5} parent=11 // pred_check_branch
        %147 = sbr.rel (%p145) target = $region16
      $region15: #{_lambda_.5} parent=11 // pred_region
        _
      $region16: #{_lambda_.5} parent=11 // pred_fallthru
        _
      // Predicated region
      $region17: #{_lambda_.5} parent=11 // pred_check
        %p148 = pneg %p52
      $region18: #{_lambda_.5} parent=11 // pred_check_branch
        %150 = sbr.rel (%p148) target = $region20
      $region19: #{_lambda_.5} parent=11 // pred_region
        _
      $region20: #{_lambda_.5} parent=11 // pred_fallthru
        _
    $region12: #{_lambda_.5} parent=5 // pred_fallthru
      _
    %p151 = scmp.lt.s32.totalorder %s10, 2
    // Predicated region
    $region21: #{_lambda_.5} parent=5 // pred_check
      %p152 = pneg %p151
    $region22: #{_lambda_.5} parent=5 // pred_check_branch
      %154 = sbr.rel (%p152) target = $region24
    $region23: #{_lambda_.5} parent=5 // pred_region
      // Predicated region
      $region25: #{_lambda_.5} parent=23 // pred_check
        %p155 = pneg %p72
      $region26: #{_lambda_.5} parent=23 // pred_check_branch
        %157 = sbr.rel (%p155) target = $region28
      $region27: #{_lambda_.5} parent=23 // pred_region
        %s158 = smul.u32 16, %s10
        %p159 = scmp.lt.s32.totalorder %s158, 31
        %s160 = scalar_select %p159, %s158, 31
        %s161 = smul.addr %s160, 8
        %s162 = scalar_lea.vmem %s2, %s161
        %s163 = smul.u32 16, %s10
      $region28: #{_lambda_.5} parent=23 // pred_fallthru
        _
      // Predicated region
      $region29: #{_lambda_.5} parent=23 // pred_check
        %p164 = pneg %p98
      $region30: #{_lambda_.5} parent=23 // pred_check_branch
        %166 = sbr.rel (%p164) target = $region32
      $region31: #{_lambda_.5} parent=23 // pred_region
        %s167 = smul.u32 16, %s10
        %p168 = scmp.lt.s32.totalorder %s167, 31
        %s169 = scalar_select %p168, %s167, 31
        %s170 = smul.addr %s169, 8
        %s171 = scalar_lea.vmem %s3, %s170
        %s172 = smul.u32 16, %s10
      $region32: #{_lambda_.5} parent=23 // pred_fallthru
        _
    $region24: #{_lambda_.5} parent=5 // pred_fallthru
      _
    %p173 = scmp.le.s32.totalorder 1, %s10
    %p174 = scmp.lt.s32.totalorder %s10, 3
    %p175 = pnand %p173, %p174
    %p176 = pneg %p175
    // Predicated region
    $region33: #{_lambda_.5} parent=5 // pred_check
      _
    $region34: #{_lambda_.5} parent=5 // pred_check_branch
      %178 = sbr.rel (%p175) target = $region36
    $region35: #{_lambda_.5} parent=5 // pred_region
      %s179 = ssub.s32 %s10, 1
      %p180 = pneg %p31
      %p181 = pneg %p28
      %p182 = pneg %p52
      %p183 = pneg %p49
      %s184 = smul.u32 16, %s15
      %p185 = scmp.lt.s32.totalorder %s184, 31
      %s186 = scalar_select %p185, %s184, 31
      %s187 = smul.addr %s186, 8
      %s188 = scalar_lea.vmem %s2, %s187
      %p189 = pneg %p78
      %p190 = pneg %p75
      %s191 = smul.u32 16, %s15
      %p192 = scmp.lt.s32.totalorder %s191, 31
      %s193 = scalar_select %p192, %s191, 31
      %s194 = smul.addr %s193, 8
      %s195 = scalar_lea.vmem %s3, %s194
      %p196 = pneg %p104
      %p197 = pneg %p101
      %p198 = pneg %p130
      %p199 = pneg %p127
      %s200 = smul.u32 16, %s15
      %p201 = scmp.lt.s32.totalorder %s200, 31
      %s202 = scalar_select %p201, %s200, 31
      %s203 = smul.addr %s202, 8
      %s204 = scalar_lea.vmem %s4, %s203
      %s205 = smul.u32 16, %s15
      %p206 = scmp.lt.s32.totalorder %s205, 31
      %s207 = scalar_select %p206, %s205, 31
      %s208 = smul.addr %s207, 8
      %s209 = scalar_lea.vmem %s2, %s208
      %s210 = smul.u32 16, %s15
      %s211 = smul.u32 16, %s15
      %p212 = scmp.lt.s32.totalorder %s211, 31
      %s213 = scalar_select %p212, %s211, 31
      %s214 = smul.addr %s213, 8
      %s215 = scalar_lea.vmem %s3, %s214
      %s216 = smul.u32 16, %s15
      %s217 = smul.u32 16, %s15
      %p218 = scmp.lt.s32.totalorder %s217, 31
      %s219 = scalar_select %p218, %s217, 31
      %s220 = smul.addr %s219, 8
      %s221 = scalar_lea.vmem %s4, %s220
      %s222 = smul.u32 16, %s15
      %v223 = vld [vmem:[%s209] sm:$0xff]
      %v224 = vld [vmem:[%s209 + $0x8] sm:$0xff]
      %v225 = vld [vmem:[%s209 + $0x10] sm:$0xff]
      %v226 = vld [vmem:[%s209 + $0x18] sm:$0xff]
      %v227 = vld [vmem:[%s209 + $0x20] sm:$0xff]
      %v228 = vld [vmem:[%s209 + $0x28] sm:$0xff]
      %v229 = vld [vmem:[%s209 + $0x30] sm:$0xff]
      %v230 = vld [vmem:[%s209 + $0x38] sm:$0xff]
      %v231 = vld [vmem:[%s209 + $0x40] sm:$0xff]
      %v232 = vld [vmem:[%s209 + $0x48] sm:$0xff]
      %v233 = vld [vmem:[%s209 + $0x50] sm:$0xff]
      %v234 = vld [vmem:[%s209 + $0x58] sm:$0xff]
      %v235 = vld [vmem:[%s209 + $0x60] sm:$0xff]
      %v236 = vld [vmem:[%s209 + $0x68] sm:$0xff]
      %v237 = vld [vmem:[%s209 + $0x70] sm:$0xff]
      %v238 = vld [vmem:[%s209 + $0x78] sm:$0xff]
      %v239 = vld [vmem:[%s0] sm:$0xff]
      %241 = vset.pattern.permute.xlu0 0
      %242 = vperm.xlu0 %241, %v239
      %v243 = vpop.permute.xlu0 %242
      %v245 = vmul.f32 %v223, %v243
      %v246 = vmul.f32 %v224, %v243
      %v247 = vmul.f32 %v225, %v243
      %v248 = vmul.f32 %v226, %v243
      %v249 = vmul.f32 %v227, %v243
      %v250 = vmul.f32 %v228, %v243
      %v251 = vmul.f32 %v229, %v243
      %v252 = vmul.f32 %v230, %v243
      %v253 = vmul.f32 %v231, %v243
      %v254 = vmul.f32 %v232, %v243
      %v255 = vmul.f32 %v233, %v243
      %v256 = vmul.f32 %v234, %v243
      %v257 = vmul.f32 %v235, %v243
      %v258 = vmul.f32 %v236, %v243
      %v259 = vmul.f32 %v237, %v243
      %v260 = vmul.f32 %v238, %v243
      %v261 = vld [vmem:[%s215] sm:$0xff]
      %v262 = vld [vmem:[%s215 + $0x8] sm:$0xff]
      %v263 = vld [vmem:[%s215 + $0x10] sm:$0xff]
      %v264 = vld [vmem:[%s215 + $0x18] sm:$0xff]
      %v265 = vld [vmem:[%s215 + $0x20] sm:$0xff]
      %v266 = vld [vmem:[%s215 + $0x28] sm:$0xff]
      %v267 = vld [vmem:[%s215 + $0x30] sm:$0xff]
      %v268 = vld [vmem:[%s215 + $0x38] sm:$0xff]
      %v269 = vld [vmem:[%s215 + $0x40] sm:$0xff]
      %v270 = vld [vmem:[%s215 + $0x48] sm:$0xff]
      %v271 = vld [vmem:[%s215 + $0x50] sm:$0xff]
      %v272 = vld [vmem:[%s215 + $0x58] sm:$0xff]
      %v273 = vld [vmem:[%s215 + $0x60] sm:$0xff]
      %v274 = vld [vmem:[%s215 + $0x68] sm:$0xff]
      %v275 = vld [vmem:[%s215 + $0x70] sm:$0xff]
      %v276 = vld [vmem:[%s215 + $0x78] sm:$0xff]
      %v277 = vld [vmem:[%s1] sm:$0xff]
      %279 = vset.pattern.permute.xlu0 0
      %280 = vperm.xlu0 %279, %v277
      %v281 = vpop.permute.xlu0 %280
      %v283 = vmul.f32 %v261, %v281
      %v284 = vmul.f32 %v262, %v281
      %v285 = vmul.f32 %v263, %v281
      %v286 = vmul.f32 %v264, %v281
      %v287 = vmul.f32 %v265, %v281
      %v288 = vmul.f32 %v266, %v281
      %v289 = vmul.f32 %v267, %v281
      %v290 = vmul.f32 %v268, %v281
      %v291 = vmul.f32 %v269, %v281
      %v292 = vmul.f32 %v270, %v281
      %v293 = vmul.f32 %v271, %v281
      %v294 = vmul.f32 %v272, %v281
      %v295 = vmul.f32 %v273, %v281
      %v296 = vmul.f32 %v274, %v281
      %v297 = vmul.f32 %v275, %v281
      %v298 = vmul.f32 %v276, %v281
      %v299 = vadd.f32 %v245, %v283
      %v300 = vadd.f32 %v246, %v284
      %v301 = vadd.f32 %v247, %v285
      %v302 = vadd.f32 %v248, %v286
      %v303 = vadd.f32 %v249, %v287
      %v304 = vadd.f32 %v250, %v288
      %v305 = vadd.f32 %v251, %v289
      %v306 = vadd.f32 %v252, %v290
      %v307 = vadd.f32 %v253, %v291
      %v308 = vadd.f32 %v254, %v292
      %v309 = vadd.f32 %v255, %v293
      %v310 = vadd.f32 %v256, %v294
      %v311 = vadd.f32 %v257, %v295
      %v312 = vadd.f32 %v258, %v296
      %v313 = vadd.f32 %v259, %v297
      %v314 = vadd.f32 %v260, %v298
      %315 = vst [vmem:[%s221] sm:$0xff] %v299
      %316 = vst [vmem:[%s221 + $0x8] sm:$0xff] %v300
      %317 = vst [vmem:[%s221 + $0x10] sm:$0xff] %v301
      %318 = vst [vmem:[%s221 + $0x18] sm:$0xff] %v302
      %319 = vst [vmem:[%s221 + $0x20] sm:$0xff] %v303
      %320 = vst [vmem:[%s221 + $0x28] sm:$0xff] %v304
      %321 = vst [vmem:[%s221 + $0x30] sm:$0xff] %v305
      %322 = vst [vmem:[%s221 + $0x38] sm:$0xff] %v306
      %323 = vst [vmem:[%s221 + $0x40] sm:$0xff] %v307
      %324 = vst [vmem:[%s221 + $0x48] sm:$0xff] %v308
      %325 = vst [vmem:[%s221 + $0x50] sm:$0xff] %v309
      %326 = vst [vmem:[%s221 + $0x58] sm:$0xff] %v310
      %327 = vst [vmem:[%s221 + $0x60] sm:$0xff] %v311
      %328 = vst [vmem:[%s221 + $0x68] sm:$0xff] %v312
      %329 = vst [vmem:[%s221 + $0x70] sm:$0xff] %v313
      %330 = vst [vmem:[%s221 + $0x78] sm:$0xff] %v314
      %s331 = smul.u32 16, %s15
      %p332 = scmp.lt.s32.totalorder %s331, 31
      %s333 = scalar_select %p332, %s331, 31
      %s334 = smul.addr %s333, 8
      %s335 = scalar_lea.vmem %s4, %s334
      // Predicated region
      $region37: #{_lambda_.5} parent=35 // pred_check
        %p336 = pneg %p127
      $region38: #{_lambda_.5} parent=35 // pred_check_branch
        %338 = sbr.rel (%p336) target = $region40
      $region39: #{_lambda_.5} parent=35 // pred_region
        %s339 = smul.u32 16, %s15
      $region40: #{_lambda_.5} parent=35 // pred_fallthru
        _
    $region36: #{_lambda_.5} parent=5 // pred_fallthru
      _
    %p340 = scmp.le.s32.totalorder 2, %s10
    // Predicated region
    $region41: #{_lambda_.5} parent=5 // pred_check
      %p341 = pneg %p340
    $region42: #{_lambda_.5} parent=5 // pred_check_branch
      %343 = sbr.rel (%p341) target = $region44
    $region43: #{_lambda_.5} parent=5 // pred_region
      %s344 = ssub.s32 %s10, 2
      // Predicated region
      $region45: #{_lambda_.5} parent=43 // pred_check
        %p345 = pneg %p133
      $region46: #{_lambda_.5} parent=43 // pred_check_branch
        %347 = sbr.rel (%p345) target = $region48
      $region47: #{_lambda_.5} parent=43 // pred_region
        %s348 = smul.u32 16, %s16
        %p349 = scmp.lt.s32.totalorder %s348, 31
        %s350 = scalar_select %p349, %s348, 31
        %s351 = smul.addr %s350, 8
        %s352 = scalar_lea.vmem %s4, %s351
      $region48: #{_lambda_.5} parent=43 // pred_fallthru
        _
    $region44: #{_lambda_.5} parent=5 // pred_fallthru
      _
  $region6: #{_lambda_.5} parent=0 // loop_footer
    %s14 = sadd.s32 1, %s10
  $region7: #{_lambda_.5} parent=0 // loop_footer_branch
    %9 = sbr.rel target = $region3
  $region8: #{_lambda_.5} parent=0 // loop_exit
    _

</llo_original>
